<compile_context>
chip_gen: v6e
topology: v6e:2x2x1
jax: 0.10.0
libtpu: 0.0.40
codegen_flags: <defaults>
</compile_context>

<pallas_src>
import functools

import jax
import jax.numpy as jnp
import numpy as np
from jax import lax
from jax.experimental import pallas as pl
from jax.experimental.pallas import tpu as pltpu

BN_EPS = 1e-5


# ------------------------- chip-dependent sizing -------------------------

@functools.lru_cache(maxsize=None)
def _vmem_budget():
    """Scoped-VMEM limit derived from physical VMEM (64 MiB v7x, 128 MiB
    v5e/v6e) with headroom; conservative v7x-sized default if unknown."""
    try:
        phys = int(pltpu.get_tpu_info().vmem_capacity_bytes)
    except Exception:
        phys = 64 * 1024 * 1024
    return max(32 * 1024 * 1024, min((phys * 3) // 4, 100 * 1024 * 1024))


@functools.lru_cache(maxsize=None)
def _block_m():
    # Larger M tiles on 128 MiB-VMEM chips (v5e/v6e), smaller on v7x.
    return 2048 if _vmem_budget() >= 80 * 1024 * 1024 else 1024


def _mosaic_params(semantics):
    return pltpu.CompilerParams(dimension_semantics=tuple(semantics),
                                vmem_limit_bytes=_vmem_budget())


def _pick_tm(M, row_bytes, resident_bytes):
    """Rows per grid step for the 1x1-conv matmuls: as large as possible while
    double-buffered row tiles + resident weights stay inside the VMEM budget."""
    tm = min(_block_m(), M)
    if tm >= M:
        return M
    budget = (_vmem_budget() * 7) // 10
    while tm > 256 and 2 * tm * row_bytes + resident_bytes > budget:
        tm //= 2
    return tm


def _pick_band_rows(Ho, Wo, target_rows=512):
    """Output-row band height for the 3x3 conv: a divisor of Ho giving >=2
    bands per image (pipelining + megacore work) and ~<= target output rows."""
    best = None
    for d in range(1, Ho):
        if Ho % d == 0 and d * Wo <= target_rows:
            best = d
    if best is None:
        best = 1 if Ho > 1 else Ho
    return best


# ----------------------------- Pallas kernels -----------------------------

def _mm_bn_kernel(x_ref, w_ref, s_ref, b_ref, o_ref, *, relu):
    """out = [relu](x @ w * scale + bias) -- 1x1 conv + folded BN (+ReLU)."""
    acc = jnp.dot(x_ref[...], w_ref[...], preferred_element_type=jnp.float32)
    out = acc * s_ref[...] + b_ref[...]
    if relu:
        out = jnp.maximum(out, 0.0)
    o_ref[...] = out.astype(o_ref.dtype)


def _mm_bn_add_relu_kernel(x_ref, w_ref, s_ref, b_ref, r_ref, o_ref):
    """out = relu(x @ w3 * s3 + b3 + residual) -- conv3+bn3+add+relu (identity)."""
    acc = jnp.dot(x_ref[...], w_ref[...], preferred_element_type=jnp.float32)
    out = acc * s_ref[...] + b_ref[...] + r_ref[...].astype(jnp.float32)
    o_ref[...] = jnp.maximum(out, 0.0).astype(o_ref.dtype)


def _mm_bn_ds_add_relu_kernel(x_ref, w_ref, s_ref, b_ref,
                              xr_ref, wd_ref, sd_ref, bd_ref, o_ref):
    """out = relu(x@w3*s3+b3 + (xr@wd)*sd+bd) -- conv3+bn3 fused with the 1x1
    downsample conv + bn over the same row tile (shared residual read)."""
    main = jnp.dot(x_ref[...], w_ref[...], preferred_element_type=jnp.float32)
    main = main * s_ref[...] + b_ref[...]
    res = jnp.dot(xr_ref[...], wd_ref[...], preferred_element_type=jnp.float32)
    res = res * sd_ref[...] + bd_ref[...]
    o_ref[...] = jnp.maximum(main + res, 0.0).astype(o_ref.dtype)


def _conv3x3_bn_relu_kernel(x_ref, w_ref, s_ref, b_ref, o_ref, xp_ref,
                            *, stride, dilation):
    """3x3 conv + BN + ReLU over one output-row band of one image.

    grid = (N, Ho // th).  A bf16 zero-halo padded copy of the current image
    lives in VMEM scratch, filled once per image (band 0; band axis is
    "arbitrary" so bands of one image run sequentially on one core).  Each
    band does 3 MXU matmuls with K = 3*Cin (kw taps merged along K) into a f32
    accumulator and writes a (th, Wo, Co) bf16 band.
    """
    t = pl.program_id(1)
    _, H, W, C = x_ref.shape
    _, THo, Wo, Co = o_ref.shape
    pad = dilation
    Hp = H + 2 * pad
    Wp = W + 2 * pad

    @pl.when(t == 0)
    def _():
        # Zero only the halo border slabs, then copy the image interior.
        zrow = jnp.zeros((1, pad, Wp, C), xp_ref.dtype)
        zcol = jnp.zeros((1, H, pad, C), xp_ref.dtype)
        xp_ref[:, :pad, :, :] = zrow
        xp_ref[:, pad + H:, :, :] = zrow
        xp_ref[:, pad:pad + H, :pad, :] = zcol
        xp_ref[:, pad:pad + H, pad + W:, :] = zcol
        xp_ref[:, pad:pad + H, pad:pad + W, :] = x_ref[...]

    row0 = pl.multiple_of(t * (THo * stride), THo * stride)
    span_h = (THo - 1) * stride + 1
    span_w = (Wo - 1) * stride + 1

    acc = jnp.zeros((THo * Wo, Co), jnp.float32)
    for kh in range(3):
        h0 = row0 + kh * dilation
        taps = []
        for kw in range(3):
            w0 = kw * dilation
            patch = xp_ref[:, pl.ds(h0, span_h), w0:w0 + span_w, :]
            if stride > 1:
                # TODO(synk): stride>1 tap subsampling (strided value slice)
                # is implemented but not exercised by the self-test below.
                patch = lax.slice(patch, (0, 0, 0, 0), patch.shape,
                                  (1, stride, stride, 1))
            taps.append(patch)
        band = jnp.concatenate(taps, axis=-1)            # (1, THo, Wo, 3C)
        acc = acc + jnp.dot(band.reshape(THo * Wo, 3 * C), w_ref[kh],
                            preferred_element_type=jnp.float32)
    out = jnp.maximum(acc * s_ref[...] + b_ref[...], 0.0)
    # TODO(synk): for Co < 128 this band store is lane-masked; a lane-dense
    #             (th, Wo*Co) output layout would avoid vst.msk.
    o_ref[...] = out.reshape(o_ref.shape).astype(o_ref.dtype)


# --------------------------- pallas_call wrappers ---------------------------

def mm_bn(x, w, scale, bias, *, relu):
    M, K = x.shape
    Nc = w.shape[1]
    tm = _pick_tm(M, row_bytes=2 * (K + Nc), resident_bytes=4 * K * Nc)
    cost = pl.CostEstimate(
        flops=2 * M * K * Nc, transcendentals=0,
        bytes_accessed=(M * K + K * Nc + M * Nc) * 2 + 2 * Nc * 4)
    return pl.pallas_call(
        functools.partial(_mm_bn_kernel, relu=relu),
        out_shape=jax.ShapeDtypeStruct((M, Nc), x.dtype),
        grid=(pl.cdiv(M, tm),),
        in_specs=[pl.BlockSpec((tm, K), lambda i: (i, 0)),
                  pl.BlockSpec((K, Nc), lambda i: (0, 0)),
                  pl.BlockSpec((1, Nc), lambda i: (0, 0)),
                  pl.BlockSpec((1, Nc), lambda i: (0, 0))],
        out_specs=pl.BlockSpec((tm, Nc), lambda i: (i, 0)),
        compiler_params=_mosaic_params(("parallel",)),
        cost_estimate=cost,
    )(x, w, scale, bias)


def mm_bn_add_relu(x, w, scale, bias, res):
    M, K = x.shape
    Co = w.shape[1]
    tm = _pick_tm(M, row_bytes=2 * (K + 2 * Co), resident_bytes=4 * K * Co)
    cost = pl.CostEstimate(
        flops=2 * M * K * Co, transcendentals=0,
        bytes_accessed=(M * K + K * Co + 2 * M * Co) * 2 + 2 * Co * 4)
    return pl.pallas_call(
        _mm_bn_add_relu_kernel,
        out_shape=jax.ShapeDtypeStruct((M, Co), jnp.bfloat16),
        grid=(pl.cdiv(M, tm),),
        in_specs=[pl.BlockSpec((tm, K), lambda i: (i, 0)),
                  pl.BlockSpec((K, Co), lambda i: (0, 0)),
                  pl.BlockSpec((1, Co), lambda i: (0, 0)),
                  pl.BlockSpec((1, Co), lambda i: (0, 0)),
                  pl.BlockSpec((tm, Co), lambda i: (i, 0))],
        out_specs=pl.BlockSpec((tm, Co), lambda i: (i, 0)),
        compiler_params=_mosaic_params(("parallel",)),
        cost_estimate=cost,
    )(x, w, scale, bias, res)


def mm_bn_ds_add_relu(x, w, scale, bias, xr, wd, sd, bd):
    M, K = x.shape
    Co = w.shape[1]
    Kr = xr.shape[1]
    tm = _pick_tm(M, row_bytes=2 * (K + Kr + Co),
                  resident_bytes=4 * (K * Co + Kr * Co))
    cost = pl.CostEstimate(
        flops=2 * M * (K + Kr) * Co, transcendentals=0,
        bytes_accessed=(M * K + K * Co + M * Kr + Kr * Co + M * Co) * 2
                       + 4 * Co * 4)
    return pl.pallas_call(
        _mm_bn_ds_add_relu_kernel,
        out_shape=jax.ShapeDtypeStruct((M, Co), jnp.bfloat16),
        grid=(pl.cdiv(M, tm),),
        in_specs=[pl.BlockSpec((tm, K), lambda i: (i, 0)),
                  pl.BlockSpec((K, Co), lambda i: (0, 0)),
                  pl.BlockSpec((1, Co), lambda i: (0, 0)),
                  pl.BlockSpec((1, Co), lambda i: (0, 0)),
                  pl.BlockSpec((tm, Kr), lambda i: (i, 0)),
                  pl.BlockSpec((Kr, Co), lambda i: (0, 0)),
                  pl.BlockSpec((1, Co), lambda i: (0, 0)),
                  pl.BlockSpec((1, Co), lambda i: (0, 0))],
        out_specs=pl.BlockSpec((tm, Co), lambda i: (i, 0)),
        compiler_params=_mosaic_params(("parallel",)),
        cost_estimate=cost,
    )(x, w, scale, bias, xr, wd, sd, bd)


def conv3x3_bn_relu(x, w3d, scale, bias, *, Ho, Wo, stride, dilation, th):
    N, H, W, C = x.shape
    Co = w3d.shape[2]
    pad = dilation
    cost = pl.CostEstimate(
        flops=2 * N * Ho * Wo * 9 * C * Co, transcendentals=0,
        bytes_accessed=(N * H * W * C + 9 * C * Co + N * Ho * Wo * Co) * 2
                       + 2 * Co * 4)
    return pl.pallas_call(
        functools.partial(_conv3x3_bn_relu_kernel,
                          stride=stride, dilation=dilation),
        out_shape=jax.ShapeDtypeStruct((N, Ho, Wo, Co), jnp.bfloat16),
        grid=(N, Ho // th),
        in_specs=[pl.BlockSpec((1, H, W, C), lambda n, t: (n, 0, 0, 0)),
                  pl.BlockSpec((3, 3 * C, Co), lambda n, t: (0, 0, 0)),
                  pl.BlockSpec((1, Co), lambda n, t: (0, 0)),
                  pl.BlockSpec((1, Co), lambda n, t: (0, 0))],
        out_specs=pl.BlockSpec((1, th, Wo, Co), lambda n, t: (n, t, 0, 0)),
        scratch_shapes=[pltpu.VMEM((1, H + 2 * pad, W + 2 * pad, C),
                                   jnp.bfloat16)],
        compiler_params=_mosaic_params(("parallel", "arbitrary")),
        cost_estimate=cost,
    )(x, w3d, scale, bias)


# ------------------------------ forward pass ------------------------------

def bottleneck_forward(x_nchw, params, *, stride=1, dilation=1):
    # NCHW -> NHWC; bf16 activation storage, f32 accumulation inside kernels.
    x = jnp.transpose(x_nchw, (0, 2, 3, 1)).astype(jnp.bfloat16)
    N, H, W, Cin = x.shape
    width = params['w1'].shape[1]
    cout = params['w3'].shape[1]

    # conv1 (1x1) + bn1 + relu  -- tiled matmul over flattened spatial dim
    out1 = mm_bn(x.reshape(N * H * W, Cin),
                 params['w1'], params['s1'], params['b1'], relu=True)
    out1 = out1.reshape(N, H, W, width)

    # conv2 (3x3, stride, dilation, padding=dilation) + bn2 + relu
    Ho = (H - 1) // stride + 1
    Wo = (W - 1) // stride + 1
    th = _pick_band_rows(Ho, Wo)
    out2 = conv3x3_bn_relu(out1, params['w2'].reshape(3, 3 * width, width),
                           params['s2'], params['b2'],
                           Ho=Ho, Wo=Wo, stride=stride, dilation=dilation, th=th)
    M_out = N * Ho * Wo
    out2f = out2.reshape(M_out, width)

    # conv3 (1x1) + bn3 + residual (+ optional 1x1-downsample conv + bn) + relu,
    # fused in a single tiled pallas_call; bf16 writeback.
    if 'wd' in params:
        if stride > 1:
            # TODO(synk): fold the stride-s residual gather into the kernel
            # (strided pl.ds read) instead of this XLA strided slice.
            xr = x[:, ::stride, ::stride, :]
        else:
            xr = x
        out3 = mm_bn_ds_add_relu(out2f, params['w3'], params['s3'], params['b3'],
                                 xr.reshape(M_out, Cin),
                                 params['wd'], params['sd'], params['bd'])
    else:
        out3 = mm_bn_add_relu(out2f, params['w3'], params['s3'], params['b3'],
                              x.reshape(M_out, cout))
    out3 = out3.reshape(N, Ho, Wo, cout)
    # Transpose in bf16; cast to f32 only at the very end.
    return jnp.transpose(out3, (0, 3, 1, 2)).astype(jnp.float32)


# --------------------------- parameter construction ---------------------------

def init_params(key, inplanes, planes, stride=1, groups=1, base_width=64, dilation=1):
    assert groups == 1  # TODO(synk): grouped conv2 (groups > 1) not implemented
    width = int(planes * (base_width / 64.0)) * groups
    cout = planes * 4
    ks = jax.random.split(key, 8)

    def bn_fold(k, c):
        k1, k2, k3, k4 = jax.random.split(k, 4)
        gamma = 1.0 + 0.1 * jax.random.normal(k1, (c,), jnp.float32)
        beta = 0.1 * jax.random.normal(k2, (c,), jnp.float32)
        mean = 0.1 * jax.random.normal(k3, (c,), jnp.float32)
        var = jax.random.uniform(k4, (c,), jnp.float32, 0.5, 1.5)
        scale = gamma / jnp.sqrt(var + BN_EPS)
        bias = beta - mean * scale
        return scale.reshape(1, c), bias.reshape(1, c)

    def w(k, shape):
        return (0.1 * jax.random.normal(k, shape, jnp.float32)).astype(jnp.bfloat16)

    p = {}
    p['w1'] = w(ks[0], (inplanes, width))
    p['s1'], p['b1'] = bn_fold(ks[1], width)
    p['w2'] = w(ks[2], (3, 3, width, width))     # (KH, KW, Cin, Cout)
    p['s2'], p['b2'] = bn_fold(ks[3], width)
    p['w3'] = w(ks[4], (width, cout))
    p['s3'], p['b3'] = bn_fold(ks[5], cout)
    if stride != 1 or inplanes != cout:
        p['wd'] = w(ks[6], (inplanes, cout))
        p['sd'], p['bd'] = bn_fold(ks[7], cout)
    return p


# ----------------------------- pure-JAX reference -----------------------------

def ref_forward(x_nchw, p, stride, dilation):
    """Reference at matched precision: bf16 weight/activation storage (like the
    kernel pipeline, including the bf16 final writeback), f32 conv math, BN /
    residual / ReLU in f32."""
    dn = ('NHWC', 'HWIO', 'NHWC')
    f32 = jnp.float32
    hp = lax.Precision.HIGHEST

    def bn(y, s, b):
        return y * s.reshape(1, 1, 1, -1) + b.reshape(1, 1, 1, -1)

    def q(y):  # bf16 storage between stages, mirroring the kernel pipeline
        return y.astype(jnp.bfloat16).astype(f32)

    x = q(jnp.transpose(x_nchw, (0, 2, 3, 1)))
    o = lax.conv_general_dilated(x, p['w1'].astype(f32)[None, None], (1, 1), 'VALID',
                                 dimension_numbers=dn, precision=hp)
    o = q(jnp.maximum(bn(o, p['s1'], p['b1']), 0.0))
    o = lax.conv_general_dilated(o, p['w2'].astype(f32), (stride, stride),
                                 ((dilation, dilation), (dilation, dilation)),
                                 rhs_dilation=(dilation, dilation),
                                 dimension_numbers=dn, precision=hp)
    o = q(jnp.maximum(bn(o, p['s2'], p['b2']), 0.0))
    o = lax.conv_general_dilated(o, p['w3'].astype(f32)[None, None], (1, 1), 'VALID',
                                 dimension_numbers=dn, precision=hp)
    o = bn(o, p['s3'], p['b3'])
    if 'wd' in p:
        idn = lax.conv_general_dilated(x, p['wd'].astype(f32)[None, None],
                                       (stride, stride), 'VALID',
                                       dimension_numbers=dn, precision=hp)
        idn = bn(idn, p['sd'], p['bd'])
    else:
        idn = x
    o = q(jnp.maximum(o + idn, 0.0))
    return jnp.transpose(o, (0, 3, 1, 2))


# ----------------------------------- main -----------------------------------

if __name__ == "__main__":
    key = jax.random.PRNGKey(0)
    # (name, N, inplanes, planes, H, W, stride, dilation)
    cases = [
        ("small_downsample",  2,   4,  4, 16, 16, 1, 1),   # width=4, cout=16, downsample
        ("identity_channels", 2, 256, 64,  8,  8, 1, 1),   # width=64, cout=256, identity
        ("dilated",           2,   4,  4, 16, 16, 1, 2),   # dilation=2 halo path
    ]
    for i, (name, N, inplanes, planes, H, W, stride, dilation) in enumerate(cases):
        kx, kp = jax.random.split(jax.random.fold_in(key, i))
        x = jax.random.normal(kx, (N, inplanes, H, W), jnp.float32)   # NCHW, like PyTorch
        params = init_params(kp, inplanes, planes, stride=stride, dilation=dilation)

        fwd = jax.jit(functools.partial(bottleneck_forward,
                                        stride=stride, dilation=dilation))
        out = jax.block_until_ready(fwd(x, params))

        ref = ref_forward(x, params, stride, dilation)
        np.testing.assert_allclose(np.asarray(out), np.asarray(ref),
                                   rtol=1e-2, atol=1e-2, err_msg=name)
        Ho = (H - 1) // stride + 1
        Wo = (W - 1) // stride + 1
        assert out.shape == (N, planes * 4, Ho, Wo), (name, out.shape)
    print("KERNEL_OK")
</pallas_src>

<mosaic_0001>
module attributes {stable_mosaic.version = 11 : i64} {
  func.func @_mm_bn_kernel(%arg0: i32, %arg1: memref<512x4xbf16, #tpu.memory_space<vmem>>, %arg2: memref<4x4xbf16, #tpu.memory_space<vmem>>, %arg3: memref<1x4xf32, #tpu.memory_space<vmem>>, %arg4: memref<1x4xf32, #tpu.memory_space<vmem>>, %arg5: memref<512x4xbf16, #tpu.memory_space<vmem>>) attributes {dimension_semantics = [#tpu.dimension_semantics<parallel>], iteration_bounds = array<i64: 1>, scalar_prefetch = 0 : i64, scratch_operands = 0 : i64, tpu.core_type = #tpu.core_type<tc>, window_params = [{transform_indices = @transform_0, window_bounds = array<i64: 512, 4>}, {pipeline_mode = #tpu.pipeline_mode<synchronous>, transform_indices = @transform_1, window_bounds = array<i64: 4, 4>}, {pipeline_mode = #tpu.pipeline_mode<synchronous>, transform_indices = @transform_2, window_bounds = array<i64: 1, 4>}, {pipeline_mode = #tpu.pipeline_mode<synchronous>, transform_indices = @transform_3, window_bounds = array<i64: 1, 4>}, {transform_indices = @transform_4, window_bounds = array<i64: 512, 4>}]} {
    %c0 = arith.constant 0 : index
    %c0_0 = arith.constant 0 : index
    %0 = vector.load %arg1[%c0, %c0_0] : memref<512x4xbf16, #tpu.memory_space<vmem>>, vector<512x4xbf16>
    %c0_1 = arith.constant 0 : index
    %c0_2 = arith.constant 0 : index
    %1 = vector.load %arg2[%c0_1, %c0_2] : memref<4x4xbf16, #tpu.memory_space<vmem>>, vector<4x4xbf16>
    %cst = arith.constant dense<0.000000e+00> : vector<512x4xf32>
    %2 = tpu.matmul %0, %1, %cst {dimension_numbers = #tpu.dot_dimension_numbers<[1], [0], [0], [1], [0, 0, 1, 1], [], []>} : vector<512x4xbf16>, vector<4x4xbf16>, vector<512x4xf32> -> vector<512x4xf32>
    %c0_3 = arith.constant 0 : index
    %c0_4 = arith.constant 0 : index
    %3 = vector.load %arg3[%c0_3, %c0_4] : memref<1x4xf32, #tpu.memory_space<vmem>>, vector<1x4xf32>
    %4 = vector.broadcast %3 : vector<1x4xf32> to vector<512x4xf32>
    %5 = arith.mulf %2, %4 : vector<512x4xf32>
    %c0_5 = arith.constant 0 : index
    %c0_6 = arith.constant 0 : index
    %6 = vector.load %arg4[%c0_5, %c0_6] : memref<1x4xf32, #tpu.memory_space<vmem>>, vector<1x4xf32>
    %7 = vector.broadcast %6 : vector<1x4xf32> to vector<512x4xf32>
    %8 = arith.addf %5, %7 : vector<512x4xf32>
    %cst_7 = arith.constant 0.000000e+00 : f32
    %9 = vector.broadcast %cst_7 : f32 to vector<512x4xf32>
    %10 = arith.maximumf %8, %9 : vector<512x4xf32>
    %11 = arith.truncf %10 : vector<512x4xf32> to vector<512x4xbf16>
    %c0_8 = arith.constant 0 : index
    %c0_9 = arith.constant 0 : index
    %12 = vector.load %arg5[%c0_8, %c0_9] : memref<512x4xbf16, #tpu.memory_space<vmem>>, vector<512x4xbf16>
    tpu.vector_store %arg5[%c0_8, %c0_9], %11 {strides = array<i32>} : memref<512x4xbf16, #tpu.memory_space<vmem>>, vector<512x4xbf16>,
    return
  }
  func.func @transform_0(%arg0: i32) -> (i32, i32) {
    %c0_i32 = arith.constant 0 : i32
    %c0_i32_0 = arith.constant 0 : i32
    return %arg0, %c0_i32 : i32, i32
  }
  func.func @transform_1(%arg0: i32) -> (i32, i32) {
    %c0_i32 = arith.constant 0 : i32
    %c0_i32_0 = arith.constant 0 : i32
    %c0_i32_1 = arith.constant 0 : i32
    return %c0_i32, %c0_i32_0 : i32, i32
  }
  func.func @transform_2(%arg0: i32) -> (i32, i32) {
    %c0_i32 = arith.constant 0 : i32
    %c0_i32_0 = arith.constant 0 : i32
    %c0_i32_1 = arith.constant 0 : i32
    return %c0_i32, %c0_i32_0 : i32, i32
  }
  func.func @transform_3(%arg0: i32) -> (i32, i32) {
    %c0_i32 = arith.constant 0 : i32
    %c0_i32_0 = arith.constant 0 : i32
    %c0_i32_1 = arith.constant 0 : i32
    return %c0_i32, %c0_i32_0 : i32, i32
  }
  func.func @transform_4(%arg0: i32) -> (i32, i32) {
    %c0_i32 = arith.constant 0 : i32
    %c0_i32_0 = arith.constant 0 : i32
    return %arg0, %c0_i32 : i32, i32
  }
}

module attributes {stable_mosaic.version = 11 : i64} {
  func.func @_mm_bn_ds_add_relu_kernel(%arg0: i32, %arg1: memref<512x4xbf16, #tpu.memory_space<vmem>>, %arg2: memref<4x16xbf16, #tpu.memory_space<vmem>>, %arg3: memref<1x16xf32, #tpu.memory_space<vmem>>, %arg4: memref<1x16xf32, #tpu.memory_space<vmem>>, %arg5: memref<512x4xbf16, #tpu.memory_space<vmem>>, %arg6: memref<4x16xbf16, #tpu.memory_space<vmem>>, %arg7: memref<1x16xf32, #tpu.memory_space<vmem>>, %arg8: memref<1x16xf32, #tpu.memory_space<vmem>>, %arg9: memref<512x16xbf16, #tpu.memory_space<vmem>>) attributes {dimension_semantics = [#tpu.dimension_semantics<parallel>], iteration_bounds = array<i64: 1>, scalar_prefetch = 0 : i64, scratch_operands = 0 : i64, tpu.core_type = #tpu.core_type<tc>, window_params = [{transform_indices = @transform_0, window_bounds = array<i64: 512, 4>}, {pipeline_mode = #tpu.pipeline_mode<synchronous>, transform_indices = @transform_1, window_bounds = array<i64: 4, 16>}, {pipeline_mode = #tpu.pipeline_mode<synchronous>, transform_indices = @transform_2, window_bounds = array<i64: 1, 16>}, {pipeline_mode = #tpu.pipeline_mode<synchronous>, transform_indices = @transform_3, window_bounds = array<i64: 1, 16>}, {transform_indices = @transform_4, window_bounds = array<i64: 512, 4>}, {pipeline_mode = #tpu.pipeline_mode<synchronous>, transform_indices = @transform_5, window_bounds = array<i64: 4, 16>}, {pipeline_mode = #tpu.pipeline_mode<synchronous>, transform_indices = @transform_6, window_bounds = array<i64: 1, 16>}, {pipeline_mode = #tpu.pipeline_mode<synchronous>, transform_indices = @transform_7, window_bounds = array<i64: 1, 16>}, {transform_indices = @transform_8, window_bounds = array<i64: 512, 16>}]} {
    %c0 = arith.constant 0 : index
    %c0_0 = arith.constant 0 : index
    %0 = vector.load %arg1[%c0, %c0_0] : memref<512x4xbf16, #tpu.memory_space<vmem>>, vector<512x4xbf16>
    %c0_1 = arith.constant 0 : index
    %c0_2 = arith.constant 0 : index
    %1 = vector.load %arg2[%c0_1, %c0_2] : memref<4x16xbf16, #tpu.memory_space<vmem>>, vector<4x16xbf16>
    %cst = arith.constant dense<0.000000e+00> : vector<512x16xf32>
    %2 = tpu.matmul %0, %1, %cst {dimension_numbers = #tpu.dot_dimension_numbers<[1], [0], [0], [1], [0, 0, 1, 1], [], []>} : vector<512x4xbf16>, vector<4x16xbf16>, vector<512x16xf32> -> vector<512x16xf32>
    %c0_3 = arith.constant 0 : index
    %c0_4 = arith.constant 0 : index
    %3 = vector.load %arg3[%c0_3, %c0_4] : memref<1x16xf32, #tpu.memory_space<vmem>>, vector<1x16xf32>
    %4 = vector.broadcast %3 : vector<1x16xf32> to vector<512x16xf32>
    %5 = arith.mulf %2, %4 : vector<512x16xf32>
    %c0_5 = arith.constant 0 : index
    %c0_6 = arith.constant 0 : index
    %6 = vector.load %arg4[%c0_5, %c0_6] : memref<1x16xf32, #tpu.memory_space<vmem>>, vector<1x16xf32>
    %7 = vector.broadcast %6 : vector<1x16xf32> to vector<512x16xf32>
    %8 = arith.addf %5, %7 : vector<512x16xf32>
    %c0_7 = arith.constant 0 : index
    %c0_8 = arith.constant 0 : index
    %9 = vector.load %arg5[%c0_7, %c0_8] : memref<512x4xbf16, #tpu.memory_space<vmem>>, vector<512x4xbf16>
    %c0_9 = arith.constant 0 : index
    %c0_10 = arith.constant 0 : index
    %10 = vector.load %arg6[%c0_9, %c0_10] : memref<4x16xbf16, #tpu.memory_space<vmem>>, vector<4x16xbf16>
    %cst_11 = arith.constant dense<0.000000e+00> : vector<512x16xf32>
    %11 = tpu.matmul %9, %10, %cst_11 {dimension_numbers = #tpu.dot_dimension_numbers<[1], [0], [0], [1], [0, 0, 1, 1], [], []>} : vector<512x4xbf16>, vector<4x16xbf16>, vector<512x16xf32> -> vector<512x16xf32>
    %c0_12 = arith.constant 0 : index
    %c0_13 = arith.constant 0 : index
    %12 = vector.load %arg7[%c0_12, %c0_13] : memref<1x16xf32, #tpu.memory_space<vmem>>, vector<1x16xf32>
    %13 = vector.broadcast %12 : vector<1x16xf32> to vector<512x16xf32>
    %14 = arith.mulf %11, %13 : vector<512x16xf32>
    %c0_14 = arith.constant 0 : index
    %c0_15 = arith.constant 0 : index
    %15 = vector.load %arg8[%c0_14, %c0_15] : memref<1x16xf32, #tpu.memory_space<vmem>>, vector<1x16xf32>
    %16 = vector.broadcast %15 : vector<1x16xf32> to vector<512x16xf32>
    %17 = arith.addf %14, %16 : vector<512x16xf32>
    %18 = arith.addf %8, %17 : vector<512x16xf32>
    %cst_16 = arith.constant 0.000000e+00 : f32
    %19 = vector.broadcast %cst_16 : f32 to vector<512x16xf32>
    %20 = arith.maximumf %18, %19 : vector<512x16xf32>
    %21 = arith.truncf %20 : vector<512x16xf32> to vector<512x16xbf16>
    %c0_17 = arith.constant 0 : index
    %c0_18 = arith.constant 0 : index
    %22 = vector.load %arg9[%c0_17, %c0_18] : memref<512x16xbf16, #tpu.memory_space<vmem>>, vector<512x16xbf16>
    tpu.vector_store %arg9[%c0_17, %c0_18], %21 {strides = array<i32>} : memref<512x16xbf16, #tpu.memory_space<vmem>>, vector<512x16xbf16>,
    return
  }
  func.func @transform_0(%arg0: i32) -> (i32, i32) {
    %c0_i32 = arith.constant 0 : i32
    %c0_i32_0 = arith.constant 0 : i32
    return %arg0, %c0_i32 : i32, i32
  }
  func.func @transform_1(%arg0: i32) -> (i32, i32) {
    %c0_i32 = arith.constant 0 : i32
    %c0_i32_0 = arith.constant 0 : i32
    %c0_i32_1 = arith.constant 0 : i32
    return %c0_i32, %c0_i32_0 : i32, i32
  }
  func.func @transform_2(%arg0: i32) -> (i32, i32) {
    %c0_i32 = arith.constant 0 : i32
    %c0_i32_0 = arith.constant 0 : i32
    %c0_i32_1 = arith.constant 0 : i32
    return %c0_i32, %c0_i32_0 : i32, i32
  }
  func.func @transform_3(%arg0: i32) -> (i32, i32) {
    %c0_i32 = arith.constant 0 : i32
    %c0_i32_0 = arith.constant 0 : i32
    %c0_i32_1 = arith.constant 0 : i32
    return %c0_i32, %c0_i32_0 : i32, i32
  }
  func.func @transform_4(%arg0: i32) -> (i32, i32) {
    %c0_i32 = arith.constant 0 : i32
    %c0_i32_0 = arith.constant 0 : i32
    return %arg0, %c0_i32 : i32, i32
  }
  func.func @transform_5(%arg0: i32) -> (i32, i32) {
    %c0_i32 = arith.constant 0 : i32
    %c0_i32_0 = arith.constant 0 : i32
    %c0_i32_1 = arith.constant 0 : i32
    return %c0_i32, %c0_i32_0 : i32, i32
  }
  func.func @transform_6(%arg0: i32) -> (i32, i32) {
    %c0_i32 = arith.constant 0 : i32
    %c0_i32_0 = arith.constant 0 : i32
    %c0_i32_1 = arith.constant 0 : i32
    return %c0_i32, %c0_i32_0 : i32, i32
  }
  func.func @transform_7(%arg0: i32) -> (i32, i32) {
    %c0_i32 = arith.constant 0 : i32
    %c0_i32_0 = arith.constant 0 : i32
    %c0_i32_1 = arith.constant 0 : i32
    return %c0_i32, %c0_i32_0 : i32, i32
  }
  func.func @transform_8(%arg0: i32) -> (i32, i32) {
    %c0_i32 = arith.constant 0 : i32
    %c0_i32_0 = arith.constant 0 : i32
    return %arg0, %c0_i32 : i32, i32
  }
}

module attributes {stable_mosaic.version = 11 : i64} {
  func.func @_conv3x3_bn_relu_kernel(%arg0: i32, %arg1: i32, %arg2: memref<1x16x16x4xbf16, #tpu.memory_space<vmem>>, %arg3: memref<3x12x4xbf16, #tpu.memory_space<vmem>>, %arg4: memref<1x4xf32, #tpu.memory_space<vmem>>, %arg5: memref<1x4xf32, #tpu.memory_space<vmem>>, %arg6: memref<1x8x16x4xbf16, #tpu.memory_space<vmem>>, %arg7: memref<1x18x18x4xbf16, #tpu.memory_space<vmem>>) attributes {dimension_semantics = [#tpu.dimension_semantics<parallel>, #tpu.dimension_semantics<arbitrary>], iteration_bounds = array<i64: 2, 2>, scalar_prefetch = 0 : i64, scratch_operands = 1 : i64, tpu.core_type = #tpu.core_type<tc>, window_params = [{transform_indices = @transform_0, window_bounds = array<i64: 1, 16, 16, 4>}, {pipeline_mode = #tpu.pipeline_mode<synchronous>, transform_indices = @transform_1, window_bounds = array<i64: 3, 12, 4>}, {pipeline_mode = #tpu.pipeline_mode<synchronous>, transform_indices = @transform_2, window_bounds = array<i64: 1, 4>}, {pipeline_mode = #tpu.pipeline_mode<synchronous>, transform_indices = @transform_3, window_bounds = array<i64: 1, 4>}, {transform_indices = @transform_4, window_bounds = array<i64: 1, 8, 16, 4>}]} {
    %c0_i32 = arith.constant 0 : i32
    %0 = arith.cmpi eq, %arg1, %c0_i32 : i32
    %1 = arith.extui %0 : i1 to i32
    %c0_i32_0 = arith.constant 0 : i32
    %2 = arith.cmpi ne, %1, %c0_i32_0 : i32
    scf.if %2 {
      %cst_47 = arith.constant 0.000000e+00 : bf16
      %56 = vector.broadcast %cst_47 : bf16 to vector<1x1x18x4xbf16>
      %cst_48 = arith.constant 0.000000e+00 : bf16
      %57 = vector.broadcast %cst_48 : bf16 to vector<1x16x1x4xbf16>
      %c0_49 = arith.constant 0 : index
      %c0_50 = arith.constant 0 : index
      %c0_51 = arith.constant 0 : index
      %c0_52 = arith.constant 0 : index
      %58 = vector.load %arg7[%c0_49, %c0_50, %c0_51, %c0_52] : memref<1x18x18x4xbf16, #tpu.memory_space<vmem>>, vector<1x1x18x4xbf16>
      tpu.vector_store %arg7[%c0_49, %c0_50, %c0_51, %c0_52], %56 {strides = array<i32>} : memref<1x18x18x4xbf16, #tpu.memory_space<vmem>>, vector<1x1x18x4xbf16>,
      %c0_53 = arith.constant 0 : index
      %c17 = arith.constant 17 : index
      %c0_54 = arith.constant 0 : index
      %c0_55 = arith.constant 0 : index
      %59 = vector.load %arg7[%c0_53, %c17, %c0_54, %c0_55] : memref<1x18x18x4xbf16, #tpu.memory_space<vmem>>, vector<1x1x18x4xbf16>
      tpu.vector_store %arg7[%c0_53, %c17, %c0_54, %c0_55], %56 {strides = array<i32>} : memref<1x18x18x4xbf16, #tpu.memory_space<vmem>>, vector<1x1x18x4xbf16>,
      %c0_56 = arith.constant 0 : index
      %c1_57 = arith.constant 1 : index
      %c0_58 = arith.constant 0 : index
      %c0_59 = arith.constant 0 : index
      %60 = vector.load %arg7[%c0_56, %c1_57, %c0_58, %c0_59] : memref<1x18x18x4xbf16, #tpu.memory_space<vmem>>, vector<1x16x1x4xbf16>
      tpu.vector_store %arg7[%c0_56, %c1_57, %c0_58, %c0_59], %57 {strides = array<i32>} : memref<1x18x18x4xbf16, #tpu.memory_space<vmem>>, vector<1x16x1x4xbf16>,
      %c0_60 = arith.constant 0 : index
      %c1_61 = arith.constant 1 : index
      %c17_62 = arith.constant 17 : index
      %c0_63 = arith.constant 0 : index
      %61 = vector.load %arg7[%c0_60, %c1_61, %c17_62, %c0_63] : memref<1x18x18x4xbf16, #tpu.memory_space<vmem>>, vector<1x16x1x4xbf16>
      tpu.vector_store %arg7[%c0_60, %c1_61, %c17_62, %c0_63], %57 {strides = array<i32>} : memref<1x18x18x4xbf16, #tpu.memory_space<vmem>>, vector<1x16x1x4xbf16>,
      %c0_64 = arith.constant 0 : index
      %c0_65 = arith.constant 0 : index
      %c0_66 = arith.constant 0 : index
      %c0_67 = arith.constant 0 : index
      %62 = vector.load %arg2[%c0_64, %c0_65, %c0_66, %c0_67] : memref<1x16x16x4xbf16, #tpu.memory_space<vmem>>, vector<1x16x16x4xbf16>
      %c0_68 = arith.constant 0 : index
      %c1_69 = arith.constant 1 : index
      %c1_70 = arith.constant 1 : index
      %c0_71 = arith.constant 0 : index
      %63 = vector.load %arg7[%c0_68, %c1_69, %c1_70, %c0_71] : memref<1x18x18x4xbf16, #tpu.memory_space<vmem>>, vector<1x16x16x4xbf16>
      tpu.vector_store %arg7[%c0_68, %c1_69, %c1_70, %c0_71], %62 {strides = array<i32>} : memref<1x18x18x4xbf16, #tpu.memory_space<vmem>>, vector<1x16x16x4xbf16>,
    } else {
    }
    %c8_i32 = arith.constant 8 : i32
    %3 = arith.muli %arg1, %c8_i32 : i32
    %4 = tpu.assume_multiple %3, 8 : i32
    %cst = arith.constant 0.000000e+00 : f32
    %5 = vector.broadcast %cst : f32 to vector<128x4xf32>
    %c0_i32_1 = arith.constant 0 : i32
    %6 = arith.addi %4, %c0_i32_1 : i32
    %c0 = arith.constant 0 : index
    %7 = arith.index_cast %6 : i32 to index
    %c0_2 = arith.constant 0 : index
    %c0_3 = arith.constant 0 : index
    %8 = vector.load %arg7[%c0, %7, %c0_2, %c0_3] : memref<1x18x18x4xbf16, #tpu.memory_space<vmem>>, vector<1x8x16x4xbf16>
    %c0_4 = arith.constant 0 : index
    %9 = arith.index_cast %6 : i32 to index
    %c1 = arith.constant 1 : index
    %c0_5 = arith.constant 0 : index
    %10 = vector.load %arg7[%c0_4, %9, %c1, %c0_5] : memref<1x18x18x4xbf16, #tpu.memory_space<vmem>>, vector<1x8x16x4xbf16>
    %c0_6 = arith.constant 0 : index
    %11 = arith.index_cast %6 : i32 to index
    %c2 = arith.constant 2 : index
    %c0_7 = arith.constant 0 : index
    %12 = vector.load %arg7[%c0_6, %11, %c2, %c0_7] : memref<1x18x18x4xbf16, #tpu.memory_space<vmem>>, vector<1x8x16x4xbf16>
    %13 = tpu.concatenate %8, %10, %12 in 3 : vector<1x8x16x4xbf16>, vector<1x8x16x4xbf16>, vector<1x8x16x4xbf16> -> vector<1x8x16x12xbf16>
    %14 = vector.shape_cast %13 : vector<1x8x16x12xbf16> to vector<128x12xbf16>
    %c0_8 = arith.constant 0 : index
    %c0_9 = arith.constant 0 : index
    %c0_10 = arith.constant 0 : index
    %15 = vector.load %arg3[%c0_8, %c0_9, %c0_10] : memref<3x12x4xbf16, #tpu.memory_space<vmem>>, vector<1x12x4xbf16>
    %16 = vector.shape_cast %15 : vector<1x12x4xbf16> to vector<12x4xbf16>
    %cst_11 = arith.constant dense<0.000000e+00> : vector<128x4xf32>
    %17 = tpu.matmul %14, %16, %cst_11 {dimension_numbers = #tpu.dot_dimension_numbers<[1], [0], [0], [1], [0, 0, 1, 1], [], []>} : vector<128x12xbf16>, vector<12x4xbf16>, vector<128x4xf32> -> vector<128x4xf32>
    %18 = arith.addf %5, %17 : vector<128x4xf32>
    %c1_i32 = arith.constant 1 : i32
    %19 = arith.addi %4, %c1_i32 : i32
    %c0_12 = arith.constant 0 : index
    %20 = arith.index_cast %19 : i32 to index
    %c0_13 = arith.constant 0 : index
    %c0_14 = arith.constant 0 : index
    %21 = vector.load %arg7[%c0_12, %20, %c0_13, %c0_14] : memref<1x18x18x4xbf16, #tpu.memory_space<vmem>>, vector<1x8x16x4xbf16>
    %c0_15 = arith.constant 0 : index
    %22 = arith.index_cast %19 : i32 to index
    %c1_16 = arith.constant 1 : index
    %c0_17 = arith.constant 0 : index
    %23 = vector.load %arg7[%c0_15, %22, %c1_16, %c0_17] : memref<1x18x18x4xbf16, #tpu.memory_space<vmem>>, vector<1x8x16x4xbf16>
    %c0_18 = arith.constant 0 : index
    %24 = arith.index_cast %19 : i32 to index
    %c2_19 = arith.constant 2 : index
    %c0_20 = arith.constant 0 : index
    %25 = vector.load %arg7[%c0_18, %24, %c2_19, %c0_20] : memref<1x18x18x4xbf16, #tpu.memory_space<vmem>>, vector<1x8x16x4xbf16>
    %26 = tpu.concatenate %21, %23, %25 in 3 : vector<1x8x16x4xbf16>, vector<1x8x16x4xbf16>, vector<1x8x16x4xbf16> -> vector<1x8x16x12xbf16>
    %27 = vector.shape_cast %26 : vector<1x8x16x12xbf16> to vector<128x12xbf16>
    %c1_21 = arith.constant 1 : index
    %c0_22 = arith.constant 0 : index
    %c0_23 = arith.constant 0 : index
    %28 = vector.load %arg3[%c1_21, %c0_22, %c0_23] : memref<3x12x4xbf16, #tpu.memory_space<vmem>>, vector<1x12x4xbf16>
    %29 = vector.shape_cast %28 : vector<1x12x4xbf16> to vector<12x4xbf16>
    %cst_24 = arith.constant dense<0.000000e+00> : vector<128x4xf32>
    %30 = tpu.matmul %27, %29, %cst_24 {dimension_numbers = #tpu.dot_dimension_numbers<[1], [0], [0], [1], [0, 0, 1, 1], [], []>} : vector<128x12xbf16>, vector<12x4xbf16>, vector<128x4xf32> -> vector<128x4xf32>
    %31 = arith.addf %18, %30 : vector<128x4xf32>
    %c2_i32 = arith.constant 2 : i32
    %32 = arith.addi %4, %c2_i32 : i32
    %c0_25 = arith.constant 0 : index
    %33 = arith.index_cast %32 : i32 to index
    %c0_26 = arith.constant 0 : index
    %c0_27 = arith.constant 0 : index
    %34 = vector.load %arg7[%c0_25, %33, %c0_26, %c0_27] : memref<1x18x18x4xbf16, #tpu.memory_space<vmem>>, vector<1x8x16x4xbf16>
    %c0_28 = arith.constant 0 : index
    %35 = arith.index_cast %32 : i32 to index
    %c1_29 = arith.constant 1 : index
    %c0_30 = arith.constant 0 : index
    %36 = vector.load %arg7[%c0_28, %35, %c1_29, %c0_30] : memref<1x18x18x4xbf16, #tpu.memory_space<vmem>>, vector<1x8x16x4xbf16>
    %c0_31 = arith.constant 0 : index
    %37 = arith.index_cast %32 : i32 to index
    %c2_32 = arith.constant 2 : index
    %c0_33 = arith.constant 0 : index
    %38 = vector.load %arg7[%c0_31, %37, %c2_32, %c0_33] : memref<1x18x18x4xbf16, #tpu.memory_space<vmem>>, vector<1x8x16x4xbf16>
    %39 = tpu.concatenate %34, %36, %38 in 3 : vector<1x8x16x4xbf16>, vector<1x8x16x4xbf16>, vector<1x8x16x4xbf16> -> vector<1x8x16x12xbf16>
    %40 = vector.shape_cast %39 : vector<1x8x16x12xbf16> to vector<128x12xbf16>
    %c2_34 = arith.constant 2 : index
    %c0_35 = arith.constant 0 : index
    %c0_36 = arith.constant 0 : index
    %41 = vector.load %arg3[%c2_34, %c0_35, %c0_36] : memref<3x12x4xbf16, #tpu.memory_space<vmem>>, vector<1x12x4xbf16>
    %42 = vector.shape_cast %41 : vector<1x12x4xbf16> to vector<12x4xbf16>
    %cst_37 = arith.constant dense<0.000000e+00> : vector<128x4xf32>
    %43 = tpu.matmul %40, %42, %cst_37 {dimension_numbers = #tpu.dot_dimension_numbers<[1], [0], [0], [1], [0, 0, 1, 1], [], []>} : vector<128x12xbf16>, vector<12x4xbf16>, vector<128x4xf32> -> vector<128x4xf32>
    %44 = arith.addf %31, %43 : vector<128x4xf32>
    %c0_38 = arith.constant 0 : index
    %c0_39 = arith.constant 0 : index
    %45 = vector.load %arg4[%c0_38, %c0_39] : memref<1x4xf32, #tpu.memory_space<vmem>>, vector<1x4xf32>
    %46 = vector.broadcast %45 : vector<1x4xf32> to vector<128x4xf32>
    %47 = arith.mulf %44, %46 : vector<128x4xf32>
    %c0_40 = arith.constant 0 : index
    %c0_41 = arith.constant 0 : index
    %48 = vector.load %arg5[%c0_40, %c0_41] : memref<1x4xf32, #tpu.memory_space<vmem>>, vector<1x4xf32>
    %49 = vector.broadcast %48 : vector<1x4xf32> to vector<128x4xf32>
    %50 = arith.addf %47, %49 : vector<128x4xf32>
    %cst_42 = arith.constant 0.000000e+00 : f32
    %51 = vector.broadcast %cst_42 : f32 to vector<128x4xf32>
    %52 = arith.maximumf %50, %51 : vector<128x4xf32>
    %53 = vector.shape_cast %52 : vector<128x4xf32> to vector<1x8x16x4xf32>
    %54 = arith.truncf %53 : vector<1x8x16x4xf32> to vector<1x8x16x4xbf16>
    %c0_43 = arith.constant 0 : index
    %c0_44 = arith.constant 0 : index
    %c0_45 = arith.constant 0 : index
    %c0_46 = arith.constant 0 : index
    %55 = vector.load %arg6[%c0_43, %c0_44, %c0_45, %c0_46] : memref<1x8x16x4xbf16, #tpu.memory_space<vmem>>, vector<1x8x16x4xbf16>
    tpu.vector_store %arg6[%c0_43, %c0_44, %c0_45, %c0_46], %54 {strides = array<i32>} : memref<1x8x16x4xbf16, #tpu.memory_space<vmem>>, vector<1x8x16x4xbf16>,
    return
  }
  func.func @transform_0(%arg0: i32, %arg1: i32) -> (i32, i32, i32, i32) {
    %c0_i32 = arith.constant 0 : i32
    %c0_i32_0 = arith.constant 0 : i32
    %c0_i32_1 = arith.constant 0 : i32
    %c0_i32_2 = arith.constant 0 : i32
    return %arg0, %c0_i32, %c0_i32_0, %c0_i32_1 : i32, i32, i32, i32
  }
  func.func @transform_1(%arg0: i32, %arg1: i32) -> (i32, i32, i32) {
    %c0_i32 = arith.constant 0 : i32
    %c0_i32_0 = arith.constant 0 : i32
    %c0_i32_1 = arith.constant 0 : i32
    %c0_i32_2 = arith.constant 0 : i32
    return %c0_i32, %c0_i32_0, %c0_i32_1 : i32, i32, i32
  }
  func.func @transform_2(%arg0: i32, %arg1: i32) -> (i32, i32) {
    %c0_i32 = arith.constant 0 : i32
    %c0_i32_0 = arith.constant 0 : i32
    %c0_i32_1 = arith.constant 0 : i32
    return %c0_i32, %c0_i32_0 : i32, i32
  }
  func.func @transform_3(%arg0: i32, %arg1: i32) -> (i32, i32) {
    %c0_i32 = arith.constant 0 : i32
    %c0_i32_0 = arith.constant 0 : i32
    %c0_i32_1 = arith.constant 0 : i32
    return %c0_i32, %c0_i32_0 : i32, i32
  }
  func.func @transform_4(%arg0: i32, %arg1: i32) -> (i32, i32, i32, i32) {
    %c0_i32 = arith.constant 0 : i32
    %c0_i32_0 = arith.constant 0 : i32
    %c0_i32_1 = arith.constant 0 : i32
    return %arg0, %arg1, %c0_i32, %c0_i32_0 : i32, i32, i32, i32
  }
}

</mosaic_0001>

<llo_original>
// kernel: bottleneck_forward.3
$region0: #{bottleneck_forward.3}
  #allocation0 [shape = 'u32[]', space=smem, size = 0x4, offset = 0x4, fixed_abs, tag = 'smem constant byte address 0x4 - core index']
  #allocation1 [shape = 'u32[144,128]{1,0:T(1,128)}', space=vmem, size = 0x12000, scoped, tag = 'internal scratch']
  %s0 = inlined_call_operand.vmem [shape: bf16[512,4], index: 0, kind: input, shape index: {}]
  %s1 = inlined_call_operand.vmem [shape: bf16[4,4], index: 1, kind: input, shape index: {}]
  %s2 = inlined_call_operand.vmem [shape: f32[1,4], index: 2, kind: input, shape index: {}]
  %s3 = inlined_call_operand.vmem [shape: f32[1,4], index: 3, kind: input, shape index: {}]
  %s4 = inlined_call_operand.vmem [shape: bf16[512,4], index: 4, kind: output, shape index: {}]
  %s5 = sld [smem:[#allocation0]]
  $region26: #{bottleneck_forward.3} parent=0
    _
  %s7 = ssub.s32 1, %s5
  %s8 = scalar_select 0, %s7, %s5
  // Predicated region
  $region2: #{bottleneck_forward.3} parent=0 // pred_check
    _
  $region3: #{bottleneck_forward.3} parent=0 // pred_check_branch
    %10 = sbr.rel (0) target = $region5
  $region4: #{bottleneck_forward.3} parent=0 // pred_region
    _
  $region5: #{bottleneck_forward.3} parent=0 // pred_fallthru
    _
  // Predicated region
  $region6: #{bottleneck_forward.3} parent=0 // pred_check
    _
  $region7: #{bottleneck_forward.3} parent=0 // pred_check_branch
    %12 = sbr.rel (0) target = $region9
  $region8: #{bottleneck_forward.3} parent=0 // pred_region
    _
  $region9: #{bottleneck_forward.3} parent=0 // pred_fallthru
    _
  // Predicated region
  $region10: #{bottleneck_forward.3} parent=0 // pred_check
    _
  $region11: #{bottleneck_forward.3} parent=0 // pred_check_branch
    %14 = sbr.rel (0) target = $region13
  $region12: #{bottleneck_forward.3} parent=0 // pred_region
    _
  $region13: #{bottleneck_forward.3} parent=0 // pred_fallthru
    _
  // Predicated region
  $region14: #{bottleneck_forward.3} parent=0 // pred_check
    _
  $region15: #{bottleneck_forward.3} parent=0 // pred_check_branch
    %16 = sbr.rel (0) target = $region17
  $region16: #{bottleneck_forward.3} parent=0 // pred_region
    _
  $region17: #{bottleneck_forward.3} parent=0 // pred_fallthru
    _
  %v18 = vld [vmem:[%s0] sm:$0xf]
  %v19 = vld [vmem:[%s0 + $0x4] sm:$0xf]
  %v20 = vld [vmem:[%s0 + $0x8] sm:$0xf]
  %v21 = vld [vmem:[%s0 + $0xc] sm:$0xf]
  %v22 = vld [vmem:[%s0 + $0x10] sm:$0xf]
  %v23 = vld [vmem:[%s0 + $0x14] sm:$0xf]
  %v24 = vld [vmem:[%s0 + $0x18] sm:$0xf]
  %v25 = vld [vmem:[%s0 + $0x1c] sm:$0xf]
  %v26 = vld [vmem:[%s0 + $0x20] sm:$0xf]
  %v27 = vld [vmem:[%s0 + $0x24] sm:$0xf]
  %v28 = vld [vmem:[%s0 + $0x28] sm:$0xf]
  %v29 = vld [vmem:[%s0 + $0x2c] sm:$0xf]
  %v30 = vld [vmem:[%s0 + $0x30] sm:$0xf]
  %v31 = vld [vmem:[%s0 + $0x34] sm:$0xf]
  %v32 = vld [vmem:[%s0 + $0x38] sm:$0xf]
  %v33 = vld [vmem:[%s0 + $0x3c] sm:$0xf]
  %v34 = vld [vmem:[%s0 + $0x40] sm:$0xf]
  %v35 = vld [vmem:[%s0 + $0x44] sm:$0xf]
  %v36 = vld [vmem:[%s0 + $0x48] sm:$0xf]
  %v37 = vld [vmem:[%s0 + $0x4c] sm:$0xf]
  %v38 = vld [vmem:[%s0 + $0x50] sm:$0xf]
  %v39 = vld [vmem:[%s0 + $0x54] sm:$0xf]
  %v40 = vld [vmem:[%s0 + $0x58] sm:$0xf]
  %v41 = vld [vmem:[%s0 + $0x5c] sm:$0xf]
  %v42 = vld [vmem:[%s0 + $0x60] sm:$0xf]
  %v43 = vld [vmem:[%s0 + $0x64] sm:$0xf]
  %v44 = vld [vmem:[%s0 + $0x68] sm:$0xf]
  %v45 = vld [vmem:[%s0 + $0x6c] sm:$0xf]
  %v46 = vld [vmem:[%s0 + $0x70] sm:$0xf]
  %v47 = vld [vmem:[%s0 + $0x74] sm:$0xf]
  %v48 = vld [vmem:[%s0 + $0x78] sm:$0xf]
  %v49 = vld [vmem:[%s0 + $0x7c] sm:$0xf]
  %v50 = vld [vmem:[%s0 + $0x80] sm:$0xf]
  %v51 = vld [vmem:[%s0 + $0x84] sm:$0xf]
  %v52 = vld [vmem:[%s0 + $0x88] sm:$0xf]
  %v53 = vld [vmem:[%s0 + $0x8c] sm:$0xf]
  %v54 = vld [vmem:[%s0 + $0x90] sm:$0xf]
  %v55 = vld [vmem:[%s0 + $0x94] sm:$0xf]
  %v56 = vld [vmem:[%s0 + $0x98] sm:$0xf]
  %v57 = vld [vmem:[%s0 + $0x9c] sm:$0xf]
  %v58 = vld [vmem:[%s0 + $0xa0] sm:$0xf]
  %v59 = vld [vmem:[%s0 + $0xa4] sm:$0xf]
  %v60 = vld [vmem:[%s0 + $0xa8] sm:$0xf]
  %v61 = vld [vmem:[%s0 + $0xac] sm:$0xf]
  %v62 = vld [vmem:[%s0 + $0xb0] sm:$0xf]
  %v63 = vld [vmem:[%s0 + $0xb4] sm:$0xf]
  %v64 = vld [vmem:[%s0 + $0xb8] sm:$0xf]
  %v65 = vld [vmem:[%s0 + $0xbc] sm:$0xf]
  %v66 = vld [vmem:[%s0 + $0xc0] sm:$0xf]
  %v67 = vld [vmem:[%s0 + $0xc4] sm:$0xf]
  %v68 = vld [vmem:[%s0 + $0xc8] sm:$0xf]
  %v69 = vld [vmem:[%s0 + $0xcc] sm:$0xf]
  %v70 = vld [vmem:[%s0 + $0xd0] sm:$0xf]
  %v71 = vld [vmem:[%s0 + $0xd4] sm:$0xf]
  %v72 = vld [vmem:[%s0 + $0xd8] sm:$0xf]
  %v73 = vld [vmem:[%s0 + $0xdc] sm:$0xf]
  %v74 = vld [vmem:[%s0 + $0xe0] sm:$0xf]
  %v75 = vld [vmem:[%s0 + $0xe4] sm:$0xf]
  %v76 = vld [vmem:[%s0 + $0xe8] sm:$0xf]
  %v77 = vld [vmem:[%s0 + $0xec] sm:$0xf]
  %v78 = vld [vmem:[%s0 + $0xf0] sm:$0xf]
  %v79 = vld [vmem:[%s0 + $0xf4] sm:$0xf]
  %v80 = vld [vmem:[%s0 + $0xf8] sm:$0xf]
  %v81 = vld [vmem:[%s0 + $0xfc] sm:$0xf]
  %v82 = vld [vmem:[%s1] sm:$0x3]
  %v147 = vunpack.c.l.b16 %v18
  %v148 = vunpack.c.l.b16 %v19
  %v149 = vunpack.c.l.b16 %v20
  %v150 = vunpack.c.l.b16 %v21
  %v151 = vunpack.c.l.b16 %v22
  %v152 = vunpack.c.l.b16 %v23
  %v153 = vunpack.c.l.b16 %v24
  %v154 = vunpack.c.l.b16 %v25
  %v155 = vunpack.c.l.b16 %v26
  %v156 = vunpack.c.l.b16 %v27
  %v157 = vunpack.c.l.b16 %v28
  %v158 = vunpack.c.l.b16 %v29
  %v159 = vunpack.c.l.b16 %v30
  %v160 = vunpack.c.l.b16 %v31
  %v161 = vunpack.c.l.b16 %v32
  %v162 = vunpack.c.l.b16 %v33
  %v163 = vunpack.c.l.b16 %v34
  %v164 = vunpack.c.l.b16 %v35
  %v165 = vunpack.c.l.b16 %v36
  %v166 = vunpack.c.l.b16 %v37
  %v167 = vunpack.c.l.b16 %v38
  %v168 = vunpack.c.l.b16 %v39
  %v169 = vunpack.c.l.b16 %v40
  %v170 = vunpack.c.l.b16 %v41
  %v171 = vunpack.c.l.b16 %v42
  %v172 = vunpack.c.l.b16 %v43
  %v173 = vunpack.c.l.b16 %v44
  %v174 = vunpack.c.l.b16 %v45
  %v175 = vunpack.c.l.b16 %v46
  %v176 = vunpack.c.l.b16 %v47
  %v177 = vunpack.c.l.b16 %v48
  %v178 = vunpack.c.l.b16 %v49
  %v179 = vunpack.c.l.b16 %v50
  %v180 = vunpack.c.l.b16 %v51
  %v181 = vunpack.c.l.b16 %v52
  %v182 = vunpack.c.l.b16 %v53
  %v183 = vunpack.c.l.b16 %v54
  %v184 = vunpack.c.l.b16 %v55
  %v185 = vunpack.c.l.b16 %v56
  %v186 = vunpack.c.l.b16 %v57
  %v187 = vunpack.c.l.b16 %v58
  %v188 = vunpack.c.l.b16 %v59
  %v189 = vunpack.c.l.b16 %v60
  %v190 = vunpack.c.l.b16 %v61
  %v191 = vunpack.c.l.b16 %v62
  %v192 = vunpack.c.l.b16 %v63
  %v193 = vunpack.c.l.b16 %v64
  %v194 = vunpack.c.l.b16 %v65
  %v195 = vunpack.c.l.b16 %v66
  %v196 = vunpack.c.l.b16 %v67
  %v197 = vunpack.c.l.b16 %v68
  %v198 = vunpack.c.l.b16 %v69
  %v199 = vunpack.c.l.b16 %v70
  %v200 = vunpack.c.l.b16 %v71
  %v201 = vunpack.c.l.b16 %v72
  %v202 = vunpack.c.l.b16 %v73
  %v203 = vunpack.c.l.b16 %v74
  %v204 = vunpack.c.l.b16 %v75
  %v205 = vunpack.c.l.b16 %v76
  %v206 = vunpack.c.l.b16 %v77
  %v207 = vunpack.c.l.b16 %v78
  %v208 = vunpack.c.l.b16 %v79
  %v209 = vunpack.c.l.b16 %v80
  %v210 = vunpack.c.l.b16 %v81
  %v211 = vpack.c.b16 %v148, %v147
  %v212 = vpack.c.b16 %v150, %v149
  %v213 = vpack.c.b16 %v152, %v151
  %v214 = vpack.c.b16 %v154, %v153
  %v215 = vpack.c.b16 %v156, %v155
  %v216 = vpack.c.b16 %v158, %v157
  %v217 = vpack.c.b16 %v160, %v159
  %v218 = vpack.c.b16 %v162, %v161
  %v219 = vpack.c.b16 %v164, %v163
  %v220 = vpack.c.b16 %v166, %v165
  %v221 = vpack.c.b16 %v168, %v167
  %v222 = vpack.c.b16 %v170, %v169
  %v223 = vpack.c.b16 %v172, %v171
  %v224 = vpack.c.b16 %v174, %v173
  %v225 = vpack.c.b16 %v176, %v175
  %v226 = vpack.c.b16 %v178, %v177
  %v227 = vpack.c.b16 %v180, %v179
  %v228 = vpack.c.b16 %v182, %v181
  %v229 = vpack.c.b16 %v184, %v183
  %v230 = vpack.c.b16 %v186, %v185
  %v231 = vpack.c.b16 %v188, %v187
  %v232 = vpack.c.b16 %v190, %v189
  %v233 = vpack.c.b16 %v192, %v191
  %v234 = vpack.c.b16 %v194, %v193
  %v235 = vpack.c.b16 %v196, %v195
  %v236 = vpack.c.b16 %v198, %v197
  %v237 = vpack.c.b16 %v200, %v199
  %v238 = vpack.c.b16 %v202, %v201
  %v239 = vpack.c.b16 %v204, %v203
  %v240 = vpack.c.b16 %v206, %v205
  %v241 = vpack.c.b16 %v208, %v207
  %v242 = vpack.c.b16 %v210, %v209
  %vm243 = vcmask 31744
  %v245 = vsel %vm243, %v211, 0
  %v248 = vsel %vm243, %v212, 0
  %v251 = vsel %vm243, %v213, 0
  %v254 = vsel %vm243, %v214, 0
  %v257 = vsel %vm243, %v215, 0
  %v260 = vsel %vm243, %v216, 0
  %v263 = vsel %vm243, %v217, 0
  %v266 = vsel %vm243, %v218, 0
  %v269 = vsel %vm243, %v219, 0
  %v272 = vsel %vm243, %v220, 0
  %v275 = vsel %vm243, %v221, 0
  %v278 = vsel %vm243, %v222, 0
  %v281 = vsel %vm243, %v223, 0
  %v284 = vsel %vm243, %v224, 0
  %v287 = vsel %vm243, %v225, 0
  %v290 = vsel %vm243, %v226, 0
  %v293 = vsel %vm243, %v227, 0
  %v296 = vsel %vm243, %v228, 0
  %v299 = vsel %vm243, %v229, 0
  %v302 = vsel %vm243, %v230, 0
  %v305 = vsel %vm243, %v231, 0
  %v308 = vsel %vm243, %v232, 0
  %v311 = vsel %vm243, %v233, 0
  %v314 = vsel %vm243, %v234, 0
  %v317 = vsel %vm243, %v235, 0
  %v320 = vsel %vm243, %v236, 0
  %v323 = vsel %vm243, %v237, 0
  %v326 = vsel %vm243, %v238, 0
  %v329 = vsel %vm243, %v239, 0
  %v332 = vsel %vm243, %v240, 0
  %v335 = vsel %vm243, %v241, 0
  %v338 = vsel %vm243, %v242, 0
  %vm340 = vcmask 1041408
  %v342 = vsel %vm340, %v82, 0
  %344 = vmatprep.subr.bf16.mxu0 0
  %345 = vmatpush1.bf16.msra.mxu0 0
  %346 = vmatprep.subr.bf16.mxu0 0
  %347 = vmatpush1.bf16.msra.mxu0 0
  %348 = vmatprep.subr.bf16.mxu0 0
  %349 = vmatpush1.bf16.msra.mxu0 0
  %350 = vmatprep.subr.bf16.mxu0 0
  %351 = vmatpush1.bf16.msra.mxu0 0
  %352 = vmatprep.subr.bf16.mxu0 0
  %353 = vmatpush1.bf16.msra.mxu0 0
  %354 = vmatprep.subr.bf16.mxu0 0
  %355 = vmatpush1.bf16.msra.mxu0 0
  %356 = vmatprep.subr.bf16.mxu0 0
  %357 = vmatpush1.bf16.msra.mxu0 0
  %358 = vmatprep.subr.bf16.mxu0 0
  %359 = vmatpush1.bf16.msra.mxu0 %v342
  %360 = vmatprep.subr.bf16.mxu0 0
  %361 = vmatpush2.bf16.msra.mxu0 0
  %362 = vmatprep.subr.bf16.mxu0 0
  %363 = vmatpush2.bf16.msra.mxu0 0
  %364 = vmatprep.subr.bf16.mxu0 0
  %365 = vmatpush2.bf16.msra.mxu0 0
  %366 = vmatprep.subr.bf16.mxu0 0
  %367 = vmatpush2.bf16.msra.mxu0 0
  %368 = vmatprep.subr.bf16.mxu0 0
  %369 = vmatpush2.bf16.msra.mxu0 0
  %370 = vmatprep.subr.bf16.mxu0 0
  %371 = vmatpush2.bf16.msra.mxu0 0
  %372 = vmatprep.subr.bf16.mxu0 0
  %373 = vmatpush2.bf16.msra.mxu0 0
  %374 = vmatprep.subr.bf16.mxu0 0
  %375 = vmatpush2.bf16.msra.mxu0 0
  %376 = vmatprep.mubr.bf16.mxu0 0
  %377 = vmatmul.mubr.bf16.gmra.mxu0 %v245
  %v378 = vpop.f32.mrf.mxu0
  %v379 = vadd.f32 0.0, %v378
  %v380 = vpop.f32.mrf.mxu0
  %v381 = vpop.f32.mrf.mxu0
  %v382 = vadd.f32 0.0, %v381
  %v383 = vpop.f32.mrf.mxu0
  %384 = vmatprep.mubr.bf16.mxu0 0
  %385 = vmatmul.mubr.bf16.gmra.mxu0 %v248
  %v386 = vpop.f32.mrf.mxu0
  %v387 = vadd.f32 0.0, %v386
  %v388 = vpop.f32.mrf.mxu0
  %v389 = vpop.f32.mrf.mxu0
  %v390 = vadd.f32 0.0, %v389
  %v391 = vpop.f32.mrf.mxu0
  %392 = vmatprep.mubr.bf16.mxu0 0
  %393 = vmatmul.mubr.bf16.gmra.mxu0 %v251
  %v394 = vpop.f32.mrf.mxu0
  %v395 = vadd.f32 0.0, %v394
  %v396 = vpop.f32.mrf.mxu0
  %v397 = vpop.f32.mrf.mxu0
  %v398 = vadd.f32 0.0, %v397
  %v399 = vpop.f32.mrf.mxu0
  %400 = vmatprep.mubr.bf16.mxu0 0
  %401 = vmatmul.mubr.bf16.gmra.mxu0 %v254
  %v402 = vpop.f32.mrf.mxu0
  %v403 = vadd.f32 0.0, %v402
  %v404 = vpop.f32.mrf.mxu0
  %v405 = vpop.f32.mrf.mxu0
  %v406 = vadd.f32 0.0, %v405
  %v407 = vpop.f32.mrf.mxu0
  %408 = vmatprep.mubr.bf16.mxu0 0
  %409 = vmatmul.mubr.bf16.gmra.mxu0 %v257
  %v410 = vpop.f32.mrf.mxu0
  %v411 = vadd.f32 0.0, %v410
  %v412 = vpop.f32.mrf.mxu0
  %v413 = vpop.f32.mrf.mxu0
  %v414 = vadd.f32 0.0, %v413
  %v415 = vpop.f32.mrf.mxu0
  %416 = vmatprep.mubr.bf16.mxu0 0
  %417 = vmatmul.mubr.bf16.gmra.mxu0 %v260
  %v418 = vpop.f32.mrf.mxu0
  %v419 = vadd.f32 0.0, %v418
  %v420 = vpop.f32.mrf.mxu0
  %v421 = vpop.f32.mrf.mxu0
  %v422 = vadd.f32 0.0, %v421
  %v423 = vpop.f32.mrf.mxu0
  %424 = vmatprep.mubr.bf16.mxu0 0
  %425 = vmatmul.mubr.bf16.gmra.mxu0 %v263
  %v426 = vpop.f32.mrf.mxu0
  %v427 = vadd.f32 0.0, %v426
  %v428 = vpop.f32.mrf.mxu0
  %v429 = vpop.f32.mrf.mxu0
  %v430 = vadd.f32 0.0, %v429
  %v431 = vpop.f32.mrf.mxu0
  %432 = vmatprep.mubr.bf16.mxu0 0
  %433 = vmatmul.mubr.bf16.gmra.mxu0 %v266
  %v434 = vpop.f32.mrf.mxu0
  %v435 = vadd.f32 0.0, %v434
  %v436 = vpop.f32.mrf.mxu0
  %v437 = vpop.f32.mrf.mxu0
  %v438 = vadd.f32 0.0, %v437
  %v439 = vpop.f32.mrf.mxu0
  %440 = vmatprep.mubr.bf16.mxu0 0
  %441 = vmatmul.mubr.bf16.gmra.mxu0 %v269
  %v442 = vpop.f32.mrf.mxu0
  %v443 = vadd.f32 0.0, %v442
  %v444 = vpop.f32.mrf.mxu0
  %v445 = vpop.f32.mrf.mxu0
  %v446 = vadd.f32 0.0, %v445
  %v447 = vpop.f32.mrf.mxu0
  %448 = vmatprep.mubr.bf16.mxu0 0
  %449 = vmatmul.mubr.bf16.gmra.mxu0 %v272
  %v450 = vpop.f32.mrf.mxu0
  %v451 = vadd.f32 0.0, %v450
  %v452 = vpop.f32.mrf.mxu0
  %v453 = vpop.f32.mrf.mxu0
  %v454 = vadd.f32 0.0, %v453
  %v455 = vpop.f32.mrf.mxu0
  %456 = vmatprep.mubr.bf16.mxu0 0
  %457 = vmatmul.mubr.bf16.gmra.mxu0 %v275
  %v458 = vpop.f32.mrf.mxu0
  %v459 = vadd.f32 0.0, %v458
  %v460 = vpop.f32.mrf.mxu0
  %v461 = vpop.f32.mrf.mxu0
  %v462 = vadd.f32 0.0, %v461
  %v463 = vpop.f32.mrf.mxu0
  %464 = vmatprep.mubr.bf16.mxu0 0
  %465 = vmatmul.mubr.bf16.gmra.mxu0 %v278
  %v466 = vpop.f32.mrf.mxu0
  %v467 = vadd.f32 0.0, %v466
  %v468 = vpop.f32.mrf.mxu0
  %v469 = vpop.f32.mrf.mxu0
  %v470 = vadd.f32 0.0, %v469
  %v471 = vpop.f32.mrf.mxu0
  %472 = vmatprep.mubr.bf16.mxu0 0
  %473 = vmatmul.mubr.bf16.gmra.mxu0 %v281
  %v474 = vpop.f32.mrf.mxu0
  %v475 = vadd.f32 0.0, %v474
  %v476 = vpop.f32.mrf.mxu0
  %v477 = vpop.f32.mrf.mxu0
  %v478 = vadd.f32 0.0, %v477
  %v479 = vpop.f32.mrf.mxu0
  %480 = vmatprep.mubr.bf16.mxu0 0
  %481 = vmatmul.mubr.bf16.gmra.mxu0 %v284
  %v482 = vpop.f32.mrf.mxu0
  %v483 = vadd.f32 0.0, %v482
  %v484 = vpop.f32.mrf.mxu0
  %v485 = vpop.f32.mrf.mxu0
  %v486 = vadd.f32 0.0, %v485
  %v487 = vpop.f32.mrf.mxu0
  %488 = vmatprep.mubr.bf16.mxu0 0
  %489 = vmatmul.mubr.bf16.gmra.mxu0 %v287
  %v490 = vpop.f32.mrf.mxu0
  %v491 = vadd.f32 0.0, %v490
  %v492 = vpop.f32.mrf.mxu0
  %v493 = vpop.f32.mrf.mxu0
  %v494 = vadd.f32 0.0, %v493
  %v495 = vpop.f32.mrf.mxu0
  %496 = vmatprep.mubr.bf16.mxu0 0
  %497 = vmatmul.mubr.bf16.gmra.mxu0 %v290
  %v498 = vpop.f32.mrf.mxu0
  %v499 = vadd.f32 0.0, %v498
  %v500 = vpop.f32.mrf.mxu0
  %v501 = vpop.f32.mrf.mxu0
  %v502 = vadd.f32 0.0, %v501
  %v503 = vpop.f32.mrf.mxu0
  %504 = vmatprep.mubr.bf16.mxu0 0
  %505 = vmatmul.mubr.bf16.gmra.mxu0 %v293
  %v506 = vpop.f32.mrf.mxu0
  %v507 = vadd.f32 0.0, %v506
  %v508 = vpop.f32.mrf.mxu0
  %v509 = vpop.f32.mrf.mxu0
  %v510 = vadd.f32 0.0, %v509
  %v511 = vpop.f32.mrf.mxu0
  %512 = vmatprep.mubr.bf16.mxu0 0
  %513 = vmatmul.mubr.bf16.gmra.mxu0 %v296
  %v514 = vpop.f32.mrf.mxu0
  %v515 = vadd.f32 0.0, %v514
  %v516 = vpop.f32.mrf.mxu0
  %v517 = vpop.f32.mrf.mxu0
  %v518 = vadd.f32 0.0, %v517
  %v519 = vpop.f32.mrf.mxu0
  %520 = vmatprep.mubr.bf16.mxu0 0
  %521 = vmatmul.mubr.bf16.gmra.mxu0 %v299
  %v522 = vpop.f32.mrf.mxu0
  %v523 = vadd.f32 0.0, %v522
  %v524 = vpop.f32.mrf.mxu0
  %v525 = vpop.f32.mrf.mxu0
  %v526 = vadd.f32 0.0, %v525
  %v527 = vpop.f32.mrf.mxu0
  %528 = vmatprep.mubr.bf16.mxu0 0
  %529 = vmatmul.mubr.bf16.gmra.mxu0 %v302
  %v530 = vpop.f32.mrf.mxu0
  %v531 = vadd.f32 0.0, %v530
  %v532 = vpop.f32.mrf.mxu0
  %v533 = vpop.f32.mrf.mxu0
  %v534 = vadd.f32 0.0, %v533
  %v535 = vpop.f32.mrf.mxu0
  %536 = vmatprep.mubr.bf16.mxu0 0
  %537 = vmatmul.mubr.bf16.gmra.mxu0 %v305
  %v538 = vpop.f32.mrf.mxu0
  %v539 = vadd.f32 0.0, %v538
  %v540 = vpop.f32.mrf.mxu0
  %v541 = vpop.f32.mrf.mxu0
  %v542 = vadd.f32 0.0, %v541
  %v543 = vpop.f32.mrf.mxu0
  %544 = vmatprep.mubr.bf16.mxu0 0
  %545 = vmatmul.mubr.bf16.gmra.mxu0 %v308
  %v546 = vpop.f32.mrf.mxu0
  %v547 = vadd.f32 0.0, %v546
  %v548 = vpop.f32.mrf.mxu0
  %v549 = vpop.f32.mrf.mxu0
  %v550 = vadd.f32 0.0, %v549
  %v551 = vpop.f32.mrf.mxu0
  %552 = vmatprep.mubr.bf16.mxu0 0
  %553 = vmatmul.mubr.bf16.gmra.mxu0 %v311
  %v554 = vpop.f32.mrf.mxu0
  %v555 = vadd.f32 0.0, %v554
  %v556 = vpop.f32.mrf.mxu0
  %v557 = vpop.f32.mrf.mxu0
  %v558 = vadd.f32 0.0, %v557
  %v559 = vpop.f32.mrf.mxu0
  %560 = vmatprep.mubr.bf16.mxu0 0
  %561 = vmatmul.mubr.bf16.gmra.mxu0 %v314
  %v562 = vpop.f32.mrf.mxu0
  %v563 = vadd.f32 0.0, %v562
  %v564 = vpop.f32.mrf.mxu0
  %v565 = vpop.f32.mrf.mxu0
  %v566 = vadd.f32 0.0, %v565
  %v567 = vpop.f32.mrf.mxu0
  %568 = vmatprep.mubr.bf16.mxu0 0
  %569 = vmatmul.mubr.bf16.gmra.mxu0 %v317
  %v570 = vpop.f32.mrf.mxu0
  %v571 = vadd.f32 0.0, %v570
  %v572 = vpop.f32.mrf.mxu0
  %v573 = vpop.f32.mrf.mxu0
  %v574 = vadd.f32 0.0, %v573
  %v575 = vpop.f32.mrf.mxu0
  %576 = vmatprep.mubr.bf16.mxu0 0
  %577 = vmatmul.mubr.bf16.gmra.mxu0 %v320
  %v578 = vpop.f32.mrf.mxu0
  %v579 = vadd.f32 0.0, %v578
  %v580 = vpop.f32.mrf.mxu0
  %v581 = vpop.f32.mrf.mxu0
  %v582 = vadd.f32 0.0, %v581
  %v583 = vpop.f32.mrf.mxu0
  %584 = vmatprep.mubr.bf16.mxu0 0
  %585 = vmatmul.mubr.bf16.gmra.mxu0 %v323
  %v586 = vpop.f32.mrf.mxu0
  %v587 = vadd.f32 0.0, %v586
  %v588 = vpop.f32.mrf.mxu0
  %v589 = vpop.f32.mrf.mxu0
  %v590 = vadd.f32 0.0, %v589
  %v591 = vpop.f32.mrf.mxu0
  %592 = vmatprep.mubr.bf16.mxu0 0
  %593 = vmatmul.mubr.bf16.gmra.mxu0 %v326
  %v594 = vpop.f32.mrf.mxu0
  %v595 = vadd.f32 0.0, %v594
  %v596 = vpop.f32.mrf.mxu0
  %v597 = vpop.f32.mrf.mxu0
  %v598 = vadd.f32 0.0, %v597
  %v599 = vpop.f32.mrf.mxu0
  %600 = vmatprep.mubr.bf16.mxu0 0
  %601 = vmatmul.mubr.bf16.gmra.mxu0 %v329
  %v602 = vpop.f32.mrf.mxu0
  %v603 = vadd.f32 0.0, %v602
  %v604 = vpop.f32.mrf.mxu0
  %v605 = vpop.f32.mrf.mxu0
  %v606 = vadd.f32 0.0, %v605
  %v607 = vpop.f32.mrf.mxu0
  %608 = vmatprep.mubr.bf16.mxu0 0
  %609 = vmatmul.mubr.bf16.gmra.mxu0 %v332
  %v610 = vpop.f32.mrf.mxu0
  %v611 = vadd.f32 0.0, %v610
  %v612 = vpop.f32.mrf.mxu0
  %v613 = vpop.f32.mrf.mxu0
  %v614 = vadd.f32 0.0, %v613
  %v615 = vpop.f32.mrf.mxu0
  %616 = vmatprep.mubr.bf16.mxu0 0
  %617 = vmatmul.mubr.bf16.gmra.mxu0 %v335
  %v618 = vpop.f32.mrf.mxu0
  %v619 = vadd.f32 0.0, %v618
  %v620 = vpop.f32.mrf.mxu0
  %v621 = vpop.f32.mrf.mxu0
  %v622 = vadd.f32 0.0, %v621
  %v623 = vpop.f32.mrf.mxu0
  %624 = vmatprep.mubr.bf16.mxu0 0
  %625 = vmatmul.mubr.bf16.gmra.mxu0 %v338
  %v626 = vpop.f32.mrf.mxu0
  %v627 = vadd.f32 0.0, %v626
  %v628 = vpop.f32.mrf.mxu0
  %v629 = vpop.f32.mrf.mxu0
  %v630 = vadd.f32 0.0, %v629
  %v631 = vpop.f32.mrf.mxu0
  %632 = vdwg.mxu0
  %v633 = vld [vmem:[%s2] sm:$0x1]
  %v635 = vlaneseq
  %v636 = vshrl.u32 %v635, 7
  %v637 = vsub.s32 0, %v636
  %v638 = vrot.slane %v633, %v637
  %v640 = vmul.f32 %v379, %v638
  %v641 = vmul.f32 %v382, %v638
  %v642 = vmul.f32 %v387, %v638
  %v643 = vmul.f32 %v390, %v638
  %v644 = vmul.f32 %v395, %v638
  %v645 = vmul.f32 %v398, %v638
  %v646 = vmul.f32 %v403, %v638
  %v647 = vmul.f32 %v406, %v638
  %v648 = vmul.f32 %v411, %v638
  %v649 = vmul.f32 %v414, %v638
  %v650 = vmul.f32 %v419, %v638
  %v651 = vmul.f32 %v422, %v638
  %v652 = vmul.f32 %v427, %v638
  %v653 = vmul.f32 %v430, %v638
  %v654 = vmul.f32 %v435, %v638
  %v655 = vmul.f32 %v438, %v638
  %v656 = vmul.f32 %v443, %v638
  %v657 = vmul.f32 %v446, %v638
  %v658 = vmul.f32 %v451, %v638
  %v659 = vmul.f32 %v454, %v638
  %v660 = vmul.f32 %v459, %v638
  %v661 = vmul.f32 %v462, %v638
  %v662 = vmul.f32 %v467, %v638
  %v663 = vmul.f32 %v470, %v638
  %v664 = vmul.f32 %v475, %v638
  %v665 = vmul.f32 %v478, %v638
  %v666 = vmul.f32 %v483, %v638
  %v667 = vmul.f32 %v486, %v638
  %v668 = vmul.f32 %v491, %v638
  %v669 = vmul.f32 %v494, %v638
  %v670 = vmul.f32 %v499, %v638
  %v671 = vmul.f32 %v502, %v638
  %v672 = vmul.f32 %v507, %v638
  %v673 = vmul.f32 %v510, %v638
  %v674 = vmul.f32 %v515, %v638
  %v675 = vmul.f32 %v518, %v638
  %v676 = vmul.f32 %v523, %v638
  %v677 = vmul.f32 %v526, %v638
  %v678 = vmul.f32 %v531, %v638
  %v679 = vmul.f32 %v534, %v638
  %v680 = vmul.f32 %v539, %v638
  %v681 = vmul.f32 %v542, %v638
  %v682 = vmul.f32 %v547, %v638
  %v683 = vmul.f32 %v550, %v638
  %v684 = vmul.f32 %v555, %v638
  %v685 = vmul.f32 %v558, %v638
  %v686 = vmul.f32 %v563, %v638
  %v687 = vmul.f32 %v566, %v638
  %v688 = vmul.f32 %v571, %v638
  %v689 = vmul.f32 %v574, %v638
  %v690 = vmul.f32 %v579, %v638
  %v691 = vmul.f32 %v582, %v638
  %v692 = vmul.f32 %v587, %v638
  %v693 = vmul.f32 %v590, %v638
  %v694 = vmul.f32 %v595, %v638
  %v695 = vmul.f32 %v598, %v638
  %v696 = vmul.f32 %v603, %v638
  %v697 = vmul.f32 %v606, %v638
  %v698 = vmul.f32 %v611, %v638
  %v699 = vmul.f32 %v614, %v638
  %v700 = vmul.f32 %v619, %v638
  %v701 = vmul.f32 %v622, %v638
  %v702 = vmul.f32 %v627, %v638
  %v703 = vmul.f32 %v630, %v638
  %v704 = vld [vmem:[%s3] sm:$0x1]
  %v706 = vlaneseq
  %v707 = vshrl.u32 %v706, 7
  %v708 = vsub.s32 0, %v707
  %v709 = vrot.slane %v704, %v708
  %v711 = vadd.f32 %v640, %v709
  %v712 = vadd.f32 %v641, %v709
  %v713 = vadd.f32 %v642, %v709
  %v714 = vadd.f32 %v643, %v709
  %v715 = vadd.f32 %v644, %v709
  %v716 = vadd.f32 %v645, %v709
  %v717 = vadd.f32 %v646, %v709
  %v718 = vadd.f32 %v647, %v709
  %v719 = vadd.f32 %v648, %v709
  %v720 = vadd.f32 %v649, %v709
  %v721 = vadd.f32 %v650, %v709
  %v722 = vadd.f32 %v651, %v709
  %v723 = vadd.f32 %v652, %v709
  %v724 = vadd.f32 %v653, %v709
  %v725 = vadd.f32 %v654, %v709
  %v726 = vadd.f32 %v655, %v709
  %v727 = vadd.f32 %v656, %v709
  %v728 = vadd.f32 %v657, %v709
  %v729 = vadd.f32 %v658, %v709
  %v730 = vadd.f32 %v659, %v709
  %v731 = vadd.f32 %v660, %v709
  %v732 = vadd.f32 %v661, %v709
  %v733 = vadd.f32 %v662, %v709
  %v734 = vadd.f32 %v663, %v709
  %v735 = vadd.f32 %v664, %v709
  %v736 = vadd.f32 %v665, %v709
  %v737 = vadd.f32 %v666, %v709
  %v738 = vadd.f32 %v667, %v709
  %v739 = vadd.f32 %v668, %v709
  %v740 = vadd.f32 %v669, %v709
  %v741 = vadd.f32 %v670, %v709
  %v742 = vadd.f32 %v671, %v709
  %v743 = vadd.f32 %v672, %v709
  %v744 = vadd.f32 %v673, %v709
  %v745 = vadd.f32 %v674, %v709
  %v746 = vadd.f32 %v675, %v709
  %v747 = vadd.f32 %v676, %v709
  %v748 = vadd.f32 %v677, %v709
  %v749 = vadd.f32 %v678, %v709
  %v750 = vadd.f32 %v679, %v709
  %v751 = vadd.f32 %v680, %v709
  %v752 = vadd.f32 %v681, %v709
  %v753 = vadd.f32 %v682, %v709
  %v754 = vadd.f32 %v683, %v709
  %v755 = vadd.f32 %v684, %v709
  %v756 = vadd.f32 %v685, %v709
  %v757 = vadd.f32 %v686, %v709
  %v758 = vadd.f32 %v687, %v709
  %v759 = vadd.f32 %v688, %v709
  %v760 = vadd.f32 %v689, %v709
  %v761 = vadd.f32 %v690, %v709
  %v762 = vadd.f32 %v691, %v709
  %v763 = vadd.f32 %v692, %v709
  %v764 = vadd.f32 %v693, %v709
  %v765 = vadd.f32 %v694, %v709
  %v766 = vadd.f32 %v695, %v709
  %v767 = vadd.f32 %v696, %v709
  %v768 = vadd.f32 %v697, %v709
  %v769 = vadd.f32 %v698, %v709
  %v770 = vadd.f32 %v699, %v709
  %v771 = vadd.f32 %v700, %v709
  %v772 = vadd.f32 %v701, %v709
  %v773 = vadd.f32 %v702, %v709
  %v774 = vadd.f32 %v703, %v709
  %v775 = vmax.f32 %v711, 0.0
  %v776 = vmax.f32 %v712, 0.0
  %v777 = vmax.f32 %v713, 0.0
  %v778 = vmax.f32 %v714, 0.0
  %v779 = vmax.f32 %v715, 0.0
  %v780 = vmax.f32 %v716, 0.0
  %v781 = vmax.f32 %v717, 0.0
  %v782 = vmax.f32 %v718, 0.0
  %v783 = vmax.f32 %v719, 0.0
  %v784 = vmax.f32 %v720, 0.0
  %v785 = vmax.f32 %v721, 0.0
  %v786 = vmax.f32 %v722, 0.0
  %v787 = vmax.f32 %v723, 0.0
  %v788 = vmax.f32 %v724, 0.0
  %v789 = vmax.f32 %v725, 0.0
  %v790 = vmax.f32 %v726, 0.0
  %v791 = vmax.f32 %v727, 0.0
  %v792 = vmax.f32 %v728, 0.0
  %v793 = vmax.f32 %v729, 0.0
  %v794 = vmax.f32 %v730, 0.0
  %v795 = vmax.f32 %v731, 0.0
  %v796 = vmax.f32 %v732, 0.0
  %v797 = vmax.f32 %v733, 0.0
  %v798 = vmax.f32 %v734, 0.0
  %v799 = vmax.f32 %v735, 0.0
  %v800 = vmax.f32 %v736, 0.0
  %v801 = vmax.f32 %v737, 0.0
  %v802 = vmax.f32 %v738, 0.0
  %v803 = vmax.f32 %v739, 0.0
  %v804 = vmax.f32 %v740, 0.0
  %v805 = vmax.f32 %v741, 0.0
  %v806 = vmax.f32 %v742, 0.0
  %v807 = vmax.f32 %v743, 0.0
  %v808 = vmax.f32 %v744, 0.0
  %v809 = vmax.f32 %v745, 0.0
  %v810 = vmax.f32 %v746, 0.0
  %v811 = vmax.f32 %v747, 0.0
  %v812 = vmax.f32 %v748, 0.0
  %v813 = vmax.f32 %v749, 0.0
  %v814 = vmax.f32 %v750, 0.0
  %v815 = vmax.f32 %v751, 0.0
  %v816 = vmax.f32 %v752, 0.0
  %v817 = vmax.f32 %v753, 0.0
  %v818 = vmax.f32 %v754, 0.0
  %v819 = vmax.f32 %v755, 0.0
  %v820 = vmax.f32 %v756, 0.0
  %v821 = vmax.f32 %v757, 0.0
  %v822 = vmax.f32 %v758, 0.0
  %v823 = vmax.f32 %v759, 0.0
  %v824 = vmax.f32 %v760, 0.0
  %v825 = vmax.f32 %v761, 0.0
  %v826 = vmax.f32 %v762, 0.0
  %v827 = vmax.f32 %v763, 0.0
  %v828 = vmax.f32 %v764, 0.0
  %v829 = vmax.f32 %v765, 0.0
  %v830 = vmax.f32 %v766, 0.0
  %v831 = vmax.f32 %v767, 0.0
  %v832 = vmax.f32 %v768, 0.0
  %v833 = vmax.f32 %v769, 0.0
  %v834 = vmax.f32 %v770, 0.0
  %v835 = vmax.f32 %v771, 0.0
  %v836 = vmax.f32 %v772, 0.0
  %v837 = vmax.f32 %v773, 0.0
  %v838 = vmax.f32 %v774, 0.0
  %v839 = vpack.c.bf16 %v776, %v775
  %v840 = vpack.c.bf16 %v778, %v777
  %v841 = vpack.c.bf16 %v780, %v779
  %v842 = vpack.c.bf16 %v782, %v781
  %v843 = vpack.c.bf16 %v784, %v783
  %v844 = vpack.c.bf16 %v786, %v785
  %v845 = vpack.c.bf16 %v788, %v787
  %v846 = vpack.c.bf16 %v790, %v789
  %v847 = vpack.c.bf16 %v792, %v791
  %v848 = vpack.c.bf16 %v794, %v793
  %v849 = vpack.c.bf16 %v796, %v795
  %v850 = vpack.c.bf16 %v798, %v797
  %v851 = vpack.c.bf16 %v800, %v799
  %v852 = vpack.c.bf16 %v802, %v801
  %v853 = vpack.c.bf16 %v804, %v803
  %v854 = vpack.c.bf16 %v806, %v805
  %v855 = vpack.c.bf16 %v808, %v807
  %v856 = vpack.c.bf16 %v810, %v809
  %v857 = vpack.c.bf16 %v812, %v811
  %v858 = vpack.c.bf16 %v814, %v813
  %v859 = vpack.c.bf16 %v816, %v815
  %v860 = vpack.c.bf16 %v818, %v817
  %v861 = vpack.c.bf16 %v820, %v819
  %v862 = vpack.c.bf16 %v822, %v821
  %v863 = vpack.c.bf16 %v824, %v823
  %v864 = vpack.c.bf16 %v826, %v825
  %v865 = vpack.c.bf16 %v828, %v827
  %v866 = vpack.c.bf16 %v830, %v829
  %v867 = vpack.c.bf16 %v832, %v831
  %v868 = vpack.c.bf16 %v834, %v833
  %v869 = vpack.c.bf16 %v836, %v835
  %v870 = vpack.c.bf16 %v838, %v837
  %v903 = vunpack.c.l.b16 %v839
  %v904 = vunpack.c.h.b16 %v839
  %v905 = vunpack.c.l.b16 %v840
  %v906 = vunpack.c.h.b16 %v840
  %v907 = vunpack.c.l.b16 %v841
  %v908 = vunpack.c.h.b16 %v841
  %v909 = vunpack.c.l.b16 %v842
  %v910 = vunpack.c.h.b16 %v842
  %v911 = vunpack.c.l.b16 %v843
  %v912 = vunpack.c.h.b16 %v843
  %v913 = vunpack.c.l.b16 %v844
  %v914 = vunpack.c.h.b16 %v844
  %v915 = vunpack.c.l.b16 %v845
  %v916 = vunpack.c.h.b16 %v845
  %v917 = vunpack.c.l.b16 %v846
  %v918 = vunpack.c.h.b16 %v846
  %v919 = vunpack.c.l.b16 %v847
  %v920 = vunpack.c.h.b16 %v847
  %v921 = vunpack.c.l.b16 %v848
  %v922 = vunpack.c.h.b16 %v848
  %v923 = vunpack.c.l.b16 %v849
  %v924 = vunpack.c.h.b16 %v849
  %v925 = vunpack.c.l.b16 %v850
  %v926 = vunpack.c.h.b16 %v850
  %v927 = vunpack.c.l.b16 %v851
  %v928 = vunpack.c.h.b16 %v851
  %v929 = vunpack.c.l.b16 %v852
  %v930 = vunpack.c.h.b16 %v852
  %v931 = vunpack.c.l.b16 %v853
  %v932 = vunpack.c.h.b16 %v853
  %v933 = vunpack.c.l.b16 %v854
  %v934 = vunpack.c.h.b16 %v854
  %v935 = vunpack.c.l.b16 %v855
  %v936 = vunpack.c.h.b16 %v855
  %v937 = vunpack.c.l.b16 %v856
  %v938 = vunpack.c.h.b16 %v856
  %v939 = vunpack.c.l.b16 %v857
  %v940 = vunpack.c.h.b16 %v857
  %v941 = vunpack.c.l.b16 %v858
  %v942 = vunpack.c.h.b16 %v858
  %v943 = vunpack.c.l.b16 %v859
  %v944 = vunpack.c.h.b16 %v859
  %v945 = vunpack.c.l.b16 %v860
  %v946 = vunpack.c.h.b16 %v860
  %v947 = vunpack.c.l.b16 %v861
  %v948 = vunpack.c.h.b16 %v861
  %v949 = vunpack.c.l.b16 %v862
  %v950 = vunpack.c.h.b16 %v862
  %v951 = vunpack.c.l.b16 %v863
  %v952 = vunpack.c.h.b16 %v863
  %v953 = vunpack.c.l.b16 %v864
  %v954 = vunpack.c.h.b16 %v864
  %v955 = vunpack.c.l.b16 %v865
  %v956 = vunpack.c.h.b16 %v865
  %v957 = vunpack.c.l.b16 %v866
  %v958 = vunpack.c.h.b16 %v866
  %v959 = vunpack.c.l.b16 %v867
  %v960 = vunpack.c.h.b16 %v867
  %v961 = vunpack.c.l.b16 %v868
  %v962 = vunpack.c.h.b16 %v868
  %v963 = vunpack.c.l.b16 %v869
  %v964 = vunpack.c.h.b16 %v869
  %v965 = vunpack.c.l.b16 %v870
  %v966 = vunpack.c.h.b16 %v870
  %v967 = vpack.c.b16 %v903, %v903
  %v968 = vpack.c.b16 %v904, %v904
  %v969 = vpack.c.b16 %v905, %v905
  %v970 = vpack.c.b16 %v906, %v906
  %v971 = vpack.c.b16 %v907, %v907
  %v972 = vpack.c.b16 %v908, %v908
  %v973 = vpack.c.b16 %v909, %v909
  %v974 = vpack.c.b16 %v910, %v910
  %v975 = vpack.c.b16 %v911, %v911
  %v976 = vpack.c.b16 %v912, %v912
  %v977 = vpack.c.b16 %v913, %v913
  %v978 = vpack.c.b16 %v914, %v914
  %v979 = vpack.c.b16 %v915, %v915
  %v980 = vpack.c.b16 %v916, %v916
  %v981 = vpack.c.b16 %v917, %v917
  %v982 = vpack.c.b16 %v918, %v918
  %v983 = vpack.c.b16 %v919, %v919
  %v984 = vpack.c.b16 %v920, %v920
  %v985 = vpack.c.b16 %v921, %v921
  %v986 = vpack.c.b16 %v922, %v922
  %v987 = vpack.c.b16 %v923, %v923
  %v988 = vpack.c.b16 %v924, %v924
  %v989 = vpack.c.b16 %v925, %v925
  %v990 = vpack.c.b16 %v926, %v926
  %v991 = vpack.c.b16 %v927, %v927
  %v992 = vpack.c.b16 %v928, %v928
  %v993 = vpack.c.b16 %v929, %v929
  %v994 = vpack.c.b16 %v930, %v930
  %v995 = vpack.c.b16 %v931, %v931
  %v996 = vpack.c.b16 %v932, %v932
  %v997 = vpack.c.b16 %v933, %v933
  %v998 = vpack.c.b16 %v934, %v934
  %v999 = vpack.c.b16 %v935, %v935
  %v1000 = vpack.c.b16 %v936, %v936
  %v1001 = vpack.c.b16 %v937, %v937
  %v1002 = vpack.c.b16 %v938, %v938
  %v1003 = vpack.c.b16 %v939, %v939
  %v1004 = vpack.c.b16 %v940, %v940
  %v1005 = vpack.c.b16 %v941, %v941
  %v1006 = vpack.c.b16 %v942, %v942
  %v1007 = vpack.c.b16 %v943, %v943
  %v1008 = vpack.c.b16 %v944, %v944
  %v1009 = vpack.c.b16 %v945, %v945
  %v1010 = vpack.c.b16 %v946, %v946
  %v1011 = vpack.c.b16 %v947, %v947
  %v1012 = vpack.c.b16 %v948, %v948
  %v1013 = vpack.c.b16 %v949, %v949
  %v1014 = vpack.c.b16 %v950, %v950
  %v1015 = vpack.c.b16 %v951, %v951
  %v1016 = vpack.c.b16 %v952, %v952
  %v1017 = vpack.c.b16 %v953, %v953
  %v1018 = vpack.c.b16 %v954, %v954
  %v1019 = vpack.c.b16 %v955, %v955
  %v1020 = vpack.c.b16 %v956, %v956
  %v1021 = vpack.c.b16 %v957, %v957
  %v1022 = vpack.c.b16 %v958, %v958
  %v1023 = vpack.c.b16 %v959, %v959
  %v1024 = vpack.c.b16 %v960, %v960
  %v1025 = vpack.c.b16 %v961, %v961
  %v1026 = vpack.c.b16 %v962, %v962
  %v1027 = vpack.c.b16 %v963, %v963
  %v1028 = vpack.c.b16 %v964, %v964
  %v1029 = vpack.c.b16 %v965, %v965
  %v1030 = vpack.c.b16 %v966, %v966
  %vm1095 = vcmask 27648
  %1096 = vst.msk [vmem:[%s4] sm:$0xf] %vm1095, %v967
  %1097 = vst.msk [vmem:[%s4 + $0x4] sm:$0xf] %vm1095, %v968
  %1098 = vst.msk [vmem:[%s4 + $0x8] sm:$0xf] %vm1095, %v969
  %1099 = vst.msk [vmem:[%s4 + $0xc] sm:$0xf] %vm1095, %v970
  %1100 = vst.msk [vmem:[%s4 + $0x10] sm:$0xf] %vm1095, %v971
  %1101 = vst.msk [vmem:[%s4 + $0x14] sm:$0xf] %vm1095, %v972
  %1102 = vst.msk [vmem:[%s4 + $0x18] sm:$0xf] %vm1095, %v973
  %1103 = vst.msk [vmem:[%s4 + $0x1c] sm:$0xf] %vm1095, %v974
  %1104 = vst.msk [vmem:[%s4 + $0x20] sm:$0xf] %vm1095, %v975
  %1105 = vst.msk [vmem:[%s4 + $0x24] sm:$0xf] %vm1095, %v976
  %1106 = vst.msk [vmem:[%s4 + $0x28] sm:$0xf] %vm1095, %v977
  %1107 = vst.msk [vmem:[%s4 + $0x2c] sm:$0xf] %vm1095, %v978
  %1108 = vst.msk [vmem:[%s4 + $0x30] sm:$0xf] %vm1095, %v979
  %1109 = vst.msk [vmem:[%s4 + $0x34] sm:$0xf] %vm1095, %v980
  %1110 = vst.msk [vmem:[%s4 + $0x38] sm:$0xf] %vm1095, %v981
  %1111 = vst.msk [vmem:[%s4 + $0x3c] sm:$0xf] %vm1095, %v982
  %1112 = vst.msk [vmem:[%s4 + $0x40] sm:$0xf] %vm1095, %v983
  %1113 = vst.msk [vmem:[%s4 + $0x44] sm:$0xf] %vm1095, %v984
  %1114 = vst.msk [vmem:[%s4 + $0x48] sm:$0xf] %vm1095, %v985
  %1115 = vst.msk [vmem:[%s4 + $0x4c] sm:$0xf] %vm1095, %v986
  %1116 = vst.msk [vmem:[%s4 + $0x50] sm:$0xf] %vm1095, %v987
  %1117 = vst.msk [vmem:[%s4 + $0x54] sm:$0xf] %vm1095, %v988
  %1118 = vst.msk [vmem:[%s4 + $0x58] sm:$0xf] %vm1095, %v989
  %1119 = vst.msk [vmem:[%s4 + $0x5c] sm:$0xf] %vm1095, %v990
  %1120 = vst.msk [vmem:[%s4 + $0x60] sm:$0xf] %vm1095, %v991
  %1121 = vst.msk [vmem:[%s4 + $0x64] sm:$0xf] %vm1095, %v992
  %1122 = vst.msk [vmem:[%s4 + $0x68] sm:$0xf] %vm1095, %v993
  %1123 = vst.msk [vmem:[%s4 + $0x6c] sm:$0xf] %vm1095, %v994
  %1124 = vst.msk [vmem:[%s4 + $0x70] sm:$0xf] %vm1095, %v995
  %1125 = vst.msk [vmem:[%s4 + $0x74] sm:$0xf] %vm1095, %v996
  %1126 = vst.msk [vmem:[%s4 + $0x78] sm:$0xf] %vm1095, %v997
  %1127 = vst.msk [vmem:[%s4 + $0x7c] sm:$0xf] %vm1095, %v998
  %1128 = vst.msk [vmem:[%s4 + $0x80] sm:$0xf] %vm1095, %v999
  %1129 = vst.msk [vmem:[%s4 + $0x84] sm:$0xf] %vm1095, %v1000
  %1130 = vst.msk [vmem:[%s4 + $0x88] sm:$0xf] %vm1095, %v1001
  %1131 = vst.msk [vmem:[%s4 + $0x8c] sm:$0xf] %vm1095, %v1002
  %1132 = vst.msk [vmem:[%s4 + $0x90] sm:$0xf] %vm1095, %v1003
  %1133 = vst.msk [vmem:[%s4 + $0x94] sm:$0xf] %vm1095, %v1004
  %1134 = vst.msk [vmem:[%s4 + $0x98] sm:$0xf] %vm1095, %v1005
  %1135 = vst.msk [vmem:[%s4 + $0x9c] sm:$0xf] %vm1095, %v1006
  %1136 = vst.msk [vmem:[%s4 + $0xa0] sm:$0xf] %vm1095, %v1007
  %1137 = vst.msk [vmem:[%s4 + $0xa4] sm:$0xf] %vm1095, %v1008
  %1138 = vst.msk [vmem:[%s4 + $0xa8] sm:$0xf] %vm1095, %v1009
  %1139 = vst.msk [vmem:[%s4 + $0xac] sm:$0xf] %vm1095, %v1010
  %1140 = vst.msk [vmem:[%s4 + $0xb0] sm:$0xf] %vm1095, %v1011
  %1141 = vst.msk [vmem:[%s4 + $0xb4] sm:$0xf] %vm1095, %v1012
  %1142 = vst.msk [vmem:[%s4 + $0xb8] sm:$0xf] %vm1095, %v1013
  %1143 = vst.msk [vmem:[%s4 + $0xbc] sm:$0xf] %vm1095, %v1014
  %1144 = vst.msk [vmem:[%s4 + $0xc0] sm:$0xf] %vm1095, %v1015
  %1145 = vst.msk [vmem:[%s4 + $0xc4] sm:$0xf] %vm1095, %v1016
  %1146 = vst.msk [vmem:[%s4 + $0xc8] sm:$0xf] %vm1095, %v1017
  %1147 = vst.msk [vmem:[%s4 + $0xcc] sm:$0xf] %vm1095, %v1018
  %1148 = vst.msk [vmem:[%s4 + $0xd0] sm:$0xf] %vm1095, %v1019
  %1149 = vst.msk [vmem:[%s4 + $0xd4] sm:$0xf] %vm1095, %v1020
  %1150 = vst.msk [vmem:[%s4 + $0xd8] sm:$0xf] %vm1095, %v1021
  %1151 = vst.msk [vmem:[%s4 + $0xdc] sm:$0xf] %vm1095, %v1022
  %1152 = vst.msk [vmem:[%s4 + $0xe0] sm:$0xf] %vm1095, %v1023
  %1153 = vst.msk [vmem:[%s4 + $0xe4] sm:$0xf] %vm1095, %v1024
  %1154 = vst.msk [vmem:[%s4 + $0xe8] sm:$0xf] %vm1095, %v1025
  %1155 = vst.msk [vmem:[%s4 + $0xec] sm:$0xf] %vm1095, %v1026
  %1156 = vst.msk [vmem:[%s4 + $0xf0] sm:$0xf] %vm1095, %v1027
  %1157 = vst.msk [vmem:[%s4 + $0xf4] sm:$0xf] %vm1095, %v1028
  %1158 = vst.msk [vmem:[%s4 + $0xf8] sm:$0xf] %vm1095, %v1029
  %1159 = vst.msk [vmem:[%s4 + $0xfc] sm:$0xf] %vm1095, %v1030
  // Predicated region
  $region18: #{bottleneck_forward.3} parent=0 // pred_check
    _
  $region19: #{bottleneck_forward.3} parent=0 // pred_check_branch
    %1161 = sbr.rel (0) target = $region21
  $region20: #{bottleneck_forward.3} parent=0 // pred_region
    _
  $region21: #{bottleneck_forward.3} parent=0 // pred_fallthru
    _
  // Predicated region
  $region22: #{bottleneck_forward.3} parent=0 // pred_check
    _
  $region23: #{bottleneck_forward.3} parent=0 // pred_check_branch
    %1163 = sbr.rel (0) target = $region25
  $region24: #{bottleneck_forward.3} parent=0 // pred_region
    _
  $region25: #{bottleneck_forward.3} parent=0 // pred_fallthru
    _

// kernel: bottleneck_forward.5
$region0: #{bottleneck_forward.5}
  #allocation0 [shape = 'u32[]', space=smem, size = 0x4, offset = 0x4, fixed_abs, tag = 'smem constant byte address 0x4 - core index']
  #allocation1 [shape = 'u32[144,128]{1,0:T(1,128)}', space=vmem, size = 0x12000, scoped, tag = 'internal scratch']
  %s0 = inlined_call_operand.vmem [shape: bf16[512,4], index: 0, kind: input, shape index: {}]
  %s1 = inlined_call_operand.vmem [shape: bf16[4,16], index: 1, kind: input, shape index: {}]
  %s2 = inlined_call_operand.vmem [shape: f32[1,16], index: 2, kind: input, shape index: {}]
  %s3 = inlined_call_operand.vmem [shape: f32[1,16], index: 3, kind: input, shape index: {}]
  %s4 = inlined_call_operand.vmem [shape: bf16[512,4], index: 4, kind: input, shape index: {}]
  %s5 = inlined_call_operand.vmem [shape: bf16[4,16], index: 5, kind: input, shape index: {}]
  %s6 = inlined_call_operand.vmem [shape: f32[1,16], index: 6, kind: input, shape index: {}]
  %s7 = inlined_call_operand.vmem [shape: f32[1,16], index: 7, kind: input, shape index: {}]
  %s8 = inlined_call_operand.vmem [shape: bf16[512,16], index: 8, kind: output, shape index: {}]
  %s9 = sld [smem:[#allocation0]]
  $region42: #{bottleneck_forward.5} parent=0
    _
  %s11 = ssub.s32 1, %s9
  %s12 = scalar_select 0, %s11, %s9
  // Predicated region
  $region2: #{bottleneck_forward.5} parent=0 // pred_check
    _
  $region3: #{bottleneck_forward.5} parent=0 // pred_check_branch
    %14 = sbr.rel (0) target = $region5
  $region4: #{bottleneck_forward.5} parent=0 // pred_region
    _
  $region5: #{bottleneck_forward.5} parent=0 // pred_fallthru
    _
  // Predicated region
  $region6: #{bottleneck_forward.5} parent=0 // pred_check
    _
  $region7: #{bottleneck_forward.5} parent=0 // pred_check_branch
    %16 = sbr.rel (0) target = $region9
  $region8: #{bottleneck_forward.5} parent=0 // pred_region
    _
  $region9: #{bottleneck_forward.5} parent=0 // pred_fallthru
    _
  // Predicated region
  $region10: #{bottleneck_forward.5} parent=0 // pred_check
    _
  $region11: #{bottleneck_forward.5} parent=0 // pred_check_branch
    %18 = sbr.rel (0) target = $region13
  $region12: #{bottleneck_forward.5} parent=0 // pred_region
    _
  $region13: #{bottleneck_forward.5} parent=0 // pred_fallthru
    _
  // Predicated region
  $region14: #{bottleneck_forward.5} parent=0 // pred_check
    _
  $region15: #{bottleneck_forward.5} parent=0 // pred_check_branch
    %20 = sbr.rel (0) target = $region17
  $region16: #{bottleneck_forward.5} parent=0 // pred_region
    _
  $region17: #{bottleneck_forward.5} parent=0 // pred_fallthru
    _
  // Predicated region
  $region18: #{bottleneck_forward.5} parent=0 // pred_check
    _
  $region19: #{bottleneck_forward.5} parent=0 // pred_check_branch
    %22 = sbr.rel (0) target = $region21
  $region20: #{bottleneck_forward.5} parent=0 // pred_region
    _
  $region21: #{bottleneck_forward.5} parent=0 // pred_fallthru
    _
  // Predicated region
  $region22: #{bottleneck_forward.5} parent=0 // pred_check
    _
  $region23: #{bottleneck_forward.5} parent=0 // pred_check_branch
    %24 = sbr.rel (0) target = $region25
  $region24: #{bottleneck_forward.5} parent=0 // pred_region
    _
  $region25: #{bottleneck_forward.5} parent=0 // pred_fallthru
    _
  // Predicated region
  $region26: #{bottleneck_forward.5} parent=0 // pred_check
    _
  $region27: #{bottleneck_forward.5} parent=0 // pred_check_branch
    %26 = sbr.rel (0) target = $region29
  $region28: #{bottleneck_forward.5} parent=0 // pred_region
    _
  $region29: #{bottleneck_forward.5} parent=0 // pred_fallthru
    _
  // Predicated region
  $region30: #{bottleneck_forward.5} parent=0 // pred_check
    _
  $region31: #{bottleneck_forward.5} parent=0 // pred_check_branch
    %28 = sbr.rel (0) target = $region33
  $region32: #{bottleneck_forward.5} parent=0 // pred_region
    _
  $region33: #{bottleneck_forward.5} parent=0 // pred_fallthru
    _
  %v30 = vld [vmem:[%s0] sm:$0xf]
  %v31 = vld [vmem:[%s0 + $0x4] sm:$0xf]
  %v32 = vld [vmem:[%s0 + $0x8] sm:$0xf]
  %v33 = vld [vmem:[%s0 + $0xc] sm:$0xf]
  %v34 = vld [vmem:[%s0 + $0x10] sm:$0xf]
  %v35 = vld [vmem:[%s0 + $0x14] sm:$0xf]
  %v36 = vld [vmem:[%s0 + $0x18] sm:$0xf]
  %v37 = vld [vmem:[%s0 + $0x1c] sm:$0xf]
  %v38 = vld [vmem:[%s0 + $0x20] sm:$0xf]
  %v39 = vld [vmem:[%s0 + $0x24] sm:$0xf]
  %v40 = vld [vmem:[%s0 + $0x28] sm:$0xf]
  %v41 = vld [vmem:[%s0 + $0x2c] sm:$0xf]
  %v42 = vld [vmem:[%s0 + $0x30] sm:$0xf]
  %v43 = vld [vmem:[%s0 + $0x34] sm:$0xf]
  %v44 = vld [vmem:[%s0 + $0x38] sm:$0xf]
  %v45 = vld [vmem:[%s0 + $0x3c] sm:$0xf]
  %v46 = vld [vmem:[%s0 + $0x40] sm:$0xf]
  %v47 = vld [vmem:[%s0 + $0x44] sm:$0xf]
  %v48 = vld [vmem:[%s0 + $0x48] sm:$0xf]
  %v49 = vld [vmem:[%s0 + $0x4c] sm:$0xf]
  %v50 = vld [vmem:[%s0 + $0x50] sm:$0xf]
  %v51 = vld [vmem:[%s0 + $0x54] sm:$0xf]
  %v52 = vld [vmem:[%s0 + $0x58] sm:$0xf]
  %v53 = vld [vmem:[%s0 + $0x5c] sm:$0xf]
  %v54 = vld [vmem:[%s0 + $0x60] sm:$0xf]
  %v55 = vld [vmem:[%s0 + $0x64] sm:$0xf]
  %v56 = vld [vmem:[%s0 + $0x68] sm:$0xf]
  %v57 = vld [vmem:[%s0 + $0x6c] sm:$0xf]
  %v58 = vld [vmem:[%s0 + $0x70] sm:$0xf]
  %v59 = vld [vmem:[%s0 + $0x74] sm:$0xf]
  %v60 = vld [vmem:[%s0 + $0x78] sm:$0xf]
  %v61 = vld [vmem:[%s0 + $0x7c] sm:$0xf]
  %v62 = vld [vmem:[%s0 + $0x80] sm:$0xf]
  %v63 = vld [vmem:[%s0 + $0x84] sm:$0xf]
  %v64 = vld [vmem:[%s0 + $0x88] sm:$0xf]
  %v65 = vld [vmem:[%s0 + $0x8c] sm:$0xf]
  %v66 = vld [vmem:[%s0 + $0x90] sm:$0xf]
  %v67 = vld [vmem:[%s0 + $0x94] sm:$0xf]
  %v68 = vld [vmem:[%s0 + $0x98] sm:$0xf]
  %v69 = vld [vmem:[%s0 + $0x9c] sm:$0xf]
  %v70 = vld [vmem:[%s0 + $0xa0] sm:$0xf]
  %v71 = vld [vmem:[%s0 + $0xa4] sm:$0xf]
  %v72 = vld [vmem:[%s0 + $0xa8] sm:$0xf]
  %v73 = vld [vmem:[%s0 + $0xac] sm:$0xf]
  %v74 = vld [vmem:[%s0 + $0xb0] sm:$0xf]
  %v75 = vld [vmem:[%s0 + $0xb4] sm:$0xf]
  %v76 = vld [vmem:[%s0 + $0xb8] sm:$0xf]
  %v77 = vld [vmem:[%s0 + $0xbc] sm:$0xf]
  %v78 = vld [vmem:[%s0 + $0xc0] sm:$0xf]
  %v79 = vld [vmem:[%s0 + $0xc4] sm:$0xf]
  %v80 = vld [vmem:[%s0 + $0xc8] sm:$0xf]
  %v81 = vld [vmem:[%s0 + $0xcc] sm:$0xf]
  %v82 = vld [vmem:[%s0 + $0xd0] sm:$0xf]
  %v83 = vld [vmem:[%s0 + $0xd4] sm:$0xf]
  %v84 = vld [vmem:[%s0 + $0xd8] sm:$0xf]
  %v85 = vld [vmem:[%s0 + $0xdc] sm:$0xf]
  %v86 = vld [vmem:[%s0 + $0xe0] sm:$0xf]
  %v87 = vld [vmem:[%s0 + $0xe4] sm:$0xf]
  %v88 = vld [vmem:[%s0 + $0xe8] sm:$0xf]
  %v89 = vld [vmem:[%s0 + $0xec] sm:$0xf]
  %v90 = vld [vmem:[%s0 + $0xf0] sm:$0xf]
  %v91 = vld [vmem:[%s0 + $0xf4] sm:$0xf]
  %v92 = vld [vmem:[%s0 + $0xf8] sm:$0xf]
  %v93 = vld [vmem:[%s0 + $0xfc] sm:$0xf]
  %v94 = vld [vmem:[%s1] sm:$0x3]
  %v159 = vunpack.c.l.b16 %v30
  %v160 = vunpack.c.l.b16 %v31
  %v161 = vunpack.c.l.b16 %v32
  %v162 = vunpack.c.l.b16 %v33
  %v163 = vunpack.c.l.b16 %v34
  %v164 = vunpack.c.l.b16 %v35
  %v165 = vunpack.c.l.b16 %v36
  %v166 = vunpack.c.l.b16 %v37
  %v167 = vunpack.c.l.b16 %v38
  %v168 = vunpack.c.l.b16 %v39
  %v169 = vunpack.c.l.b16 %v40
  %v170 = vunpack.c.l.b16 %v41
  %v171 = vunpack.c.l.b16 %v42
  %v172 = vunpack.c.l.b16 %v43
  %v173 = vunpack.c.l.b16 %v44
  %v174 = vunpack.c.l.b16 %v45
  %v175 = vunpack.c.l.b16 %v46
  %v176 = vunpack.c.l.b16 %v47
  %v177 = vunpack.c.l.b16 %v48
  %v178 = vunpack.c.l.b16 %v49
  %v179 = vunpack.c.l.b16 %v50
  %v180 = vunpack.c.l.b16 %v51
  %v181 = vunpack.c.l.b16 %v52
  %v182 = vunpack.c.l.b16 %v53
  %v183 = vunpack.c.l.b16 %v54
  %v184 = vunpack.c.l.b16 %v55
  %v185 = vunpack.c.l.b16 %v56
  %v186 = vunpack.c.l.b16 %v57
  %v187 = vunpack.c.l.b16 %v58
  %v188 = vunpack.c.l.b16 %v59
  %v189 = vunpack.c.l.b16 %v60
  %v190 = vunpack.c.l.b16 %v61
  %v191 = vunpack.c.l.b16 %v62
  %v192 = vunpack.c.l.b16 %v63
  %v193 = vunpack.c.l.b16 %v64
  %v194 = vunpack.c.l.b16 %v65
  %v195 = vunpack.c.l.b16 %v66
  %v196 = vunpack.c.l.b16 %v67
  %v197 = vunpack.c.l.b16 %v68
  %v198 = vunpack.c.l.b16 %v69
  %v199 = vunpack.c.l.b16 %v70
  %v200 = vunpack.c.l.b16 %v71
  %v201 = vunpack.c.l.b16 %v72
  %v202 = vunpack.c.l.b16 %v73
  %v203 = vunpack.c.l.b16 %v74
  %v204 = vunpack.c.l.b16 %v75
  %v205 = vunpack.c.l.b16 %v76
  %v206 = vunpack.c.l.b16 %v77
  %v207 = vunpack.c.l.b16 %v78
  %v208 = vunpack.c.l.b16 %v79
  %v209 = vunpack.c.l.b16 %v80
  %v210 = vunpack.c.l.b16 %v81
  %v211 = vunpack.c.l.b16 %v82
  %v212 = vunpack.c.l.b16 %v83
  %v213 = vunpack.c.l.b16 %v84
  %v214 = vunpack.c.l.b16 %v85
  %v215 = vunpack.c.l.b16 %v86
  %v216 = vunpack.c.l.b16 %v87
  %v217 = vunpack.c.l.b16 %v88
  %v218 = vunpack.c.l.b16 %v89
  %v219 = vunpack.c.l.b16 %v90
  %v220 = vunpack.c.l.b16 %v91
  %v221 = vunpack.c.l.b16 %v92
  %v222 = vunpack.c.l.b16 %v93
  %v223 = vpack.c.b16 %v160, %v159
  %v224 = vpack.c.b16 %v162, %v161
  %v225 = vpack.c.b16 %v164, %v163
  %v226 = vpack.c.b16 %v166, %v165
  %v227 = vpack.c.b16 %v168, %v167
  %v228 = vpack.c.b16 %v170, %v169
  %v229 = vpack.c.b16 %v172, %v171
  %v230 = vpack.c.b16 %v174, %v173
  %v231 = vpack.c.b16 %v176, %v175
  %v232 = vpack.c.b16 %v178, %v177
  %v233 = vpack.c.b16 %v180, %v179
  %v234 = vpack.c.b16 %v182, %v181
  %v235 = vpack.c.b16 %v184, %v183
  %v236 = vpack.c.b16 %v186, %v185
  %v237 = vpack.c.b16 %v188, %v187
  %v238 = vpack.c.b16 %v190, %v189
  %v239 = vpack.c.b16 %v192, %v191
  %v240 = vpack.c.b16 %v194, %v193
  %v241 = vpack.c.b16 %v196, %v195
  %v242 = vpack.c.b16 %v198, %v197
  %v243 = vpack.c.b16 %v200, %v199
  %v244 = vpack.c.b16 %v202, %v201
  %v245 = vpack.c.b16 %v204, %v203
  %v246 = vpack.c.b16 %v206, %v205
  %v247 = vpack.c.b16 %v208, %v207
  %v248 = vpack.c.b16 %v210, %v209
  %v249 = vpack.c.b16 %v212, %v211
  %v250 = vpack.c.b16 %v214, %v213
  %v251 = vpack.c.b16 %v216, %v215
  %v252 = vpack.c.b16 %v218, %v217
  %v253 = vpack.c.b16 %v220, %v219
  %v254 = vpack.c.b16 %v222, %v221
  %vm255 = vcmask 31744
  %v257 = vsel %vm255, %v223, 0
  %v260 = vsel %vm255, %v224, 0
  %v263 = vsel %vm255, %v225, 0
  %v266 = vsel %vm255, %v226, 0
  %v269 = vsel %vm255, %v227, 0
  %v272 = vsel %vm255, %v228, 0
  %v275 = vsel %vm255, %v229, 0
  %v278 = vsel %vm255, %v230, 0
  %v281 = vsel %vm255, %v231, 0
  %v284 = vsel %vm255, %v232, 0
  %v287 = vsel %vm255, %v233, 0
  %v290 = vsel %vm255, %v234, 0
  %v293 = vsel %vm255, %v235, 0
  %v296 = vsel %vm255, %v236, 0
  %v299 = vsel %vm255, %v237, 0
  %v302 = vsel %vm255, %v238, 0
  %v305 = vsel %vm255, %v239, 0
  %v308 = vsel %vm255, %v240, 0
  %v311 = vsel %vm255, %v241, 0
  %v314 = vsel %vm255, %v242, 0
  %v317 = vsel %vm255, %v243, 0
  %v320 = vsel %vm255, %v244, 0
  %v323 = vsel %vm255, %v245, 0
  %v326 = vsel %vm255, %v246, 0
  %v329 = vsel %vm255, %v247, 0
  %v332 = vsel %vm255, %v248, 0
  %v335 = vsel %vm255, %v249, 0
  %v338 = vsel %vm255, %v250, 0
  %v341 = vsel %vm255, %v251, 0
  %v344 = vsel %vm255, %v252, 0
  %v347 = vsel %vm255, %v253, 0
  %v350 = vsel %vm255, %v254, 0
  %vm352 = vcmask 1041408
  %v354 = vsel %vm352, %v94, 0
  %356 = vmatprep.subr.bf16.mxu0 0
  %357 = vmatpush1.bf16.msra.mxu0 0
  %358 = vmatprep.subr.bf16.mxu0 0
  %359 = vmatpush1.bf16.msra.mxu0 0
  %360 = vmatprep.subr.bf16.mxu0 0
  %361 = vmatpush1.bf16.msra.mxu0 0
  %362 = vmatprep.subr.bf16.mxu0 0
  %363 = vmatpush1.bf16.msra.mxu0 0
  %364 = vmatprep.subr.bf16.mxu0 0
  %365 = vmatpush1.bf16.msra.mxu0 0
  %366 = vmatprep.subr.bf16.mxu0 0
  %367 = vmatpush1.bf16.msra.mxu0 0
  %368 = vmatprep.subr.bf16.mxu0 0
  %369 = vmatpush1.bf16.msra.mxu0 0
  %370 = vmatprep.subr.bf16.mxu0 0
  %371 = vmatpush1.bf16.msra.mxu0 %v354
  %372 = vmatprep.subr.bf16.mxu0 0
  %373 = vmatpush2.bf16.msra.mxu0 0
  %374 = vmatprep.subr.bf16.mxu0 0
  %375 = vmatpush2.bf16.msra.mxu0 0
  %376 = vmatprep.subr.bf16.mxu0 0
  %377 = vmatpush2.bf16.msra.mxu0 0
  %378 = vmatprep.subr.bf16.mxu0 0
  %379 = vmatpush2.bf16.msra.mxu0 0
  %380 = vmatprep.subr.bf16.mxu0 0
  %381 = vmatpush2.bf16.msra.mxu0 0
  %382 = vmatprep.subr.bf16.mxu0 0
  %383 = vmatpush2.bf16.msra.mxu0 0
  %384 = vmatprep.subr.bf16.mxu0 0
  %385 = vmatpush2.bf16.msra.mxu0 0
  %386 = vmatprep.subr.bf16.mxu0 0
  %387 = vmatpush2.bf16.msra.mxu0 0
  %388 = vmatprep.mubr.bf16.mxu0 0
  %389 = vmatmul.mubr.bf16.gmra.mxu0 %v257
  %v390 = vpop.f32.mrf.mxu0
  %v391 = vadd.f32 0.0, %v390
  %v392 = vpop.f32.mrf.mxu0
  %v393 = vpop.f32.mrf.mxu0
  %v394 = vadd.f32 0.0, %v393
  %v395 = vpop.f32.mrf.mxu0
  %396 = vmatprep.mubr.bf16.mxu0 0
  %397 = vmatmul.mubr.bf16.gmra.mxu0 %v260
  %v398 = vpop.f32.mrf.mxu0
  %v399 = vadd.f32 0.0, %v398
  %v400 = vpop.f32.mrf.mxu0
  %v401 = vpop.f32.mrf.mxu0
  %v402 = vadd.f32 0.0, %v401
  %v403 = vpop.f32.mrf.mxu0
  %404 = vmatprep.mubr.bf16.mxu0 0
  %405 = vmatmul.mubr.bf16.gmra.mxu0 %v263
  %v406 = vpop.f32.mrf.mxu0
  %v407 = vadd.f32 0.0, %v406
  %v408 = vpop.f32.mrf.mxu0
  %v409 = vpop.f32.mrf.mxu0
  %v410 = vadd.f32 0.0, %v409
  %v411 = vpop.f32.mrf.mxu0
  %412 = vmatprep.mubr.bf16.mxu0 0
  %413 = vmatmul.mubr.bf16.gmra.mxu0 %v266
  %v414 = vpop.f32.mrf.mxu0
  %v415 = vadd.f32 0.0, %v414
  %v416 = vpop.f32.mrf.mxu0
  %v417 = vpop.f32.mrf.mxu0
  %v418 = vadd.f32 0.0, %v417
  %v419 = vpop.f32.mrf.mxu0
  %420 = vmatprep.mubr.bf16.mxu0 0
  %421 = vmatmul.mubr.bf16.gmra.mxu0 %v269
  %v422 = vpop.f32.mrf.mxu0
  %v423 = vadd.f32 0.0, %v422
  %v424 = vpop.f32.mrf.mxu0
  %v425 = vpop.f32.mrf.mxu0
  %v426 = vadd.f32 0.0, %v425
  %v427 = vpop.f32.mrf.mxu0
  %428 = vmatprep.mubr.bf16.mxu0 0
  %429 = vmatmul.mubr.bf16.gmra.mxu0 %v272
  %v430 = vpop.f32.mrf.mxu0
  %v431 = vadd.f32 0.0, %v430
  %v432 = vpop.f32.mrf.mxu0
  %v433 = vpop.f32.mrf.mxu0
  %v434 = vadd.f32 0.0, %v433
  %v435 = vpop.f32.mrf.mxu0
  %436 = vmatprep.mubr.bf16.mxu0 0
  %437 = vmatmul.mubr.bf16.gmra.mxu0 %v275
  %v438 = vpop.f32.mrf.mxu0
  %v439 = vadd.f32 0.0, %v438
  %v440 = vpop.f32.mrf.mxu0
  %v441 = vpop.f32.mrf.mxu0
  %v442 = vadd.f32 0.0, %v441
  %v443 = vpop.f32.mrf.mxu0
  %444 = vmatprep.mubr.bf16.mxu0 0
  %445 = vmatmul.mubr.bf16.gmra.mxu0 %v278
  %v446 = vpop.f32.mrf.mxu0
  %v447 = vadd.f32 0.0, %v446
  %v448 = vpop.f32.mrf.mxu0
  %v449 = vpop.f32.mrf.mxu0
  %v450 = vadd.f32 0.0, %v449
  %v451 = vpop.f32.mrf.mxu0
  %452 = vmatprep.mubr.bf16.mxu0 0
  %453 = vmatmul.mubr.bf16.gmra.mxu0 %v281
  %v454 = vpop.f32.mrf.mxu0
  %v455 = vadd.f32 0.0, %v454
  %v456 = vpop.f32.mrf.mxu0
  %v457 = vpop.f32.mrf.mxu0
  %v458 = vadd.f32 0.0, %v457
  %v459 = vpop.f32.mrf.mxu0
  %460 = vmatprep.mubr.bf16.mxu0 0
  %461 = vmatmul.mubr.bf16.gmra.mxu0 %v284
  %v462 = vpop.f32.mrf.mxu0
  %v463 = vadd.f32 0.0, %v462
  %v464 = vpop.f32.mrf.mxu0
  %v465 = vpop.f32.mrf.mxu0
  %v466 = vadd.f32 0.0, %v465
  %v467 = vpop.f32.mrf.mxu0
  %468 = vmatprep.mubr.bf16.mxu0 0
  %469 = vmatmul.mubr.bf16.gmra.mxu0 %v287
  %v470 = vpop.f32.mrf.mxu0
  %v471 = vadd.f32 0.0, %v470
  %v472 = vpop.f32.mrf.mxu0
  %v473 = vpop.f32.mrf.mxu0
  %v474 = vadd.f32 0.0, %v473
  %v475 = vpop.f32.mrf.mxu0
  %476 = vmatprep.mubr.bf16.mxu0 0
  %477 = vmatmul.mubr.bf16.gmra.mxu0 %v290
  %v478 = vpop.f32.mrf.mxu0
  %v479 = vadd.f32 0.0, %v478
  %v480 = vpop.f32.mrf.mxu0
  %v481 = vpop.f32.mrf.mxu0
  %v482 = vadd.f32 0.0, %v481
  %v483 = vpop.f32.mrf.mxu0
  %484 = vmatprep.mubr.bf16.mxu0 0
  %485 = vmatmul.mubr.bf16.gmra.mxu0 %v293
  %v486 = vpop.f32.mrf.mxu0
  %v487 = vadd.f32 0.0, %v486
  %v488 = vpop.f32.mrf.mxu0
  %v489 = vpop.f32.mrf.mxu0
  %v490 = vadd.f32 0.0, %v489
  %v491 = vpop.f32.mrf.mxu0
  %492 = vmatprep.mubr.bf16.mxu0 0
  %493 = vmatmul.mubr.bf16.gmra.mxu0 %v296
  %v494 = vpop.f32.mrf.mxu0
  %v495 = vadd.f32 0.0, %v494
  %v496 = vpop.f32.mrf.mxu0
  %v497 = vpop.f32.mrf.mxu0
  %v498 = vadd.f32 0.0, %v497
  %v499 = vpop.f32.mrf.mxu0
  %500 = vmatprep.mubr.bf16.mxu0 0
  %501 = vmatmul.mubr.bf16.gmra.mxu0 %v299
  %v502 = vpop.f32.mrf.mxu0
  %v503 = vadd.f32 0.0, %v502
  %v504 = vpop.f32.mrf.mxu0
  %v505 = vpop.f32.mrf.mxu0
  %v506 = vadd.f32 0.0, %v505
  %v507 = vpop.f32.mrf.mxu0
  %508 = vmatprep.mubr.bf16.mxu0 0
  %509 = vmatmul.mubr.bf16.gmra.mxu0 %v302
  %v510 = vpop.f32.mrf.mxu0
  %v511 = vadd.f32 0.0, %v510
  %v512 = vpop.f32.mrf.mxu0
  %v513 = vpop.f32.mrf.mxu0
  %v514 = vadd.f32 0.0, %v513
  %v515 = vpop.f32.mrf.mxu0
  %516 = vmatprep.mubr.bf16.mxu0 0
  %517 = vmatmul.mubr.bf16.gmra.mxu0 %v305
  %v518 = vpop.f32.mrf.mxu0
  %v519 = vadd.f32 0.0, %v518
  %v520 = vpop.f32.mrf.mxu0
  %v521 = vpop.f32.mrf.mxu0
  %v522 = vadd.f32 0.0, %v521
  %v523 = vpop.f32.mrf.mxu0
  %524 = vmatprep.mubr.bf16.mxu0 0
  %525 = vmatmul.mubr.bf16.gmra.mxu0 %v308
  %v526 = vpop.f32.mrf.mxu0
  %v527 = vadd.f32 0.0, %v526
  %v528 = vpop.f32.mrf.mxu0
  %v529 = vpop.f32.mrf.mxu0
  %v530 = vadd.f32 0.0, %v529
  %v531 = vpop.f32.mrf.mxu0
  %532 = vmatprep.mubr.bf16.mxu0 0
  %533 = vmatmul.mubr.bf16.gmra.mxu0 %v311
  %v534 = vpop.f32.mrf.mxu0
  %v535 = vadd.f32 0.0, %v534
  %v536 = vpop.f32.mrf.mxu0
  %v537 = vpop.f32.mrf.mxu0
  %v538 = vadd.f32 0.0, %v537
  %v539 = vpop.f32.mrf.mxu0
  %540 = vmatprep.mubr.bf16.mxu0 0
  %541 = vmatmul.mubr.bf16.gmra.mxu0 %v314
  %v542 = vpop.f32.mrf.mxu0
  %v543 = vadd.f32 0.0, %v542
  %v544 = vpop.f32.mrf.mxu0
  %v545 = vpop.f32.mrf.mxu0
  %v546 = vadd.f32 0.0, %v545
  %v547 = vpop.f32.mrf.mxu0
  %548 = vmatprep.mubr.bf16.mxu0 0
  %549 = vmatmul.mubr.bf16.gmra.mxu0 %v317
  %v550 = vpop.f32.mrf.mxu0
  %v551 = vadd.f32 0.0, %v550
  %v552 = vpop.f32.mrf.mxu0
  %v553 = vpop.f32.mrf.mxu0
  %v554 = vadd.f32 0.0, %v553
  %v555 = vpop.f32.mrf.mxu0
  %556 = vmatprep.mubr.bf16.mxu0 0
  %557 = vmatmul.mubr.bf16.gmra.mxu0 %v320
  %v558 = vpop.f32.mrf.mxu0
  %v559 = vadd.f32 0.0, %v558
  %v560 = vpop.f32.mrf.mxu0
  %v561 = vpop.f32.mrf.mxu0
  %v562 = vadd.f32 0.0, %v561
  %v563 = vpop.f32.mrf.mxu0
  %564 = vmatprep.mubr.bf16.mxu0 0
  %565 = vmatmul.mubr.bf16.gmra.mxu0 %v323
  %v566 = vpop.f32.mrf.mxu0
  %v567 = vadd.f32 0.0, %v566
  %v568 = vpop.f32.mrf.mxu0
  %v569 = vpop.f32.mrf.mxu0
  %v570 = vadd.f32 0.0, %v569
  %v571 = vpop.f32.mrf.mxu0
  %572 = vmatprep.mubr.bf16.mxu0 0
  %573 = vmatmul.mubr.bf16.gmra.mxu0 %v326
  %v574 = vpop.f32.mrf.mxu0
  %v575 = vadd.f32 0.0, %v574
  %v576 = vpop.f32.mrf.mxu0
  %v577 = vpop.f32.mrf.mxu0
  %v578 = vadd.f32 0.0, %v577
  %v579 = vpop.f32.mrf.mxu0
  %580 = vmatprep.mubr.bf16.mxu0 0
  %581 = vmatmul.mubr.bf16.gmra.mxu0 %v329
  %v582 = vpop.f32.mrf.mxu0
  %v583 = vadd.f32 0.0, %v582
  %v584 = vpop.f32.mrf.mxu0
  %v585 = vpop.f32.mrf.mxu0
  %v586 = vadd.f32 0.0, %v585
  %v587 = vpop.f32.mrf.mxu0
  %588 = vmatprep.mubr.bf16.mxu0 0
  %589 = vmatmul.mubr.bf16.gmra.mxu0 %v332
  %v590 = vpop.f32.mrf.mxu0
  %v591 = vadd.f32 0.0, %v590
  %v592 = vpop.f32.mrf.mxu0
  %v593 = vpop.f32.mrf.mxu0
  %v594 = vadd.f32 0.0, %v593
  %v595 = vpop.f32.mrf.mxu0
  %596 = vmatprep.mubr.bf16.mxu0 0
  %597 = vmatmul.mubr.bf16.gmra.mxu0 %v335
  %v598 = vpop.f32.mrf.mxu0
  %v599 = vadd.f32 0.0, %v598
  %v600 = vpop.f32.mrf.mxu0
  %v601 = vpop.f32.mrf.mxu0
  %v602 = vadd.f32 0.0, %v601
  %v603 = vpop.f32.mrf.mxu0
  %604 = vmatprep.mubr.bf16.mxu0 0
  %605 = vmatmul.mubr.bf16.gmra.mxu0 %v338
  %v606 = vpop.f32.mrf.mxu0
  %v607 = vadd.f32 0.0, %v606
  %v608 = vpop.f32.mrf.mxu0
  %v609 = vpop.f32.mrf.mxu0
  %v610 = vadd.f32 0.0, %v609
  %v611 = vpop.f32.mrf.mxu0
  %612 = vmatprep.mubr.bf16.mxu0 0
  %613 = vmatmul.mubr.bf16.gmra.mxu0 %v341
  %v614 = vpop.f32.mrf.mxu0
  %v615 = vadd.f32 0.0, %v614
  %v616 = vpop.f32.mrf.mxu0
  %v617 = vpop.f32.mrf.mxu0
  %v618 = vadd.f32 0.0, %v617
  %v619 = vpop.f32.mrf.mxu0
  %620 = vmatprep.mubr.bf16.mxu0 0
  %621 = vmatmul.mubr.bf16.gmra.mxu0 %v344
  %v622 = vpop.f32.mrf.mxu0
  %v623 = vadd.f32 0.0, %v622
  %v624 = vpop.f32.mrf.mxu0
  %v625 = vpop.f32.mrf.mxu0
  %v626 = vadd.f32 0.0, %v625
  %v627 = vpop.f32.mrf.mxu0
  %628 = vmatprep.mubr.bf16.mxu0 0
  %629 = vmatmul.mubr.bf16.gmra.mxu0 %v347
  %v630 = vpop.f32.mrf.mxu0
  %v631 = vadd.f32 0.0, %v630
  %v632 = vpop.f32.mrf.mxu0
  %v633 = vpop.f32.mrf.mxu0
  %v634 = vadd.f32 0.0, %v633
  %v635 = vpop.f32.mrf.mxu0
  %636 = vmatprep.mubr.bf16.mxu0 0
  %637 = vmatmul.mubr.bf16.gmra.mxu0 %v350
  %v638 = vpop.f32.mrf.mxu0
  %v639 = vadd.f32 0.0, %v638
  %v640 = vpop.f32.mrf.mxu0
  %v641 = vpop.f32.mrf.mxu0
  %v642 = vadd.f32 0.0, %v641
  %v643 = vpop.f32.mrf.mxu0
  %644 = vdwg.mxu0
  %v645 = vld [vmem:[%s2] sm:$0x1]
  %v647 = vlaneseq
  %v648 = vshrl.u32 %v647, 7
  %v649 = vsub.s32 0, %v648
  %v650 = vrot.slane %v645, %v649
  %v652 = vmul.f32 %v391, %v650
  %v653 = vmul.f32 %v394, %v650
  %v654 = vmul.f32 %v399, %v650
  %v655 = vmul.f32 %v402, %v650
  %v656 = vmul.f32 %v407, %v650
  %v657 = vmul.f32 %v410, %v650
  %v658 = vmul.f32 %v415, %v650
  %v659 = vmul.f32 %v418, %v650
  %v660 = vmul.f32 %v423, %v650
  %v661 = vmul.f32 %v426, %v650
  %v662 = vmul.f32 %v431, %v650
  %v663 = vmul.f32 %v434, %v650
  %v664 = vmul.f32 %v439, %v650
  %v665 = vmul.f32 %v442, %v650
  %v666 = vmul.f32 %v447, %v650
  %v667 = vmul.f32 %v450, %v650
  %v668 = vmul.f32 %v455, %v650
  %v669 = vmul.f32 %v458, %v650
  %v670 = vmul.f32 %v463, %v650
  %v671 = vmul.f32 %v466, %v650
  %v672 = vmul.f32 %v471, %v650
  %v673 = vmul.f32 %v474, %v650
  %v674 = vmul.f32 %v479, %v650
  %v675 = vmul.f32 %v482, %v650
  %v676 = vmul.f32 %v487, %v650
  %v677 = vmul.f32 %v490, %v650
  %v678 = vmul.f32 %v495, %v650
  %v679 = vmul.f32 %v498, %v650
  %v680 = vmul.f32 %v503, %v650
  %v681 = vmul.f32 %v506, %v650
  %v682 = vmul.f32 %v511, %v650
  %v683 = vmul.f32 %v514, %v650
  %v684 = vmul.f32 %v519, %v650
  %v685 = vmul.f32 %v522, %v650
  %v686 = vmul.f32 %v527, %v650
  %v687 = vmul.f32 %v530, %v650
  %v688 = vmul.f32 %v535, %v650
  %v689 = vmul.f32 %v538, %v650
  %v690 = vmul.f32 %v543, %v650
  %v691 = vmul.f32 %v546, %v650
  %v692 = vmul.f32 %v551, %v650
  %v693 = vmul.f32 %v554, %v650
  %v694 = vmul.f32 %v559, %v650
  %v695 = vmul.f32 %v562, %v650
  %v696 = vmul.f32 %v567, %v650
  %v697 = vmul.f32 %v570, %v650
  %v698 = vmul.f32 %v575, %v650
  %v699 = vmul.f32 %v578, %v650
  %v700 = vmul.f32 %v583, %v650
  %v701 = vmul.f32 %v586, %v650
  %v702 = vmul.f32 %v591, %v650
  %v703 = vmul.f32 %v594, %v650
  %v704 = vmul.f32 %v599, %v650
  %v705 = vmul.f32 %v602, %v650
  %v706 = vmul.f32 %v607, %v650
  %v707 = vmul.f32 %v610, %v650
  %v708 = vmul.f32 %v615, %v650
  %v709 = vmul.f32 %v618, %v650
  %v710 = vmul.f32 %v623, %v650
  %v711 = vmul.f32 %v626, %v650
  %v712 = vmul.f32 %v631, %v650
  %v713 = vmul.f32 %v634, %v650
  %v714 = vmul.f32 %v639, %v650
  %v715 = vmul.f32 %v642, %v650
  %v716 = vld [vmem:[%s3] sm:$0x1]
  %v718 = vlaneseq
  %v719 = vshrl.u32 %v718, 7
  %v720 = vsub.s32 0, %v719
  %v721 = vrot.slane %v716, %v720
  %v723 = vadd.f32 %v652, %v721
  %v724 = vadd.f32 %v653, %v721
  %v725 = vadd.f32 %v654, %v721
  %v726 = vadd.f32 %v655, %v721
  %v727 = vadd.f32 %v656, %v721
  %v728 = vadd.f32 %v657, %v721
  %v729 = vadd.f32 %v658, %v721
  %v730 = vadd.f32 %v659, %v721
  %v731 = vadd.f32 %v660, %v721
  %v732 = vadd.f32 %v661, %v721
  %v733 = vadd.f32 %v662, %v721
  %v734 = vadd.f32 %v663, %v721
  %v735 = vadd.f32 %v664, %v721
  %v736 = vadd.f32 %v665, %v721
  %v737 = vadd.f32 %v666, %v721
  %v738 = vadd.f32 %v667, %v721
  %v739 = vadd.f32 %v668, %v721
  %v740 = vadd.f32 %v669, %v721
  %v741 = vadd.f32 %v670, %v721
  %v742 = vadd.f32 %v671, %v721
  %v743 = vadd.f32 %v672, %v721
  %v744 = vadd.f32 %v673, %v721
  %v745 = vadd.f32 %v674, %v721
  %v746 = vadd.f32 %v675, %v721
  %v747 = vadd.f32 %v676, %v721
  %v748 = vadd.f32 %v677, %v721
  %v749 = vadd.f32 %v678, %v721
  %v750 = vadd.f32 %v679, %v721
  %v751 = vadd.f32 %v680, %v721
  %v752 = vadd.f32 %v681, %v721
  %v753 = vadd.f32 %v682, %v721
  %v754 = vadd.f32 %v683, %v721
  %v755 = vadd.f32 %v684, %v721
  %v756 = vadd.f32 %v685, %v721
  %v757 = vadd.f32 %v686, %v721
  %v758 = vadd.f32 %v687, %v721
  %v759 = vadd.f32 %v688, %v721
  %v760 = vadd.f32 %v689, %v721
  %v761 = vadd.f32 %v690, %v721
  %v762 = vadd.f32 %v691, %v721
  %v763 = vadd.f32 %v692, %v721
  %v764 = vadd.f32 %v693, %v721
  %v765 = vadd.f32 %v694, %v721
  %v766 = vadd.f32 %v695, %v721
  %v767 = vadd.f32 %v696, %v721
  %v768 = vadd.f32 %v697, %v721
  %v769 = vadd.f32 %v698, %v721
  %v770 = vadd.f32 %v699, %v721
  %v771 = vadd.f32 %v700, %v721
  %v772 = vadd.f32 %v701, %v721
  %v773 = vadd.f32 %v702, %v721
  %v774 = vadd.f32 %v703, %v721
  %v775 = vadd.f32 %v704, %v721
  %v776 = vadd.f32 %v705, %v721
  %v777 = vadd.f32 %v706, %v721
  %v778 = vadd.f32 %v707, %v721
  %v779 = vadd.f32 %v708, %v721
  %v780 = vadd.f32 %v709, %v721
  %v781 = vadd.f32 %v710, %v721
  %v782 = vadd.f32 %v711, %v721
  %v783 = vadd.f32 %v712, %v721
  %v784 = vadd.f32 %v713, %v721
  %v785 = vadd.f32 %v714, %v721
  %v786 = vadd.f32 %v715, %v721
  %v787 = vld [vmem:[%s4] sm:$0xf]
  %v788 = vld [vmem:[%s4 + $0x4] sm:$0xf]
  %v789 = vld [vmem:[%s4 + $0x8] sm:$0xf]
  %v790 = vld [vmem:[%s4 + $0xc] sm:$0xf]
  %v791 = vld [vmem:[%s4 + $0x10] sm:$0xf]
  %v792 = vld [vmem:[%s4 + $0x14] sm:$0xf]
  %v793 = vld [vmem:[%s4 + $0x18] sm:$0xf]
  %v794 = vld [vmem:[%s4 + $0x1c] sm:$0xf]
  %v795 = vld [vmem:[%s4 + $0x20] sm:$0xf]
  %v796 = vld [vmem:[%s4 + $0x24] sm:$0xf]
  %v797 = vld [vmem:[%s4 + $0x28] sm:$0xf]
  %v798 = vld [vmem:[%s4 + $0x2c] sm:$0xf]
  %v799 = vld [vmem:[%s4 + $0x30] sm:$0xf]
  %v800 = vld [vmem:[%s4 + $0x34] sm:$0xf]
  %v801 = vld [vmem:[%s4 + $0x38] sm:$0xf]
  %v802 = vld [vmem:[%s4 + $0x3c] sm:$0xf]
  %v803 = vld [vmem:[%s4 + $0x40] sm:$0xf]
  %v804 = vld [vmem:[%s4 + $0x44] sm:$0xf]
  %v805 = vld [vmem:[%s4 + $0x48] sm:$0xf]
  %v806 = vld [vmem:[%s4 + $0x4c] sm:$0xf]
  %v807 = vld [vmem:[%s4 + $0x50] sm:$0xf]
  %v808 = vld [vmem:[%s4 + $0x54] sm:$0xf]
  %v809 = vld [vmem:[%s4 + $0x58] sm:$0xf]
  %v810 = vld [vmem:[%s4 + $0x5c] sm:$0xf]
  %v811 = vld [vmem:[%s4 + $0x60] sm:$0xf]
  %v812 = vld [vmem:[%s4 + $0x64] sm:$0xf]
  %v813 = vld [vmem:[%s4 + $0x68] sm:$0xf]
  %v814 = vld [vmem:[%s4 + $0x6c] sm:$0xf]
  %v815 = vld [vmem:[%s4 + $0x70] sm:$0xf]
  %v816 = vld [vmem:[%s4 + $0x74] sm:$0xf]
  %v817 = vld [vmem:[%s4 + $0x78] sm:$0xf]
  %v818 = vld [vmem:[%s4 + $0x7c] sm:$0xf]
  %v819 = vld [vmem:[%s4 + $0x80] sm:$0xf]
  %v820 = vld [vmem:[%s4 + $0x84] sm:$0xf]
  %v821 = vld [vmem:[%s4 + $0x88] sm:$0xf]
  %v822 = vld [vmem:[%s4 + $0x8c] sm:$0xf]
  %v823 = vld [vmem:[%s4 + $0x90] sm:$0xf]
  %v824 = vld [vmem:[%s4 + $0x94] sm:$0xf]
  %v825 = vld [vmem:[%s4 + $0x98] sm:$0xf]
  %v826 = vld [vmem:[%s4 + $0x9c] sm:$0xf]
  %v827 = vld [vmem:[%s4 + $0xa0] sm:$0xf]
  %v828 = vld [vmem:[%s4 + $0xa4] sm:$0xf]
  %v829 = vld [vmem:[%s4 + $0xa8] sm:$0xf]
  %v830 = vld [vmem:[%s4 + $0xac] sm:$0xf]
  %v831 = vld [vmem:[%s4 + $0xb0] sm:$0xf]
  %v832 = vld [vmem:[%s4 + $0xb4] sm:$0xf]
  %v833 = vld [vmem:[%s4 + $0xb8] sm:$0xf]
  %v834 = vld [vmem:[%s4 + $0xbc] sm:$0xf]
  %v835 = vld [vmem:[%s4 + $0xc0] sm:$0xf]
  %v836 = vld [vmem:[%s4 + $0xc4] sm:$0xf]
  %v837 = vld [vmem:[%s4 + $0xc8] sm:$0xf]
  %v838 = vld [vmem:[%s4 + $0xcc] sm:$0xf]
  %v839 = vld [vmem:[%s4 + $0xd0] sm:$0xf]
  %v840 = vld [vmem:[%s4 + $0xd4] sm:$0xf]
  %v841 = vld [vmem:[%s4 + $0xd8] sm:$0xf]
  %v842 = vld [vmem:[%s4 + $0xdc] sm:$0xf]
  %v843 = vld [vmem:[%s4 + $0xe0] sm:$0xf]
  %v844 = vld [vmem:[%s4 + $0xe4] sm:$0xf]
  %v845 = vld [vmem:[%s4 + $0xe8] sm:$0xf]
  %v846 = vld [vmem:[%s4 + $0xec] sm:$0xf]
  %v847 = vld [vmem:[%s4 + $0xf0] sm:$0xf]
  %v848 = vld [vmem:[%s4 + $0xf4] sm:$0xf]
  %v849 = vld [vmem:[%s4 + $0xf8] sm:$0xf]
  %v850 = vld [vmem:[%s4 + $0xfc] sm:$0xf]
  %v851 = vld [vmem:[%s5] sm:$0x3]
  %v916 = vunpack.c.l.b16 %v787
  %v917 = vunpack.c.l.b16 %v788
  %v918 = vunpack.c.l.b16 %v789
  %v919 = vunpack.c.l.b16 %v790
  %v920 = vunpack.c.l.b16 %v791
  %v921 = vunpack.c.l.b16 %v792
  %v922 = vunpack.c.l.b16 %v793
  %v923 = vunpack.c.l.b16 %v794
  %v924 = vunpack.c.l.b16 %v795
  %v925 = vunpack.c.l.b16 %v796
  %v926 = vunpack.c.l.b16 %v797
  %v927 = vunpack.c.l.b16 %v798
  %v928 = vunpack.c.l.b16 %v799
  %v929 = vunpack.c.l.b16 %v800
  %v930 = vunpack.c.l.b16 %v801
  %v931 = vunpack.c.l.b16 %v802
  %v932 = vunpack.c.l.b16 %v803
  %v933 = vunpack.c.l.b16 %v804
  %v934 = vunpack.c.l.b16 %v805
  %v935 = vunpack.c.l.b16 %v806
  %v936 = vunpack.c.l.b16 %v807
  %v937 = vunpack.c.l.b16 %v808
  %v938 = vunpack.c.l.b16 %v809
  %v939 = vunpack.c.l.b16 %v810
  %v940 = vunpack.c.l.b16 %v811
  %v941 = vunpack.c.l.b16 %v812
  %v942 = vunpack.c.l.b16 %v813
  %v943 = vunpack.c.l.b16 %v814
  %v944 = vunpack.c.l.b16 %v815
  %v945 = vunpack.c.l.b16 %v816
  %v946 = vunpack.c.l.b16 %v817
  %v947 = vunpack.c.l.b16 %v818
  %v948 = vunpack.c.l.b16 %v819
  %v949 = vunpack.c.l.b16 %v820
  %v950 = vunpack.c.l.b16 %v821
  %v951 = vunpack.c.l.b16 %v822
  %v952 = vunpack.c.l.b16 %v823
  %v953 = vunpack.c.l.b16 %v824
  %v954 = vunpack.c.l.b16 %v825
  %v955 = vunpack.c.l.b16 %v826
  %v956 = vunpack.c.l.b16 %v827
  %v957 = vunpack.c.l.b16 %v828
  %v958 = vunpack.c.l.b16 %v829
  %v959 = vunpack.c.l.b16 %v830
  %v960 = vunpack.c.l.b16 %v831
  %v961 = vunpack.c.l.b16 %v832
  %v962 = vunpack.c.l.b16 %v833
  %v963 = vunpack.c.l.b16 %v834
  %v964 = vunpack.c.l.b16 %v835
  %v965 = vunpack.c.l.b16 %v836
  %v966 = vunpack.c.l.b16 %v837
  %v967 = vunpack.c.l.b16 %v838
  %v968 = vunpack.c.l.b16 %v839
  %v969 = vunpack.c.l.b16 %v840
  %v970 = vunpack.c.l.b16 %v841
  %v971 = vunpack.c.l.b16 %v842
  %v972 = vunpack.c.l.b16 %v843
  %v973 = vunpack.c.l.b16 %v844
  %v974 = vunpack.c.l.b16 %v845
  %v975 = vunpack.c.l.b16 %v846
  %v976 = vunpack.c.l.b16 %v847
  %v977 = vunpack.c.l.b16 %v848
  %v978 = vunpack.c.l.b16 %v849
  %v979 = vunpack.c.l.b16 %v850
  %v980 = vpack.c.b16 %v917, %v916
  %v981 = vpack.c.b16 %v919, %v918
  %v982 = vpack.c.b16 %v921, %v920
  %v983 = vpack.c.b16 %v923, %v922
  %v984 = vpack.c.b16 %v925, %v924
  %v985 = vpack.c.b16 %v927, %v926
  %v986 = vpack.c.b16 %v929, %v928
  %v987 = vpack.c.b16 %v931, %v930
  %v988 = vpack.c.b16 %v933, %v932
  %v989 = vpack.c.b16 %v935, %v934
  %v990 = vpack.c.b16 %v937, %v936
  %v991 = vpack.c.b16 %v939, %v938
  %v992 = vpack.c.b16 %v941, %v940
  %v993 = vpack.c.b16 %v943, %v942
  %v994 = vpack.c.b16 %v945, %v944
  %v995 = vpack.c.b16 %v947, %v946
  %v996 = vpack.c.b16 %v949, %v948
  %v997 = vpack.c.b16 %v951, %v950
  %v998 = vpack.c.b16 %v953, %v952
  %v999 = vpack.c.b16 %v955, %v954
  %v1000 = vpack.c.b16 %v957, %v956
  %v1001 = vpack.c.b16 %v959, %v958
  %v1002 = vpack.c.b16 %v961, %v960
  %v1003 = vpack.c.b16 %v963, %v962
  %v1004 = vpack.c.b16 %v965, %v964
  %v1005 = vpack.c.b16 %v967, %v966
  %v1006 = vpack.c.b16 %v969, %v968
  %v1007 = vpack.c.b16 %v971, %v970
  %v1008 = vpack.c.b16 %v973, %v972
  %v1009 = vpack.c.b16 %v975, %v974
  %v1010 = vpack.c.b16 %v977, %v976
  %v1011 = vpack.c.b16 %v979, %v978
  %v1013 = vsel %vm255, %v980, 0
  %v1016 = vsel %vm255, %v981, 0
  %v1019 = vsel %vm255, %v982, 0
  %v1022 = vsel %vm255, %v983, 0
  %v1025 = vsel %vm255, %v984, 0
  %v1028 = vsel %vm255, %v985, 0
  %v1031 = vsel %vm255, %v986, 0
  %v1034 = vsel %vm255, %v987, 0
  %v1037 = vsel %vm255, %v988, 0
  %v1040 = vsel %vm255, %v989, 0
  %v1043 = vsel %vm255, %v990, 0
  %v1046 = vsel %vm255, %v991, 0
  %v1049 = vsel %vm255, %v992, 0
  %v1052 = vsel %vm255, %v993, 0
  %v1055 = vsel %vm255, %v994, 0
  %v1058 = vsel %vm255, %v995, 0
  %v1061 = vsel %vm255, %v996, 0
  %v1064 = vsel %vm255, %v997, 0
  %v1067 = vsel %vm255, %v998, 0
  %v1070 = vsel %vm255, %v999, 0
  %v1073 = vsel %vm255, %v1000, 0
  %v1076 = vsel %vm255, %v1001, 0
  %v1079 = vsel %vm255, %v1002, 0
  %v1082 = vsel %vm255, %v1003, 0
  %v1085 = vsel %vm255, %v1004, 0
  %v1088 = vsel %vm255, %v1005, 0
  %v1091 = vsel %vm255, %v1006, 0
  %v1094 = vsel %vm255, %v1007, 0
  %v1097 = vsel %vm255, %v1008, 0
  %v1100 = vsel %vm255, %v1009, 0
  %v1103 = vsel %vm255, %v1010, 0
  %v1106 = vsel %vm255, %v1011, 0
  %v1109 = vsel %vm352, %v851, 0
  %1111 = vmatprep.subr.bf16.mxu0 0
  %1112 = vmatpush1.bf16.msra.mxu0 0
  %1113 = vmatprep.subr.bf16.mxu0 0
  %1114 = vmatpush1.bf16.msra.mxu0 0
  %1115 = vmatprep.subr.bf16.mxu0 0
  %1116 = vmatpush1.bf16.msra.mxu0 0
  %1117 = vmatprep.subr.bf16.mxu0 0
  %1118 = vmatpush1.bf16.msra.mxu0 0
  %1119 = vmatprep.subr.bf16.mxu0 0
  %1120 = vmatpush1.bf16.msra.mxu0 0
  %1121 = vmatprep.subr.bf16.mxu0 0
  %1122 = vmatpush1.bf16.msra.mxu0 0
  %1123 = vmatprep.subr.bf16.mxu0 0
  %1124 = vmatpush1.bf16.msra.mxu0 0
  %1125 = vmatprep.subr.bf16.mxu0 0
  %1126 = vmatpush1.bf16.msra.mxu0 %v1109
  %1127 = vmatprep.subr.bf16.mxu0 0
  %1128 = vmatpush2.bf16.msra.mxu0 0
  %1129 = vmatprep.subr.bf16.mxu0 0
  %1130 = vmatpush2.bf16.msra.mxu0 0
  %1131 = vmatprep.subr.bf16.mxu0 0
  %1132 = vmatpush2.bf16.msra.mxu0 0
  %1133 = vmatprep.subr.bf16.mxu0 0
  %1134 = vmatpush2.bf16.msra.mxu0 0
  %1135 = vmatprep.subr.bf16.mxu0 0
  %1136 = vmatpush2.bf16.msra.mxu0 0
  %1137 = vmatprep.subr.bf16.mxu0 0
  %1138 = vmatpush2.bf16.msra.mxu0 0
  %1139 = vmatprep.subr.bf16.mxu0 0
  %1140 = vmatpush2.bf16.msra.mxu0 0
  %1141 = vmatprep.subr.bf16.mxu0 0
  %1142 = vmatpush2.bf16.msra.mxu0 0
  %1143 = vmatprep.mubr.bf16.mxu0 0
  %1144 = vmatmul.mubr.bf16.gmra.mxu0 %v1013
  %v1145 = vpop.f32.mrf.mxu0
  %v1146 = vadd.f32 0.0, %v1145
  %v1147 = vpop.f32.mrf.mxu0
  %v1148 = vpop.f32.mrf.mxu0
  %v1149 = vadd.f32 0.0, %v1148
  %v1150 = vpop.f32.mrf.mxu0
  %1151 = vmatprep.mubr.bf16.mxu0 0
  %1152 = vmatmul.mubr.bf16.gmra.mxu0 %v1016
  %v1153 = vpop.f32.mrf.mxu0
  %v1154 = vadd.f32 0.0, %v1153
  %v1155 = vpop.f32.mrf.mxu0
  %v1156 = vpop.f32.mrf.mxu0
  %v1157 = vadd.f32 0.0, %v1156
  %v1158 = vpop.f32.mrf.mxu0
  %1159 = vmatprep.mubr.bf16.mxu0 0
  %1160 = vmatmul.mubr.bf16.gmra.mxu0 %v1019
  %v1161 = vpop.f32.mrf.mxu0
  %v1162 = vadd.f32 0.0, %v1161
  %v1163 = vpop.f32.mrf.mxu0
  %v1164 = vpop.f32.mrf.mxu0
  %v1165 = vadd.f32 0.0, %v1164
  %v1166 = vpop.f32.mrf.mxu0
  %1167 = vmatprep.mubr.bf16.mxu0 0
  %1168 = vmatmul.mubr.bf16.gmra.mxu0 %v1022
  %v1169 = vpop.f32.mrf.mxu0
  %v1170 = vadd.f32 0.0, %v1169
  %v1171 = vpop.f32.mrf.mxu0
  %v1172 = vpop.f32.mrf.mxu0
  %v1173 = vadd.f32 0.0, %v1172
  %v1174 = vpop.f32.mrf.mxu0
  %1175 = vmatprep.mubr.bf16.mxu0 0
  %1176 = vmatmul.mubr.bf16.gmra.mxu0 %v1025
  %v1177 = vpop.f32.mrf.mxu0
  %v1178 = vadd.f32 0.0, %v1177
  %v1179 = vpop.f32.mrf.mxu0
  %v1180 = vpop.f32.mrf.mxu0
  %v1181 = vadd.f32 0.0, %v1180
  %v1182 = vpop.f32.mrf.mxu0
  %1183 = vmatprep.mubr.bf16.mxu0 0
  %1184 = vmatmul.mubr.bf16.gmra.mxu0 %v1028
  %v1185 = vpop.f32.mrf.mxu0
  %v1186 = vadd.f32 0.0, %v1185
  %v1187 = vpop.f32.mrf.mxu0
  %v1188 = vpop.f32.mrf.mxu0
  %v1189 = vadd.f32 0.0, %v1188
  %v1190 = vpop.f32.mrf.mxu0
  %1191 = vmatprep.mubr.bf16.mxu0 0
  %1192 = vmatmul.mubr.bf16.gmra.mxu0 %v1031
  %v1193 = vpop.f32.mrf.mxu0
  %v1194 = vadd.f32 0.0, %v1193
  %v1195 = vpop.f32.mrf.mxu0
  %v1196 = vpop.f32.mrf.mxu0
  %v1197 = vadd.f32 0.0, %v1196
  %v1198 = vpop.f32.mrf.mxu0
  %1199 = vmatprep.mubr.bf16.mxu0 0
  %1200 = vmatmul.mubr.bf16.gmra.mxu0 %v1034
  %v1201 = vpop.f32.mrf.mxu0
  %v1202 = vadd.f32 0.0, %v1201
  %v1203 = vpop.f32.mrf.mxu0
  %v1204 = vpop.f32.mrf.mxu0
  %v1205 = vadd.f32 0.0, %v1204
  %v1206 = vpop.f32.mrf.mxu0
  %1207 = vmatprep.mubr.bf16.mxu0 0
  %1208 = vmatmul.mubr.bf16.gmra.mxu0 %v1037
  %v1209 = vpop.f32.mrf.mxu0
  %v1210 = vadd.f32 0.0, %v1209
  %v1211 = vpop.f32.mrf.mxu0
  %v1212 = vpop.f32.mrf.mxu0
  %v1213 = vadd.f32 0.0, %v1212
  %v1214 = vpop.f32.mrf.mxu0
  %1215 = vmatprep.mubr.bf16.mxu0 0
  %1216 = vmatmul.mubr.bf16.gmra.mxu0 %v1040
  %v1217 = vpop.f32.mrf.mxu0
  %v1218 = vadd.f32 0.0, %v1217
  %v1219 = vpop.f32.mrf.mxu0
  %v1220 = vpop.f32.mrf.mxu0
  %v1221 = vadd.f32 0.0, %v1220
  %v1222 = vpop.f32.mrf.mxu0
  %1223 = vmatprep.mubr.bf16.mxu0 0
  %1224 = vmatmul.mubr.bf16.gmra.mxu0 %v1043
  %v1225 = vpop.f32.mrf.mxu0
  %v1226 = vadd.f32 0.0, %v1225
  %v1227 = vpop.f32.mrf.mxu0
  %v1228 = vpop.f32.mrf.mxu0
  %v1229 = vadd.f32 0.0, %v1228
  %v1230 = vpop.f32.mrf.mxu0
  %1231 = vmatprep.mubr.bf16.mxu0 0
  %1232 = vmatmul.mubr.bf16.gmra.mxu0 %v1046
  %v1233 = vpop.f32.mrf.mxu0
  %v1234 = vadd.f32 0.0, %v1233
  %v1235 = vpop.f32.mrf.mxu0
  %v1236 = vpop.f32.mrf.mxu0
  %v1237 = vadd.f32 0.0, %v1236
  %v1238 = vpop.f32.mrf.mxu0
  %1239 = vmatprep.mubr.bf16.mxu0 0
  %1240 = vmatmul.mubr.bf16.gmra.mxu0 %v1049
  %v1241 = vpop.f32.mrf.mxu0
  %v1242 = vadd.f32 0.0, %v1241
  %v1243 = vpop.f32.mrf.mxu0
  %v1244 = vpop.f32.mrf.mxu0
  %v1245 = vadd.f32 0.0, %v1244
  %v1246 = vpop.f32.mrf.mxu0
  %1247 = vmatprep.mubr.bf16.mxu0 0
  %1248 = vmatmul.mubr.bf16.gmra.mxu0 %v1052
  %v1249 = vpop.f32.mrf.mxu0
  %v1250 = vadd.f32 0.0, %v1249
  %v1251 = vpop.f32.mrf.mxu0
  %v1252 = vpop.f32.mrf.mxu0
  %v1253 = vadd.f32 0.0, %v1252
  %v1254 = vpop.f32.mrf.mxu0
  %1255 = vmatprep.mubr.bf16.mxu0 0
  %1256 = vmatmul.mubr.bf16.gmra.mxu0 %v1055
  %v1257 = vpop.f32.mrf.mxu0
  %v1258 = vadd.f32 0.0, %v1257
  %v1259 = vpop.f32.mrf.mxu0
  %v1260 = vpop.f32.mrf.mxu0
  %v1261 = vadd.f32 0.0, %v1260
  %v1262 = vpop.f32.mrf.mxu0
  %1263 = vmatprep.mubr.bf16.mxu0 0
  %1264 = vmatmul.mubr.bf16.gmra.mxu0 %v1058
  %v1265 = vpop.f32.mrf.mxu0
  %v1266 = vadd.f32 0.0, %v1265
  %v1267 = vpop.f32.mrf.mxu0
  %v1268 = vpop.f32.mrf.mxu0
  %v1269 = vadd.f32 0.0, %v1268
  %v1270 = vpop.f32.mrf.mxu0
  %1271 = vmatprep.mubr.bf16.mxu0 0
  %1272 = vmatmul.mubr.bf16.gmra.mxu0 %v1061
  %v1273 = vpop.f32.mrf.mxu0
  %v1274 = vadd.f32 0.0, %v1273
  %v1275 = vpop.f32.mrf.mxu0
  %v1276 = vpop.f32.mrf.mxu0
  %v1277 = vadd.f32 0.0, %v1276
  %v1278 = vpop.f32.mrf.mxu0
  %1279 = vmatprep.mubr.bf16.mxu0 0
  %1280 = vmatmul.mubr.bf16.gmra.mxu0 %v1064
  %v1281 = vpop.f32.mrf.mxu0
  %v1282 = vadd.f32 0.0, %v1281
  %v1283 = vpop.f32.mrf.mxu0
  %v1284 = vpop.f32.mrf.mxu0
  %v1285 = vadd.f32 0.0, %v1284
  %v1286 = vpop.f32.mrf.mxu0
  %1287 = vmatprep.mubr.bf16.mxu0 0
  %1288 = vmatmul.mubr.bf16.gmra.mxu0 %v1067
  %v1289 = vpop.f32.mrf.mxu0
  %v1290 = vadd.f32 0.0, %v1289
  %v1291 = vpop.f32.mrf.mxu0
  %v1292 = vpop.f32.mrf.mxu0
  %v1293 = vadd.f32 0.0, %v1292
  %v1294 = vpop.f32.mrf.mxu0
  %1295 = vmatprep.mubr.bf16.mxu0 0
  %1296 = vmatmul.mubr.bf16.gmra.mxu0 %v1070
  %v1297 = vpop.f32.mrf.mxu0
  %v1298 = vadd.f32 0.0, %v1297
  %v1299 = vpop.f32.mrf.mxu0
  %v1300 = vpop.f32.mrf.mxu0
  %v1301 = vadd.f32 0.0, %v1300
  %v1302 = vpop.f32.mrf.mxu0
  %1303 = vmatprep.mubr.bf16.mxu0 0
  %1304 = vmatmul.mubr.bf16.gmra.mxu0 %v1073
  %v1305 = vpop.f32.mrf.mxu0
  %v1306 = vadd.f32 0.0, %v1305
  %v1307 = vpop.f32.mrf.mxu0
  %v1308 = vpop.f32.mrf.mxu0
  %v1309 = vadd.f32 0.0, %v1308
  %v1310 = vpop.f32.mrf.mxu0
  %1311 = vmatprep.mubr.bf16.mxu0 0
  %1312 = vmatmul.mubr.bf16.gmra.mxu0 %v1076
  %v1313 = vpop.f32.mrf.mxu0
  %v1314 = vadd.f32 0.0, %v1313
  %v1315 = vpop.f32.mrf.mxu0
  %v1316 = vpop.f32.mrf.mxu0
  %v1317 = vadd.f32 0.0, %v1316
  %v1318 = vpop.f32.mrf.mxu0
  %1319 = vmatprep.mubr.bf16.mxu0 0
  %1320 = vmatmul.mubr.bf16.gmra.mxu0 %v1079
  %v1321 = vpop.f32.mrf.mxu0
  %v1322 = vadd.f32 0.0, %v1321
  %v1323 = vpop.f32.mrf.mxu0
  %v1324 = vpop.f32.mrf.mxu0
  %v1325 = vadd.f32 0.0, %v1324
  %v1326 = vpop.f32.mrf.mxu0
  %1327 = vmatprep.mubr.bf16.mxu0 0
  %1328 = vmatmul.mubr.bf16.gmra.mxu0 %v1082
  %v1329 = vpop.f32.mrf.mxu0
  %v1330 = vadd.f32 0.0, %v1329
  %v1331 = vpop.f32.mrf.mxu0
  %v1332 = vpop.f32.mrf.mxu0
  %v1333 = vadd.f32 0.0, %v1332
  %v1334 = vpop.f32.mrf.mxu0
  %1335 = vmatprep.mubr.bf16.mxu0 0
  %1336 = vmatmul.mubr.bf16.gmra.mxu0 %v1085
  %v1337 = vpop.f32.mrf.mxu0
  %v1338 = vadd.f32 0.0, %v1337
  %v1339 = vpop.f32.mrf.mxu0
  %v1340 = vpop.f32.mrf.mxu0
  %v1341 = vadd.f32 0.0, %v1340
  %v1342 = vpop.f32.mrf.mxu0
  %1343 = vmatprep.mubr.bf16.mxu0 0
  %1344 = vmatmul.mubr.bf16.gmra.mxu0 %v1088
  %v1345 = vpop.f32.mrf.mxu0
  %v1346 = vadd.f32 0.0, %v1345
  %v1347 = vpop.f32.mrf.mxu0
  %v1348 = vpop.f32.mrf.mxu0
  %v1349 = vadd.f32 0.0, %v1348
  %v1350 = vpop.f32.mrf.mxu0
  %1351 = vmatprep.mubr.bf16.mxu0 0
  %1352 = vmatmul.mubr.bf16.gmra.mxu0 %v1091
  %v1353 = vpop.f32.mrf.mxu0
  %v1354 = vadd.f32 0.0, %v1353
  %v1355 = vpop.f32.mrf.mxu0
  %v1356 = vpop.f32.mrf.mxu0
  %v1357 = vadd.f32 0.0, %v1356
  %v1358 = vpop.f32.mrf.mxu0
  %1359 = vmatprep.mubr.bf16.mxu0 0
  %1360 = vmatmul.mubr.bf16.gmra.mxu0 %v1094
  %v1361 = vpop.f32.mrf.mxu0
  %v1362 = vadd.f32 0.0, %v1361
  %v1363 = vpop.f32.mrf.mxu0
  %v1364 = vpop.f32.mrf.mxu0
  %v1365 = vadd.f32 0.0, %v1364
  %v1366 = vpop.f32.mrf.mxu0
  %1367 = vmatprep.mubr.bf16.mxu0 0
  %1368 = vmatmul.mubr.bf16.gmra.mxu0 %v1097
  %v1369 = vpop.f32.mrf.mxu0
  %v1370 = vadd.f32 0.0, %v1369
  %v1371 = vpop.f32.mrf.mxu0
  %v1372 = vpop.f32.mrf.mxu0
  %v1373 = vadd.f32 0.0, %v1372
  %v1374 = vpop.f32.mrf.mxu0
  %1375 = vmatprep.mubr.bf16.mxu0 0
  %1376 = vmatmul.mubr.bf16.gmra.mxu0 %v1100
  %v1377 = vpop.f32.mrf.mxu0
  %v1378 = vadd.f32 0.0, %v1377
  %v1379 = vpop.f32.mrf.mxu0
  %v1380 = vpop.f32.mrf.mxu0
  %v1381 = vadd.f32 0.0, %v1380
  %v1382 = vpop.f32.mrf.mxu0
  %1383 = vmatprep.mubr.bf16.mxu0 0
  %1384 = vmatmul.mubr.bf16.gmra.mxu0 %v1103
  %v1385 = vpop.f32.mrf.mxu0
  %v1386 = vadd.f32 0.0, %v1385
  %v1387 = vpop.f32.mrf.mxu0
  %v1388 = vpop.f32.mrf.mxu0
  %v1389 = vadd.f32 0.0, %v1388
  %v1390 = vpop.f32.mrf.mxu0
  %1391 = vmatprep.mubr.bf16.mxu0 0
  %1392 = vmatmul.mubr.bf16.gmra.mxu0 %v1106
  %v1393 = vpop.f32.mrf.mxu0
  %v1394 = vadd.f32 0.0, %v1393
  %v1395 = vpop.f32.mrf.mxu0
  %v1396 = vpop.f32.mrf.mxu0
  %v1397 = vadd.f32 0.0, %v1396
  %v1398 = vpop.f32.mrf.mxu0
  %1399 = vdwg.mxu0
  %v1400 = vld [vmem:[%s6] sm:$0x1]
  %v1402 = vlaneseq
  %v1403 = vshrl.u32 %v1402, 7
  %v1404 = vsub.s32 0, %v1403
  %v1405 = vrot.slane %v1400, %v1404
  %v1407 = vmul.f32 %v1146, %v1405
  %v1408 = vmul.f32 %v1149, %v1405
  %v1409 = vmul.f32 %v1154, %v1405
  %v1410 = vmul.f32 %v1157, %v1405
  %v1411 = vmul.f32 %v1162, %v1405
  %v1412 = vmul.f32 %v1165, %v1405
  %v1413 = vmul.f32 %v1170, %v1405
  %v1414 = vmul.f32 %v1173, %v1405
  %v1415 = vmul.f32 %v1178, %v1405
  %v1416 = vmul.f32 %v1181, %v1405
  %v1417 = vmul.f32 %v1186, %v1405
  %v1418 = vmul.f32 %v1189, %v1405
  %v1419 = vmul.f32 %v1194, %v1405
  %v1420 = vmul.f32 %v1197, %v1405
  %v1421 = vmul.f32 %v1202, %v1405
  %v1422 = vmul.f32 %v1205, %v1405
  %v1423 = vmul.f32 %v1210, %v1405
  %v1424 = vmul.f32 %v1213, %v1405
  %v1425 = vmul.f32 %v1218, %v1405
  %v1426 = vmul.f32 %v1221, %v1405
  %v1427 = vmul.f32 %v1226, %v1405
  %v1428 = vmul.f32 %v1229, %v1405
  %v1429 = vmul.f32 %v1234, %v1405
  %v1430 = vmul.f32 %v1237, %v1405
  %v1431 = vmul.f32 %v1242, %v1405
  %v1432 = vmul.f32 %v1245, %v1405
  %v1433 = vmul.f32 %v1250, %v1405
  %v1434 = vmul.f32 %v1253, %v1405
  %v1435 = vmul.f32 %v1258, %v1405
  %v1436 = vmul.f32 %v1261, %v1405
  %v1437 = vmul.f32 %v1266, %v1405
  %v1438 = vmul.f32 %v1269, %v1405
  %v1439 = vmul.f32 %v1274, %v1405
  %v1440 = vmul.f32 %v1277, %v1405
  %v1441 = vmul.f32 %v1282, %v1405
  %v1442 = vmul.f32 %v1285, %v1405
  %v1443 = vmul.f32 %v1290, %v1405
  %v1444 = vmul.f32 %v1293, %v1405
  %v1445 = vmul.f32 %v1298, %v1405
  %v1446 = vmul.f32 %v1301, %v1405
  %v1447 = vmul.f32 %v1306, %v1405
  %v1448 = vmul.f32 %v1309, %v1405
  %v1449 = vmul.f32 %v1314, %v1405
  %v1450 = vmul.f32 %v1317, %v1405
  %v1451 = vmul.f32 %v1322, %v1405
  %v1452 = vmul.f32 %v1325, %v1405
  %v1453 = vmul.f32 %v1330, %v1405
  %v1454 = vmul.f32 %v1333, %v1405
  %v1455 = vmul.f32 %v1338, %v1405
  %v1456 = vmul.f32 %v1341, %v1405
  %v1457 = vmul.f32 %v1346, %v1405
  %v1458 = vmul.f32 %v1349, %v1405
  %v1459 = vmul.f32 %v1354, %v1405
  %v1460 = vmul.f32 %v1357, %v1405
  %v1461 = vmul.f32 %v1362, %v1405
  %v1462 = vmul.f32 %v1365, %v1405
  %v1463 = vmul.f32 %v1370, %v1405
  %v1464 = vmul.f32 %v1373, %v1405
  %v1465 = vmul.f32 %v1378, %v1405
  %v1466 = vmul.f32 %v1381, %v1405
  %v1467 = vmul.f32 %v1386, %v1405
  %v1468 = vmul.f32 %v1389, %v1405
  %v1469 = vmul.f32 %v1394, %v1405
  %v1470 = vmul.f32 %v1397, %v1405
  %v1471 = vld [vmem:[%s7] sm:$0x1]
  %v1473 = vlaneseq
  %v1474 = vshrl.u32 %v1473, 7
  %v1475 = vsub.s32 0, %v1474
  %v1476 = vrot.slane %v1471, %v1475
  %v1478 = vadd.f32 %v1407, %v1476
  %v1479 = vadd.f32 %v1408, %v1476
  %v1480 = vadd.f32 %v1409, %v1476
  %v1481 = vadd.f32 %v1410, %v1476
  %v1482 = vadd.f32 %v1411, %v1476
  %v1483 = vadd.f32 %v1412, %v1476
  %v1484 = vadd.f32 %v1413, %v1476
  %v1485 = vadd.f32 %v1414, %v1476
  %v1486 = vadd.f32 %v1415, %v1476
  %v1487 = vadd.f32 %v1416, %v1476
  %v1488 = vadd.f32 %v1417, %v1476
  %v1489 = vadd.f32 %v1418, %v1476
  %v1490 = vadd.f32 %v1419, %v1476
  %v1491 = vadd.f32 %v1420, %v1476
  %v1492 = vadd.f32 %v1421, %v1476
  %v1493 = vadd.f32 %v1422, %v1476
  %v1494 = vadd.f32 %v1423, %v1476
  %v1495 = vadd.f32 %v1424, %v1476
  %v1496 = vadd.f32 %v1425, %v1476
  %v1497 = vadd.f32 %v1426, %v1476
  %v1498 = vadd.f32 %v1427, %v1476
  %v1499 = vadd.f32 %v1428, %v1476
  %v1500 = vadd.f32 %v1429, %v1476
  %v1501 = vadd.f32 %v1430, %v1476
  %v1502 = vadd.f32 %v1431, %v1476
  %v1503 = vadd.f32 %v1432, %v1476
  %v1504 = vadd.f32 %v1433, %v1476
  %v1505 = vadd.f32 %v1434, %v1476
  %v1506 = vadd.f32 %v1435, %v1476
  %v1507 = vadd.f32 %v1436, %v1476
  %v1508 = vadd.f32 %v1437, %v1476
  %v1509 = vadd.f32 %v1438, %v1476
  %v1510 = vadd.f32 %v1439, %v1476
  %v1511 = vadd.f32 %v1440, %v1476
  %v1512 = vadd.f32 %v1441, %v1476
  %v1513 = vadd.f32 %v1442, %v1476
  %v1514 = vadd.f32 %v1443, %v1476
  %v1515 = vadd.f32 %v1444, %v1476
  %v1516 = vadd.f32 %v1445, %v1476
  %v1517 = vadd.f32 %v1446, %v1476
  %v1518 = vadd.f32 %v1447, %v1476
  %v1519 = vadd.f32 %v1448, %v1476
  %v1520 = vadd.f32 %v1449, %v1476
  %v1521 = vadd.f32 %v1450, %v1476
  %v1522 = vadd.f32 %v1451, %v1476
  %v1523 = vadd.f32 %v1452, %v1476
  %v1524 = vadd.f32 %v1453, %v1476
  %v1525 = vadd.f32 %v1454, %v1476
  %v1526 = vadd.f32 %v1455, %v1476
  %v1527 = vadd.f32 %v1456, %v1476
  %v1528 = vadd.f32 %v1457, %v1476
  %v1529 = vadd.f32 %v1458, %v1476
  %v1530 = vadd.f32 %v1459, %v1476
  %v1531 = vadd.f32 %v1460, %v1476
  %v1532 = vadd.f32 %v1461, %v1476
  %v1533 = vadd.f32 %v1462, %v1476
  %v1534 = vadd.f32 %v1463, %v1476
  %v1535 = vadd.f32 %v1464, %v1476
  %v1536 = vadd.f32 %v1465, %v1476
  %v1537 = vadd.f32 %v1466, %v1476
  %v1538 = vadd.f32 %v1467, %v1476
  %v1539 = vadd.f32 %v1468, %v1476
  %v1540 = vadd.f32 %v1469, %v1476
  %v1541 = vadd.f32 %v1470, %v1476
  %v1542 = vadd.f32 %v723, %v1478
  %v1543 = vadd.f32 %v724, %v1479
  %v1544 = vadd.f32 %v725, %v1480
  %v1545 = vadd.f32 %v726, %v1481
  %v1546 = vadd.f32 %v727, %v1482
  %v1547 = vadd.f32 %v728, %v1483
  %v1548 = vadd.f32 %v729, %v1484
  %v1549 = vadd.f32 %v730, %v1485
  %v1550 = vadd.f32 %v731, %v1486
  %v1551 = vadd.f32 %v732, %v1487
  %v1552 = vadd.f32 %v733, %v1488
  %v1553 = vadd.f32 %v734, %v1489
  %v1554 = vadd.f32 %v735, %v1490
  %v1555 = vadd.f32 %v736, %v1491
  %v1556 = vadd.f32 %v737, %v1492
  %v1557 = vadd.f32 %v738, %v1493
  %v1558 = vadd.f32 %v739, %v1494
  %v1559 = vadd.f32 %v740, %v1495
  %v1560 = vadd.f32 %v741, %v1496
  %v1561 = vadd.f32 %v742, %v1497
  %v1562 = vadd.f32 %v743, %v1498
  %v1563 = vadd.f32 %v744, %v1499
  %v1564 = vadd.f32 %v745, %v1500
  %v1565 = vadd.f32 %v746, %v1501
  %v1566 = vadd.f32 %v747, %v1502
  %v1567 = vadd.f32 %v748, %v1503
  %v1568 = vadd.f32 %v749, %v1504
  %v1569 = vadd.f32 %v750, %v1505
  %v1570 = vadd.f32 %v751, %v1506
  %v1571 = vadd.f32 %v752, %v1507
  %v1572 = vadd.f32 %v753, %v1508
  %v1573 = vadd.f32 %v754, %v1509
  %v1574 = vadd.f32 %v755, %v1510
  %v1575 = vadd.f32 %v756, %v1511
  %v1576 = vadd.f32 %v757, %v1512
  %v1577 = vadd.f32 %v758, %v1513
  %v1578 = vadd.f32 %v759, %v1514
  %v1579 = vadd.f32 %v760, %v1515
  %v1580 = vadd.f32 %v761, %v1516
  %v1581 = vadd.f32 %v762, %v1517
  %v1582 = vadd.f32 %v763, %v1518
  %v1583 = vadd.f32 %v764, %v1519
  %v1584 = vadd.f32 %v765, %v1520
  %v1585 = vadd.f32 %v766, %v1521
  %v1586 = vadd.f32 %v767, %v1522
  %v1587 = vadd.f32 %v768, %v1523
  %v1588 = vadd.f32 %v769, %v1524
  %v1589 = vadd.f32 %v770, %v1525
  %v1590 = vadd.f32 %v771, %v1526
  %v1591 = vadd.f32 %v772, %v1527
  %v1592 = vadd.f32 %v773, %v1528
  %v1593 = vadd.f32 %v774, %v1529
  %v1594 = vadd.f32 %v775, %v1530
  %v1595 = vadd.f32 %v776, %v1531
  %v1596 = vadd.f32 %v777, %v1532
  %v1597 = vadd.f32 %v778, %v1533
  %v1598 = vadd.f32 %v779, %v1534
  %v1599 = vadd.f32 %v780, %v1535
  %v1600 = vadd.f32 %v781, %v1536
  %v1601 = vadd.f32 %v782, %v1537
  %v1602 = vadd.f32 %v783, %v1538
  %v1603 = vadd.f32 %v784, %v1539
  %v1604 = vadd.f32 %v785, %v1540
  %v1605 = vadd.f32 %v786, %v1541
  %v1606 = vmax.f32 %v1542, 0.0
  %v1607 = vmax.f32 %v1543, 0.0
  %v1608 = vmax.f32 %v1544, 0.0
  %v1609 = vmax.f32 %v1545, 0.0
  %v1610 = vmax.f32 %v1546, 0.0
  %v1611 = vmax.f32 %v1547, 0.0
  %v1612 = vmax.f32 %v1548, 0.0
  %v1613 = vmax.f32 %v1549, 0.0
  %v1614 = vmax.f32 %v1550, 0.0
  %v1615 = vmax.f32 %v1551, 0.0
  %v1616 = vmax.f32 %v1552, 0.0
  %v1617 = vmax.f32 %v1553, 0.0
  %v1618 = vmax.f32 %v1554, 0.0
  %v1619 = vmax.f32 %v1555, 0.0
  %v1620 = vmax.f32 %v1556, 0.0
  %v1621 = vmax.f32 %v1557, 0.0
  %v1622 = vmax.f32 %v1558, 0.0
  %v1623 = vmax.f32 %v1559, 0.0
  %v1624 = vmax.f32 %v1560, 0.0
  %v1625 = vmax.f32 %v1561, 0.0
  %v1626 = vmax.f32 %v1562, 0.0
  %v1627 = vmax.f32 %v1563, 0.0
  %v1628 = vmax.f32 %v1564, 0.0
  %v1629 = vmax.f32 %v1565, 0.0
  %v1630 = vmax.f32 %v1566, 0.0
  %v1631 = vmax.f32 %v1567, 0.0
  %v1632 = vmax.f32 %v1568, 0.0
  %v1633 = vmax.f32 %v1569, 0.0
  %v1634 = vmax.f32 %v1570, 0.0
  %v1635 = vmax.f32 %v1571, 0.0
  %v1636 = vmax.f32 %v1572, 0.0
  %v1637 = vmax.f32 %v1573, 0.0
  %v1638 = vmax.f32 %v1574, 0.0
  %v1639 = vmax.f32 %v1575, 0.0
  %v1640 = vmax.f32 %v1576, 0.0
  %v1641 = vmax.f32 %v1577, 0.0
  %v1642 = vmax.f32 %v1578, 0.0
  %v1643 = vmax.f32 %v1579, 0.0
  %v1644 = vmax.f32 %v1580, 0.0
  %v1645 = vmax.f32 %v1581, 0.0
  %v1646 = vmax.f32 %v1582, 0.0
  %v1647 = vmax.f32 %v1583, 0.0
  %v1648 = vmax.f32 %v1584, 0.0
  %v1649 = vmax.f32 %v1585, 0.0
  %v1650 = vmax.f32 %v1586, 0.0
  %v1651 = vmax.f32 %v1587, 0.0
  %v1652 = vmax.f32 %v1588, 0.0
  %v1653 = vmax.f32 %v1589, 0.0
  %v1654 = vmax.f32 %v1590, 0.0
  %v1655 = vmax.f32 %v1591, 0.0
  %v1656 = vmax.f32 %v1592, 0.0
  %v1657 = vmax.f32 %v1593, 0.0
  %v1658 = vmax.f32 %v1594, 0.0
  %v1659 = vmax.f32 %v1595, 0.0
  %v1660 = vmax.f32 %v1596, 0.0
  %v1661 = vmax.f32 %v1597, 0.0
  %v1662 = vmax.f32 %v1598, 0.0
  %v1663 = vmax.f32 %v1599, 0.0
  %v1664 = vmax.f32 %v1600, 0.0
  %v1665 = vmax.f32 %v1601, 0.0
  %v1666 = vmax.f32 %v1602, 0.0
  %v1667 = vmax.f32 %v1603, 0.0
  %v1668 = vmax.f32 %v1604, 0.0
  %v1669 = vmax.f32 %v1605, 0.0
  %v1670 = vpack.c.bf16 %v1607, %v1606
  %v1671 = vpack.c.bf16 %v1609, %v1608
  %v1672 = vpack.c.bf16 %v1611, %v1610
  %v1673 = vpack.c.bf16 %v1613, %v1612
  %v1674 = vpack.c.bf16 %v1615, %v1614
  %v1675 = vpack.c.bf16 %v1617, %v1616
  %v1676 = vpack.c.bf16 %v1619, %v1618
  %v1677 = vpack.c.bf16 %v1621, %v1620
  %v1678 = vpack.c.bf16 %v1623, %v1622
  %v1679 = vpack.c.bf16 %v1625, %v1624
  %v1680 = vpack.c.bf16 %v1627, %v1626
  %v1681 = vpack.c.bf16 %v1629, %v1628
  %v1682 = vpack.c.bf16 %v1631, %v1630
  %v1683 = vpack.c.bf16 %v1633, %v1632
  %v1684 = vpack.c.bf16 %v1635, %v1634
  %v1685 = vpack.c.bf16 %v1637, %v1636
  %v1686 = vpack.c.bf16 %v1639, %v1638
  %v1687 = vpack.c.bf16 %v1641, %v1640
  %v1688 = vpack.c.bf16 %v1643, %v1642
  %v1689 = vpack.c.bf16 %v1645, %v1644
  %v1690 = vpack.c.bf16 %v1647, %v1646
  %v1691 = vpack.c.bf16 %v1649, %v1648
  %v1692 = vpack.c.bf16 %v1651, %v1650
  %v1693 = vpack.c.bf16 %v1653, %v1652
  %v1694 = vpack.c.bf16 %v1655, %v1654
  %v1695 = vpack.c.bf16 %v1657, %v1656
  %v1696 = vpack.c.bf16 %v1659, %v1658
  %v1697 = vpack.c.bf16 %v1661, %v1660
  %v1698 = vpack.c.bf16 %v1663, %v1662
  %v1699 = vpack.c.bf16 %v1665, %v1664
  %v1700 = vpack.c.bf16 %v1667, %v1666
  %v1701 = vpack.c.bf16 %v1669, %v1668
  %v1734 = vunpack.c.l.b16 %v1670
  %v1735 = vunpack.c.h.b16 %v1670
  %v1736 = vunpack.c.l.b16 %v1671
  %v1737 = vunpack.c.h.b16 %v1671
  %v1738 = vunpack.c.l.b16 %v1672
  %v1739 = vunpack.c.h.b16 %v1672
  %v1740 = vunpack.c.l.b16 %v1673
  %v1741 = vunpack.c.h.b16 %v1673
  %v1742 = vunpack.c.l.b16 %v1674
  %v1743 = vunpack.c.h.b16 %v1674
  %v1744 = vunpack.c.l.b16 %v1675
  %v1745 = vunpack.c.h.b16 %v1675
  %v1746 = vunpack.c.l.b16 %v1676
  %v1747 = vunpack.c.h.b16 %v1676
  %v1748 = vunpack.c.l.b16 %v1677
  %v1749 = vunpack.c.h.b16 %v1677
  %v1750 = vunpack.c.l.b16 %v1678
  %v1751 = vunpack.c.h.b16 %v1678
  %v1752 = vunpack.c.l.b16 %v1679
  %v1753 = vunpack.c.h.b16 %v1679
  %v1754 = vunpack.c.l.b16 %v1680
  %v1755 = vunpack.c.h.b16 %v1680
  %v1756 = vunpack.c.l.b16 %v1681
  %v1757 = vunpack.c.h.b16 %v1681
  %v1758 = vunpack.c.l.b16 %v1682
  %v1759 = vunpack.c.h.b16 %v1682
  %v1760 = vunpack.c.l.b16 %v1683
  %v1761 = vunpack.c.h.b16 %v1683
  %v1762 = vunpack.c.l.b16 %v1684
  %v1763 = vunpack.c.h.b16 %v1684
  %v1764 = vunpack.c.l.b16 %v1685
  %v1765 = vunpack.c.h.b16 %v1685
  %v1766 = vunpack.c.l.b16 %v1686
  %v1767 = vunpack.c.h.b16 %v1686
  %v1768 = vunpack.c.l.b16 %v1687
  %v1769 = vunpack.c.h.b16 %v1687
  %v1770 = vunpack.c.l.b16 %v1688
  %v1771 = vunpack.c.h.b16 %v1688
  %v1772 = vunpack.c.l.b16 %v1689
  %v1773 = vunpack.c.h.b16 %v1689
  %v1774 = vunpack.c.l.b16 %v1690
  %v1775 = vunpack.c.h.b16 %v1690
  %v1776 = vunpack.c.l.b16 %v1691
  %v1777 = vunpack.c.h.b16 %v1691
  %v1778 = vunpack.c.l.b16 %v1692
  %v1779 = vunpack.c.h.b16 %v1692
  %v1780 = vunpack.c.l.b16 %v1693
  %v1781 = vunpack.c.h.b16 %v1693
  %v1782 = vunpack.c.l.b16 %v1694
  %v1783 = vunpack.c.h.b16 %v1694
  %v1784 = vunpack.c.l.b16 %v1695
  %v1785 = vunpack.c.h.b16 %v1695
  %v1786 = vunpack.c.l.b16 %v1696
  %v1787 = vunpack.c.h.b16 %v1696
  %v1788 = vunpack.c.l.b16 %v1697
  %v1789 = vunpack.c.h.b16 %v1697
  %v1790 = vunpack.c.l.b16 %v1698
  %v1791 = vunpack.c.h.b16 %v1698
  %v1792 = vunpack.c.l.b16 %v1699
  %v1793 = vunpack.c.h.b16 %v1699
  %v1794 = vunpack.c.l.b16 %v1700
  %v1795 = vunpack.c.h.b16 %v1700
  %v1796 = vunpack.c.l.b16 %v1701
  %v1797 = vunpack.c.h.b16 %v1701
  %v1798 = vpack.c.b16 %v1734, %v1734
  %v1799 = vpack.c.b16 %v1735, %v1735
  %v1800 = vpack.c.b16 %v1736, %v1736
  %v1801 = vpack.c.b16 %v1737, %v1737
  %v1802 = vpack.c.b16 %v1738, %v1738
  %v1803 = vpack.c.b16 %v1739, %v1739
  %v1804 = vpack.c.b16 %v1740, %v1740
  %v1805 = vpack.c.b16 %v1741, %v1741
  %v1806 = vpack.c.b16 %v1742, %v1742
  %v1807 = vpack.c.b16 %v1743, %v1743
  %v1808 = vpack.c.b16 %v1744, %v1744
  %v1809 = vpack.c.b16 %v1745, %v1745
  %v1810 = vpack.c.b16 %v1746, %v1746
  %v1811 = vpack.c.b16 %v1747, %v1747
  %v1812 = vpack.c.b16 %v1748, %v1748
  %v1813 = vpack.c.b16 %v1749, %v1749
  %v1814 = vpack.c.b16 %v1750, %v1750
  %v1815 = vpack.c.b16 %v1751, %v1751
  %v1816 = vpack.c.b16 %v1752, %v1752
  %v1817 = vpack.c.b16 %v1753, %v1753
  %v1818 = vpack.c.b16 %v1754, %v1754
  %v1819 = vpack.c.b16 %v1755, %v1755
  %v1820 = vpack.c.b16 %v1756, %v1756
  %v1821 = vpack.c.b16 %v1757, %v1757
  %v1822 = vpack.c.b16 %v1758, %v1758
  %v1823 = vpack.c.b16 %v1759, %v1759
  %v1824 = vpack.c.b16 %v1760, %v1760
  %v1825 = vpack.c.b16 %v1761, %v1761
  %v1826 = vpack.c.b16 %v1762, %v1762
  %v1827 = vpack.c.b16 %v1763, %v1763
  %v1828 = vpack.c.b16 %v1764, %v1764
  %v1829 = vpack.c.b16 %v1765, %v1765
  %v1830 = vpack.c.b16 %v1766, %v1766
  %v1831 = vpack.c.b16 %v1767, %v1767
  %v1832 = vpack.c.b16 %v1768, %v1768
  %v1833 = vpack.c.b16 %v1769, %v1769
  %v1834 = vpack.c.b16 %v1770, %v1770
  %v1835 = vpack.c.b16 %v1771, %v1771
  %v1836 = vpack.c.b16 %v1772, %v1772
  %v1837 = vpack.c.b16 %v1773, %v1773
  %v1838 = vpack.c.b16 %v1774, %v1774
  %v1839 = vpack.c.b16 %v1775, %v1775
  %v1840 = vpack.c.b16 %v1776, %v1776
  %v1841 = vpack.c.b16 %v1777, %v1777
  %v1842 = vpack.c.b16 %v1778, %v1778
  %v1843 = vpack.c.b16 %v1779, %v1779
  %v1844 = vpack.c.b16 %v1780, %v1780
  %v1845 = vpack.c.b16 %v1781, %v1781
  %v1846 = vpack.c.b16 %v1782, %v1782
  %v1847 = vpack.c.b16 %v1783, %v1783
  %v1848 = vpack.c.b16 %v1784, %v1784
  %v1849 = vpack.c.b16 %v1785, %v1785
  %v1850 = vpack.c.b16 %v1786, %v1786
  %v1851 = vpack.c.b16 %v1787, %v1787
  %v1852 = vpack.c.b16 %v1788, %v1788
  %v1853 = vpack.c.b16 %v1789, %v1789
  %v1854 = vpack.c.b16 %v1790, %v1790
  %v1855 = vpack.c.b16 %v1791, %v1791
  %v1856 = vpack.c.b16 %v1792, %v1792
  %v1857 = vpack.c.b16 %v1793, %v1793
  %v1858 = vpack.c.b16 %v1794, %v1794
  %v1859 = vpack.c.b16 %v1795, %v1795
  %v1860 = vpack.c.b16 %v1796, %v1796
  %v1861 = vpack.c.b16 %v1797, %v1797
  %vm1926 = vcmask 125952
  %1927 = vst.msk [vmem:[%s8] sm:$0xf] %vm1926, %v1798
  %1928 = vst.msk [vmem:[%s8 + $0x4] sm:$0xf] %vm1926, %v1799
  %1929 = vst.msk [vmem:[%s8 + $0x8] sm:$0xf] %vm1926, %v1800
  %1930 = vst.msk [vmem:[%s8 + $0xc] sm:$0xf] %vm1926, %v1801
  %1931 = vst.msk [vmem:[%s8 + $0x10] sm:$0xf] %vm1926, %v1802
  %1932 = vst.msk [vmem:[%s8 + $0x14] sm:$0xf] %vm1926, %v1803
  %1933 = vst.msk [vmem:[%s8 + $0x18] sm:$0xf] %vm1926, %v1804
  %1934 = vst.msk [vmem:[%s8 + $0x1c] sm:$0xf] %vm1926, %v1805
  %1935 = vst.msk [vmem:[%s8 + $0x20] sm:$0xf] %vm1926, %v1806
  %1936 = vst.msk [vmem:[%s8 + $0x24] sm:$0xf] %vm1926, %v1807
  %1937 = vst.msk [vmem:[%s8 + $0x28] sm:$0xf] %vm1926, %v1808
  %1938 = vst.msk [vmem:[%s8 + $0x2c] sm:$0xf] %vm1926, %v1809
  %1939 = vst.msk [vmem:[%s8 + $0x30] sm:$0xf] %vm1926, %v1810
  %1940 = vst.msk [vmem:[%s8 + $0x34] sm:$0xf] %vm1926, %v1811
  %1941 = vst.msk [vmem:[%s8 + $0x38] sm:$0xf] %vm1926, %v1812
  %1942 = vst.msk [vmem:[%s8 + $0x3c] sm:$0xf] %vm1926, %v1813
  %1943 = vst.msk [vmem:[%s8 + $0x40] sm:$0xf] %vm1926, %v1814
  %1944 = vst.msk [vmem:[%s8 + $0x44] sm:$0xf] %vm1926, %v1815
  %1945 = vst.msk [vmem:[%s8 + $0x48] sm:$0xf] %vm1926, %v1816
  %1946 = vst.msk [vmem:[%s8 + $0x4c] sm:$0xf] %vm1926, %v1817
  %1947 = vst.msk [vmem:[%s8 + $0x50] sm:$0xf] %vm1926, %v1818
  %1948 = vst.msk [vmem:[%s8 + $0x54] sm:$0xf] %vm1926, %v1819
  %1949 = vst.msk [vmem:[%s8 + $0x58] sm:$0xf] %vm1926, %v1820
  %1950 = vst.msk [vmem:[%s8 + $0x5c] sm:$0xf] %vm1926, %v1821
  %1951 = vst.msk [vmem:[%s8 + $0x60] sm:$0xf] %vm1926, %v1822
  %1952 = vst.msk [vmem:[%s8 + $0x64] sm:$0xf] %vm1926, %v1823
  %1953 = vst.msk [vmem:[%s8 + $0x68] sm:$0xf] %vm1926, %v1824
  %1954 = vst.msk [vmem:[%s8 + $0x6c] sm:$0xf] %vm1926, %v1825
  %1955 = vst.msk [vmem:[%s8 + $0x70] sm:$0xf] %vm1926, %v1826
  %1956 = vst.msk [vmem:[%s8 + $0x74] sm:$0xf] %vm1926, %v1827
  %1957 = vst.msk [vmem:[%s8 + $0x78] sm:$0xf] %vm1926, %v1828
  %1958 = vst.msk [vmem:[%s8 + $0x7c] sm:$0xf] %vm1926, %v1829
  %1959 = vst.msk [vmem:[%s8 + $0x80] sm:$0xf] %vm1926, %v1830
  %1960 = vst.msk [vmem:[%s8 + $0x84] sm:$0xf] %vm1926, %v1831
  %1961 = vst.msk [vmem:[%s8 + $0x88] sm:$0xf] %vm1926, %v1832
  %1962 = vst.msk [vmem:[%s8 + $0x8c] sm:$0xf] %vm1926, %v1833
  %1963 = vst.msk [vmem:[%s8 + $0x90] sm:$0xf] %vm1926, %v1834
  %1964 = vst.msk [vmem:[%s8 + $0x94] sm:$0xf] %vm1926, %v1835
  %1965 = vst.msk [vmem:[%s8 + $0x98] sm:$0xf] %vm1926, %v1836
  %1966 = vst.msk [vmem:[%s8 + $0x9c] sm:$0xf] %vm1926, %v1837
  %1967 = vst.msk [vmem:[%s8 + $0xa0] sm:$0xf] %vm1926, %v1838
  %1968 = vst.msk [vmem:[%s8 + $0xa4] sm:$0xf] %vm1926, %v1839
  %1969 = vst.msk [vmem:[%s8 + $0xa8] sm:$0xf] %vm1926, %v1840
  %1970 = vst.msk [vmem:[%s8 + $0xac] sm:$0xf] %vm1926, %v1841
  %1971 = vst.msk [vmem:[%s8 + $0xb0] sm:$0xf] %vm1926, %v1842
  %1972 = vst.msk [vmem:[%s8 + $0xb4] sm:$0xf] %vm1926, %v1843
  %1973 = vst.msk [vmem:[%s8 + $0xb8] sm:$0xf] %vm1926, %v1844
  %1974 = vst.msk [vmem:[%s8 + $0xbc] sm:$0xf] %vm1926, %v1845
  %1975 = vst.msk [vmem:[%s8 + $0xc0] sm:$0xf] %vm1926, %v1846
  %1976 = vst.msk [vmem:[%s8 + $0xc4] sm:$0xf] %vm1926, %v1847
  %1977 = vst.msk [vmem:[%s8 + $0xc8] sm:$0xf] %vm1926, %v1848
  %1978 = vst.msk [vmem:[%s8 + $0xcc] sm:$0xf] %vm1926, %v1849
  %1979 = vst.msk [vmem:[%s8 + $0xd0] sm:$0xf] %vm1926, %v1850
  %1980 = vst.msk [vmem:[%s8 + $0xd4] sm:$0xf] %vm1926, %v1851
  %1981 = vst.msk [vmem:[%s8 + $0xd8] sm:$0xf] %vm1926, %v1852
  %1982 = vst.msk [vmem:[%s8 + $0xdc] sm:$0xf] %vm1926, %v1853
  %1983 = vst.msk [vmem:[%s8 + $0xe0] sm:$0xf] %vm1926, %v1854
  %1984 = vst.msk [vmem:[%s8 + $0xe4] sm:$0xf] %vm1926, %v1855
  %1985 = vst.msk [vmem:[%s8 + $0xe8] sm:$0xf] %vm1926, %v1856
  %1986 = vst.msk [vmem:[%s8 + $0xec] sm:$0xf] %vm1926, %v1857
  %1987 = vst.msk [vmem:[%s8 + $0xf0] sm:$0xf] %vm1926, %v1858
  %1988 = vst.msk [vmem:[%s8 + $0xf4] sm:$0xf] %vm1926, %v1859
  %1989 = vst.msk [vmem:[%s8 + $0xf8] sm:$0xf] %vm1926, %v1860
  %1990 = vst.msk [vmem:[%s8 + $0xfc] sm:$0xf] %vm1926, %v1861
  // Predicated region
  $region34: #{bottleneck_forward.5} parent=0 // pred_check
    _
  $region35: #{bottleneck_forward.5} parent=0 // pred_check_branch
    %1992 = sbr.rel (0) target = $region37
  $region36: #{bottleneck_forward.5} parent=0 // pred_region
    _
  $region37: #{bottleneck_forward.5} parent=0 // pred_fallthru
    _
  // Predicated region
  $region38: #{bottleneck_forward.5} parent=0 // pred_check
    _
  $region39: #{bottleneck_forward.5} parent=0 // pred_check_branch
    %1994 = sbr.rel (0) target = $region41
  $region40: #{bottleneck_forward.5} parent=0 // pred_region
    _
  $region41: #{bottleneck_forward.5} parent=0 // pred_fallthru
    _

// kernel: bottleneck_forward.4
$region0: #{bottleneck_forward.4}
  #allocation0 [shape = 'u32[]', space=smem, size = 0x4, offset = 0x4, fixed_abs, tag = 'smem constant byte address 0x4 - core index']
  #allocation1 [shape = 'u32[144,128]{1,0:T(1,128)}', space=vmem, size = 0x12000, scoped, tag = 'internal scratch']
  #allocation2 [shape = 'bf16[1,18,18,4]{3,2,1,0:T(8,128)(2,1)}', space=vmem, size = 0x1b000, scoped, tag = 'scratch operand']
  %s0 = inlined_call_operand.vmem [shape: bf16[2,16,16,4], index: 0, kind: input, shape index: {}]
  %s1 = inlined_call_operand.vmem [shape: bf16[3,12,4], index: 1, kind: input, shape index: {}]
  %s2 = inlined_call_operand.vmem [shape: f32[1,4], index: 2, kind: input, shape index: {}]
  %s3 = inlined_call_operand.vmem [shape: f32[1,4], index: 3, kind: input, shape index: {}]
  %s4 = inlined_call_operand.vmem [shape: bf16[2,16,16,4], index: 4, kind: output, shape index: {}]
  %s5 = sld [smem:[#allocation0]]
  $region53: #{bottleneck_forward.4} parent=0
    _
  %s7 = ssub.s32 1, %s5
  %s8 = scalar_select 0, %s7, %s5
  loop: start=0, step=1, limit=6
  $region2: #{bottleneck_forward.4} parent=0 // loop_pre_header
    _
  $region3: #{bottleneck_forward.4} parent=0 // loop_header
    %s10 = sphi 0, %s14
    %p11 = scmp.ge.s32.totalorder %s10, 6
    %s17 = sphi 0, %s29
    %s18 = sphi 0, %s25
    %s19 = sphi 0, %s17
    %s20 = sphi 0, %s18
    %s21 = sphi 0, %s19
    %s22 = sphi 0, %s20
    %s32 = sphi 0, %s34
    %s35 = sphi 0, %s32
    %s36 = sphi 0, %s35
    %s52 = sphi 0, %s36
    %s56 = sphi 0, %s56
    %s58 = sphi 0, %s56
    %s59 = sphi 0, %s58
    %s73 = sphi 0, %s59
    %s77 = sphi 0, %s77
    %s79 = sphi 0, %s77
    %s80 = sphi 0, %s79
    %s94 = sphi 0, %s80
    %s98 = sphi 0, %s98
    %s100 = sphi 0, %s98
    %s101 = sphi 0, %s100
    %s115 = sphi 0, %s101
    %s123 = sphi 0, %s125
    %s126 = sphi 0, %s123
    %s127 = sphi 0, %s126
    %s143 = sphi 0, %s127
  $region4: #{bottleneck_forward.4} parent=0 // loop_header_branch
    %13 = sbr.rel (%p11) target = $region8
  $region5: #{bottleneck_forward.4} parent=0 // loop_body
    %s15 = ssub.s32 %s10, 1
    %s16 = ssub.s32 %s10, 2
    %s23 = sadd.s32 1, %s18
    %p24 = scmp.ge.s32.totalorder %s23, 2
    %s25 = scalar_select %p24, 0, %s23
    %s26 = sadd.s32 1, %s17
    %s27 = scalar_select %p24, %s26, %s17
    %p28 = scmp.ge.s32.totalorder %s27, 2
    %s29 = scalar_select %p28, 0, %s27
    %s30 = ssub.s32 %s17, %s29
    %p31 = scmp.eq.s32.totalorder %s30, 0
    %s33 = sadd.s32 %s32, 1
    %s34 = scalar_select %p31, %s32, %s33
    %p37 = pneg %p31
    %p38 = scmp.eq.s32.totalorder %s10, 3
    %p39 = por %p37, %p38
    %p40 = scmp.ne.s32.totalorder %s32, %s35
    %p41 = scmp.eq.s32.totalorder %s10, 0
    %p42 = por %p40, %p41
    %p43 = scmp.ne.s32.totalorder %s32, %s35
    %p44 = scmp.eq.s32.totalorder %s15, 3
    %p45 = por %p43, %p44
    %p46 = scmp.ne.s32.totalorder %s35, %s36
    %p47 = scmp.eq.s32.totalorder %s15, 0
    %p48 = por %p46, %p47
    %p49 = scmp.ne.s32.totalorder %s35, %s36
    %p50 = scmp.eq.s32.totalorder %s16, 3
    %p51 = por %p49, %p50
    %p53 = scmp.ne.s32.totalorder %s36, %s52
    %p54 = scmp.eq.s32.totalorder %s16, 0
    %p55 = por %p53, %p54
    %s57 = sadd.s32 %s56, 1
    %p60 = scmp.eq.s32.totalorder %s10, 3
    %p61 = scmp.ne.s32.totalorder %s56, %s58
    %p62 = scmp.eq.s32.totalorder %s10, 0
    %p63 = por %p61, %p62
    %p64 = scmp.ne.s32.totalorder %s56, %s58
    %p65 = scmp.eq.s32.totalorder %s15, 3
    %p66 = por %p64, %p65
    %p67 = scmp.ne.s32.totalorder %s58, %s59
    %p68 = scmp.eq.s32.totalorder %s15, 0
    %p69 = por %p67, %p68
    %p70 = scmp.ne.s32.totalorder %s58, %s59
    %p71 = scmp.eq.s32.totalorder %s16, 3
    %p72 = por %p70, %p71
    %p74 = scmp.ne.s32.totalorder %s59, %s73
    %p75 = scmp.eq.s32.totalorder %s16, 0
    %p76 = por %p74, %p75
    %s78 = sadd.s32 %s77, 1
    %p81 = scmp.eq.s32.totalorder %s10, 3
    %p82 = scmp.ne.s32.totalorder %s77, %s79
    %p83 = scmp.eq.s32.totalorder %s10, 0
    %p84 = por %p82, %p83
    %p85 = scmp.ne.s32.totalorder %s77, %s79
    %p86 = scmp.eq.s32.totalorder %s15, 3
    %p87 = por %p85, %p86
    %p88 = scmp.ne.s32.totalorder %s79, %s80
    %p89 = scmp.eq.s32.totalorder %s15, 0
    %p90 = por %p88, %p89
    %p91 = scmp.ne.s32.totalorder %s79, %s80
    %p92 = scmp.eq.s32.totalorder %s16, 3
    %p93 = por %p91, %p92
    %p95 = scmp.ne.s32.totalorder %s80, %s94
    %p96 = scmp.eq.s32.totalorder %s16, 0
    %p97 = por %p95, %p96
    %s99 = sadd.s32 %s98, 1
    %p102 = scmp.eq.s32.totalorder %s10, 3
    %p103 = scmp.ne.s32.totalorder %s98, %s100
    %p104 = scmp.eq.s32.totalorder %s10, 0
    %p105 = por %p103, %p104
    %p106 = scmp.ne.s32.totalorder %s98, %s100
    %p107 = scmp.eq.s32.totalorder %s15, 3
    %p108 = por %p106, %p107
    %p109 = scmp.ne.s32.totalorder %s100, %s101
    %p110 = scmp.eq.s32.totalorder %s15, 0
    %p111 = por %p109, %p110
    %p112 = scmp.ne.s32.totalorder %s100, %s101
    %p113 = scmp.eq.s32.totalorder %s16, 3
    %p114 = por %p112, %p113
    %p116 = scmp.ne.s32.totalorder %s101, %s115
    %p117 = scmp.eq.s32.totalorder %s16, 0
    %p118 = por %p116, %p117
    %s119 = ssub.s32 %s17, %s29
    %s120 = ssub.s32 %s18, %s25
    %s121 = sor.u32 %s119, %s120
    %p122 = scmp.eq.s32.totalorder %s121, 0
    %s124 = sadd.s32 %s123, 1
    %s125 = scalar_select %p122, %s123, %s124
    %p128 = pneg %p122
    %p129 = scmp.eq.s32.totalorder %s10, 3
    %p130 = por %p128, %p129
    %p131 = scmp.ne.s32.totalorder %s123, %s126
    %p132 = scmp.eq.s32.totalorder %s10, 0
    %p133 = por %p131, %p132
    %p134 = scmp.ne.s32.totalorder %s123, %s126
    %p135 = scmp.eq.s32.totalorder %s15, 3
    %p136 = por %p134, %p135
    %p137 = scmp.ne.s32.totalorder %s126, %s127
    %p138 = scmp.eq.s32.totalorder %s15, 0
    %p139 = por %p137, %p138
    %p140 = scmp.ne.s32.totalorder %s126, %s127
    %p141 = scmp.eq.s32.totalorder %s16, 3
    %p142 = por %p140, %p141
    %p144 = scmp.ne.s32.totalorder %s127, %s143
    %p145 = scmp.eq.s32.totalorder %s16, 0
    %p146 = por %p144, %p145
    %p147 = scmp.le.s32.totalorder 1, %s10
    %p148 = scmp.lt.s32.totalorder %s10, 5
    %p149 = pnand %p147, %p148
    %p150 = pneg %p149
    // Predicated region
    $region9: #{bottleneck_forward.4} parent=5 // pred_check
      _
    $region10: #{bottleneck_forward.4} parent=5 // pred_check_branch
      %152 = sbr.rel (%p149) target = $region12
    $region11: #{bottleneck_forward.4} parent=5 // pred_region
      %s153 = ssub.s32 %s10, 1
      // Predicated region
      $region13: #{bottleneck_forward.4} parent=11 // pred_check
        %p154 = pneg %p69
      $region14: #{bottleneck_forward.4} parent=11 // pred_check_branch
        %156 = sbr.rel (%p154) target = $region16
      $region15: #{bottleneck_forward.4} parent=11 // pred_region
        _
      $region16: #{bottleneck_forward.4} parent=11 // pred_fallthru
        _
      // Predicated region
      $region17: #{bottleneck_forward.4} parent=11 // pred_check
        %p157 = pneg %p90
      $region18: #{bottleneck_forward.4} parent=11 // pred_check_branch
        %159 = sbr.rel (%p157) target = $region20
      $region19: #{bottleneck_forward.4} parent=11 // pred_region
        _
      $region20: #{bottleneck_forward.4} parent=11 // pred_fallthru
        _
      // Predicated region
      $region21: #{bottleneck_forward.4} parent=11 // pred_check
        %p160 = pneg %p111
      $region22: #{bottleneck_forward.4} parent=11 // pred_check_branch
        %162 = sbr.rel (%p160) target = $region24
      $region23: #{bottleneck_forward.4} parent=11 // pred_region
        _
      $region24: #{bottleneck_forward.4} parent=11 // pred_fallthru
        _
    $region12: #{bottleneck_forward.4} parent=5 // pred_fallthru
      _
    %p163 = scmp.lt.s32.totalorder %s10, 4
    // Predicated region
    $region25: #{bottleneck_forward.4} parent=5 // pred_check
      %p164 = pneg %p163
    $region26: #{bottleneck_forward.4} parent=5 // pred_check_branch
      %166 = sbr.rel (%p164) target = $region28
    $region27: #{bottleneck_forward.4} parent=5 // pred_region
      // Predicated region
      $region29: #{bottleneck_forward.4} parent=27 // pred_check
        %p167 = pneg %p42
      $region30: #{bottleneck_forward.4} parent=27 // pred_check_branch
        %169 = sbr.rel (%p167) target = $region32
      $region31: #{bottleneck_forward.4} parent=27 // pred_region
        %p170 = scmp.lt.s32.totalorder %s17, 1
        %s171 = scalar_select %p170, %s17, 1
        %s172 = smul.addr %s171, 32
        %s173 = smul.addr %s172, 4
        %s174 = scalar_lea.vmem %s0, %s173
      $region32: #{bottleneck_forward.4} parent=27 // pred_fallthru
        _
    $region28: #{bottleneck_forward.4} parent=5 // pred_fallthru
      _
    %p175 = scmp.le.s32.totalorder 1, %s10
    %p176 = scmp.lt.s32.totalorder %s10, 5
    %p177 = pnand %p175, %p176
    %p178 = pneg %p177
    // Predicated region
    $region33: #{bottleneck_forward.4} parent=5 // pred_check
      _
    $region34: #{bottleneck_forward.4} parent=5 // pred_check_branch
      %180 = sbr.rel (%p177) target = $region36
    $region35: #{bottleneck_forward.4} parent=5 // pred_region
      %s181 = ssub.s32 %s10, 1
      %p182 = scmp.lt.s32.totalorder %s19, 1
      %s183 = scalar_select %p182, %s19, 1
      %s184 = smul.addr %s183, 32
      %s185 = smul.addr %s184, 4
      %s186 = scalar_lea.vmem %s0, %s185
      %p187 = pneg %p48
      %p188 = pneg %p45
      %p189 = pneg %p69
      %p190 = pneg %p66
      %p191 = pneg %p90
      %p192 = pneg %p87
      %p193 = pneg %p111
      %p194 = pneg %p108
      %p195 = pneg %p139
      %p196 = pneg %p136
      %s197 = smul.u32 8, %s20
      %p198 = scmp.lt.s32.totalorder %s19, 1
      %s199 = scalar_select %p198, %s19, 1
      %p200 = scmp.lt.s32.totalorder %s197, 15
      %s201 = scalar_select %p200, %s197, 15
      %s202 = smul.addr %s201, 2
      %s203 = smul.addr %s199, 32
      %s204 = sadd.s32 %s202, %s203
      %s205 = smul.addr %s204, 4
      %s206 = scalar_lea.vmem %s4, %s205
      %p207 = scmp.lt.s32.totalorder %s19, 1
      %s208 = scalar_select %p207, %s19, 1
      %s209 = smul.addr %s208, 32
      %s210 = smul.addr %s209, 4
      %s211 = scalar_lea.vmem %s0, %s210
      %s212 = smul.u32 8, %s20
      %p213 = scmp.lt.s32.totalorder %s19, 1
      %s214 = scalar_select %p213, %s19, 1
      %p215 = scmp.lt.s32.totalorder %s212, 15
      %s216 = scalar_select %p215, %s212, 15
      %s217 = smul.addr %s216, 2
      %s218 = smul.addr %s214, 32
      %s219 = sadd.s32 %s217, %s218
      %s220 = smul.addr %s219, 4
      %s221 = scalar_lea.vmem %s4, %s220
      %s222 = smul.u32 8, %s20
      %p224 = scmp.eq.s32.totalorder %s20, 0
      // Predicated region
      $region37: #{bottleneck_forward.4} parent=35 // pred_check
        %p225 = pneg %p224
      $region38: #{bottleneck_forward.4} parent=35 // pred_check_branch
        %227 = sbr.rel (%p225) target = $region40
      $region39: #{bottleneck_forward.4} parent=35 // pred_region
        %vm228 = vcmask 27648
        %229 = vst.msk [vmem:[#allocation2] sm:$0xf] %vm228, 0
        %230 = vst.msk [vmem:[#allocation2 + $0x4] sm:$0xf] %vm228, 0
        %vm231 = vcmask 24576
        %232 = vst.msk [vmem:[#allocation2 + $0x8] sm:$0x1] %vm231, 0
        %s233 = scalar_lea.vmem [#allocation2], 204
        %234 = vst.msk [vmem:[%s233] sm:$0xf] %vm228, 0
        %235 = vst.msk [vmem:[%s233 + $0x4] sm:$0xf] %vm228, 0
        %236 = vst.msk [vmem:[%s233 + $0x8] sm:$0x1] %vm231, 0
        %s237 = scalar_lea.vmem [#allocation2], 12
        %vm238 = vcmask 24576
        %vm239 = vsmask.f32 256
        %vm240 = vmand %vm238, %vm239
        %v241 = vld [vmem:[%s237] sm:$0x1]
        %v242 = vsel %vm240, 0, %v241
        %243 = vst [vmem:[%s237] sm:$0x1] %v242
        %v244 = vld [vmem:[%s237 + $0xc] sm:$0x1]
        %v245 = vsel %vm240, 0, %v244
        %246 = vst [vmem:[%s237 + $0xc] sm:$0x1] %v245
        %v247 = vld [vmem:[%s237 + $0x18] sm:$0x1]
        %v248 = vsel %vm240, 0, %v247
        %249 = vst [vmem:[%s237 + $0x18] sm:$0x1] %v248
        %v250 = vld [vmem:[%s237 + $0x24] sm:$0x1]
        %v251 = vsel %vm240, 0, %v250
        %252 = vst [vmem:[%s237 + $0x24] sm:$0x1] %v251
        %v253 = vld [vmem:[%s237 + $0x30] sm:$0x1]
        %v254 = vsel %vm240, 0, %v253
        %255 = vst [vmem:[%s237 + $0x30] sm:$0x1] %v254
        %v256 = vld [vmem:[%s237 + $0x3c] sm:$0x1]
        %v257 = vsel %vm240, 0, %v256
        %258 = vst [vmem:[%s237 + $0x3c] sm:$0x1] %v257
        %v259 = vld [vmem:[%s237 + $0x48] sm:$0x1]
        %v260 = vsel %vm240, 0, %v259
        %261 = vst [vmem:[%s237 + $0x48] sm:$0x1] %v260
        %v262 = vld [vmem:[%s237 + $0x54] sm:$0x1]
        %v263 = vsel %vm240, 0, %v262
        %264 = vst [vmem:[%s237 + $0x54] sm:$0x1] %v263
        %v265 = vld [vmem:[%s237 + $0x60] sm:$0x1]
        %v266 = vsel %vm240, 0, %v265
        %267 = vst [vmem:[%s237 + $0x60] sm:$0x1] %v266
        %v268 = vld [vmem:[%s237 + $0x6c] sm:$0x1]
        %v269 = vsel %vm240, 0, %v268
        %270 = vst [vmem:[%s237 + $0x6c] sm:$0x1] %v269
        %v271 = vld [vmem:[%s237 + $0x78] sm:$0x1]
        %v272 = vsel %vm240, 0, %v271
        %273 = vst [vmem:[%s237 + $0x78] sm:$0x1] %v272
        %v274 = vld [vmem:[%s237 + $0x84] sm:$0x1]
        %v275 = vsel %vm240, 0, %v274
        %276 = vst [vmem:[%s237 + $0x84] sm:$0x1] %v275
        %v277 = vld [vmem:[%s237 + $0x90] sm:$0x1]
        %v278 = vsel %vm240, 0, %v277
        %279 = vst [vmem:[%s237 + $0x90] sm:$0x1] %v278
        %v280 = vld [vmem:[%s237 + $0x9c] sm:$0x1]
        %v281 = vsel %vm240, 0, %v280
        %282 = vst [vmem:[%s237 + $0x9c] sm:$0x1] %v281
        %v283 = vld [vmem:[%s237 + $0xa8] sm:$0x1]
        %v284 = vsel %vm240, 0, %v283
        %285 = vst [vmem:[%s237 + $0xa8] sm:$0x1] %v284
        %v286 = vld [vmem:[%s237 + $0xb4] sm:$0x1]
        %v287 = vsel %vm240, 0, %v286
        %288 = vst [vmem:[%s237 + $0xb4] sm:$0x1] %v287
        %vm289 = vsmask.f32 7938
        %vm290 = vmand %vm238, %vm289
        %v291 = vld [vmem:[%s237 + $0x8] sm:$0x1]
        %v292 = vsel %vm290, 0, %v291
        %293 = vst [vmem:[%s237 + $0x8] sm:$0x1] %v292
        %v294 = vld [vmem:[%s237 + $0x14] sm:$0x1]
        %v295 = vsel %vm290, 0, %v294
        %296 = vst [vmem:[%s237 + $0x14] sm:$0x1] %v295
        %v297 = vld [vmem:[%s237 + $0x20] sm:$0x1]
        %v298 = vsel %vm290, 0, %v297
        %299 = vst [vmem:[%s237 + $0x20] sm:$0x1] %v298
        %v300 = vld [vmem:[%s237 + $0x2c] sm:$0x1]
        %v301 = vsel %vm290, 0, %v300
        %302 = vst [vmem:[%s237 + $0x2c] sm:$0x1] %v301
        %v303 = vld [vmem:[%s237 + $0x38] sm:$0x1]
        %v304 = vsel %vm290, 0, %v303
        %305 = vst [vmem:[%s237 + $0x38] sm:$0x1] %v304
        %v306 = vld [vmem:[%s237 + $0x44] sm:$0x1]
        %v307 = vsel %vm290, 0, %v306
        %308 = vst [vmem:[%s237 + $0x44] sm:$0x1] %v307
        %v309 = vld [vmem:[%s237 + $0x50] sm:$0x1]
        %v310 = vsel %vm290, 0, %v309
        %311 = vst [vmem:[%s237 + $0x50] sm:$0x1] %v310
        %v312 = vld [vmem:[%s237 + $0x5c] sm:$0x1]
        %v313 = vsel %vm290, 0, %v312
        %314 = vst [vmem:[%s237 + $0x5c] sm:$0x1] %v313
        %v315 = vld [vmem:[%s237 + $0x68] sm:$0x1]
        %v316 = vsel %vm290, 0, %v315
        %317 = vst [vmem:[%s237 + $0x68] sm:$0x1] %v316
        %v318 = vld [vmem:[%s237 + $0x74] sm:$0x1]
        %v319 = vsel %vm290, 0, %v318
        %320 = vst [vmem:[%s237 + $0x74] sm:$0x1] %v319
        %v321 = vld [vmem:[%s237 + $0x80] sm:$0x1]
        %v322 = vsel %vm290, 0, %v321
        %323 = vst [vmem:[%s237 + $0x80] sm:$0x1] %v322
        %v324 = vld [vmem:[%s237 + $0x8c] sm:$0x1]
        %v325 = vsel %vm290, 0, %v324
        %326 = vst [vmem:[%s237 + $0x8c] sm:$0x1] %v325
        %v327 = vld [vmem:[%s237 + $0x98] sm:$0x1]
        %v328 = vsel %vm290, 0, %v327
        %329 = vst [vmem:[%s237 + $0x98] sm:$0x1] %v328
        %v330 = vld [vmem:[%s237 + $0xa4] sm:$0x1]
        %v331 = vsel %vm290, 0, %v330
        %332 = vst [vmem:[%s237 + $0xa4] sm:$0x1] %v331
        %v333 = vld [vmem:[%s237 + $0xb0] sm:$0x1]
        %v334 = vsel %vm290, 0, %v333
        %335 = vst [vmem:[%s237 + $0xb0] sm:$0x1] %v334
        %v336 = vld [vmem:[%s237 + $0xbc] sm:$0x1]
        %v337 = vsel %vm290, 0, %v336
        %338 = vst [vmem:[%s237 + $0xbc] sm:$0x1] %v337
        %v339 = vld [vmem:[%s211] sm:$0xf]
        %v340 = vld [vmem:[%s211 + $0x4] sm:$0xf]
        %v341 = vld [vmem:[%s211 + $0x8] sm:$0xf]
        %v342 = vld [vmem:[%s211 + $0xc] sm:$0xf]
        %v343 = vld [vmem:[%s211 + $0x10] sm:$0xf]
        %v344 = vld [vmem:[%s211 + $0x14] sm:$0xf]
        %v345 = vld [vmem:[%s211 + $0x18] sm:$0xf]
        %v346 = vld [vmem:[%s211 + $0x1c] sm:$0xf]
        %v347 = vld [vmem:[%s211 + $0x20] sm:$0xf]
        %v348 = vld [vmem:[%s211 + $0x24] sm:$0xf]
        %v349 = vld [vmem:[%s211 + $0x28] sm:$0xf]
        %v350 = vld [vmem:[%s211 + $0x2c] sm:$0xf]
        %v351 = vld [vmem:[%s211 + $0x30] sm:$0xf]
        %v352 = vld [vmem:[%s211 + $0x34] sm:$0xf]
        %v353 = vld [vmem:[%s211 + $0x38] sm:$0xf]
        %v354 = vld [vmem:[%s211 + $0x3c] sm:$0xf]
        %v355 = vld [vmem:[%s211 + $0x40] sm:$0xf]
        %v356 = vld [vmem:[%s211 + $0x44] sm:$0xf]
        %v357 = vld [vmem:[%s211 + $0x48] sm:$0xf]
        %v358 = vld [vmem:[%s211 + $0x4c] sm:$0xf]
        %v359 = vld [vmem:[%s211 + $0x50] sm:$0xf]
        %v360 = vld [vmem:[%s211 + $0x54] sm:$0xf]
        %v361 = vld [vmem:[%s211 + $0x58] sm:$0xf]
        %v362 = vld [vmem:[%s211 + $0x5c] sm:$0xf]
        %v363 = vld [vmem:[%s211 + $0x60] sm:$0xf]
        %v364 = vld [vmem:[%s211 + $0x64] sm:$0xf]
        %v365 = vld [vmem:[%s211 + $0x68] sm:$0xf]
        %v366 = vld [vmem:[%s211 + $0x6c] sm:$0xf]
        %v367 = vld [vmem:[%s211 + $0x70] sm:$0xf]
        %v368 = vld [vmem:[%s211 + $0x74] sm:$0xf]
        %v369 = vld [vmem:[%s211 + $0x78] sm:$0xf]
        %v370 = vld [vmem:[%s211 + $0x7c] sm:$0xf]
        %vm371 = vsmask.f32 4368
        %vm372 = vmor %vm239, %vm371
        %v374 = vshrl.u32 %v339, 16
        %v376 = vrot.slane %v374, 7
        %v377 = vshll.u32 %v339, 16
        %v379 = vor.u32 %v376, %v377
        %v380 = vrot.slane %v376, 4
        %v382 = vshrl.u32 %v340, 16
        %v384 = vrot.slane %v382, 7
        %v385 = vshll.u32 %v340, 16
        %v387 = vor.u32 %v384, %v385
        %v388 = vsel %vm372, %v380, %v387
        %v389 = vrot.slane %v384, 4
        %v391 = vshrl.u32 %v341, 16
        %v393 = vrot.slane %v391, 7
        %v394 = vshll.u32 %v341, 16
        %v396 = vor.u32 %v393, %v394
        %v397 = vrot.slane %v393, 4
        %v399 = vshrl.u32 %v342, 16
        %v401 = vrot.slane %v399, 7
        %v402 = vshll.u32 %v342, 16
        %v404 = vor.u32 %v401, %v402
        %v405 = vsel %vm372, %v397, %v404
        %v406 = vrot.slane %v401, 4
        %v408 = vshrl.u32 %v343, 16
        %v410 = vrot.slane %v408, 7
        %v411 = vshll.u32 %v343, 16
        %v413 = vor.u32 %v410, %v411
        %v414 = vrot.slane %v410, 4
        %v416 = vshrl.u32 %v344, 16
        %v418 = vrot.slane %v416, 7
        %v419 = vshll.u32 %v344, 16
        %v421 = vor.u32 %v418, %v419
        %v422 = vsel %vm372, %v414, %v421
        %v423 = vrot.slane %v418, 4
        %v425 = vshrl.u32 %v345, 16
        %v427 = vrot.slane %v425, 7
        %v428 = vshll.u32 %v345, 16
        %v430 = vor.u32 %v427, %v428
        %v431 = vrot.slane %v427, 4
        %v433 = vshrl.u32 %v346, 16
        %v435 = vrot.slane %v433, 7
        %v436 = vshll.u32 %v346, 16
        %v438 = vor.u32 %v435, %v436
        %v439 = vsel %vm372, %v431, %v438
        %v440 = vrot.slane %v435, 4
        %v442 = vshrl.u32 %v347, 16
        %v444 = vrot.slane %v442, 7
        %v445 = vshll.u32 %v347, 16
        %v447 = vor.u32 %v444, %v445
        %v448 = vrot.slane %v444, 4
        %v450 = vshrl.u32 %v348, 16
        %v452 = vrot.slane %v450, 7
        %v453 = vshll.u32 %v348, 16
        %v455 = vor.u32 %v452, %v453
        %v456 = vsel %vm372, %v448, %v455
        %v457 = vrot.slane %v452, 4
        %v459 = vshrl.u32 %v349, 16
        %v461 = vrot.slane %v459, 7
        %v462 = vshll.u32 %v349, 16
        %v464 = vor.u32 %v461, %v462
        %v465 = vrot.slane %v461, 4
        %v467 = vshrl.u32 %v350, 16
        %v469 = vrot.slane %v467, 7
        %v470 = vshll.u32 %v350, 16
        %v472 = vor.u32 %v469, %v470
        %v473 = vsel %vm372, %v465, %v472
        %v474 = vrot.slane %v469, 4
        %v476 = vshrl.u32 %v351, 16
        %v478 = vrot.slane %v476, 7
        %v479 = vshll.u32 %v351, 16
        %v481 = vor.u32 %v478, %v479
        %v482 = vrot.slane %v478, 4
        %v484 = vshrl.u32 %v352, 16
        %v486 = vrot.slane %v484, 7
        %v487 = vshll.u32 %v352, 16
        %v489 = vor.u32 %v486, %v487
        %v490 = vsel %vm372, %v482, %v489
        %v491 = vrot.slane %v486, 4
        %v493 = vshrl.u32 %v353, 16
        %v495 = vrot.slane %v493, 7
        %v496 = vshll.u32 %v353, 16
        %v498 = vor.u32 %v495, %v496
        %v499 = vrot.slane %v495, 4
        %v501 = vshrl.u32 %v354, 16
        %v503 = vrot.slane %v501, 7
        %v504 = vshll.u32 %v354, 16
        %v506 = vor.u32 %v503, %v504
        %v507 = vsel %vm372, %v499, %v506
        %v508 = vrot.slane %v503, 4
        %v510 = vshrl.u32 %v355, 16
        %v512 = vrot.slane %v510, 7
        %v513 = vshll.u32 %v355, 16
        %v515 = vor.u32 %v512, %v513
        %v516 = vrot.slane %v512, 4
        %v518 = vshrl.u32 %v356, 16
        %v520 = vrot.slane %v518, 7
        %v521 = vshll.u32 %v356, 16
        %v523 = vor.u32 %v520, %v521
        %v524 = vsel %vm372, %v516, %v523
        %v525 = vrot.slane %v520, 4
        %v527 = vshrl.u32 %v357, 16
        %v529 = vrot.slane %v527, 7
        %v530 = vshll.u32 %v357, 16
        %v532 = vor.u32 %v529, %v530
        %v533 = vrot.slane %v529, 4
        %v535 = vshrl.u32 %v358, 16
        %v537 = vrot.slane %v535, 7
        %v538 = vshll.u32 %v358, 16
        %v540 = vor.u32 %v537, %v538
        %v541 = vsel %vm372, %v533, %v540
        %v542 = vrot.slane %v537, 4
        %v544 = vshrl.u32 %v359, 16
        %v546 = vrot.slane %v544, 7
        %v547 = vshll.u32 %v359, 16
        %v549 = vor.u32 %v546, %v547
        %v550 = vrot.slane %v546, 4
        %v552 = vshrl.u32 %v360, 16
        %v554 = vrot.slane %v552, 7
        %v555 = vshll.u32 %v360, 16
        %v557 = vor.u32 %v554, %v555
        %v558 = vsel %vm372, %v550, %v557
        %v559 = vrot.slane %v554, 4
        %v561 = vshrl.u32 %v361, 16
        %v563 = vrot.slane %v561, 7
        %v564 = vshll.u32 %v361, 16
        %v566 = vor.u32 %v563, %v564
        %v567 = vrot.slane %v563, 4
        %v569 = vshrl.u32 %v362, 16
        %v571 = vrot.slane %v569, 7
        %v572 = vshll.u32 %v362, 16
        %v574 = vor.u32 %v571, %v572
        %v575 = vsel %vm372, %v567, %v574
        %v576 = vrot.slane %v571, 4
        %v578 = vshrl.u32 %v363, 16
        %v580 = vrot.slane %v578, 7
        %v581 = vshll.u32 %v363, 16
        %v583 = vor.u32 %v580, %v581
        %v584 = vrot.slane %v580, 4
        %v586 = vshrl.u32 %v364, 16
        %v588 = vrot.slane %v586, 7
        %v589 = vshll.u32 %v364, 16
        %v591 = vor.u32 %v588, %v589
        %v592 = vsel %vm372, %v584, %v591
        %v593 = vrot.slane %v588, 4
        %v595 = vshrl.u32 %v365, 16
        %v597 = vrot.slane %v595, 7
        %v598 = vshll.u32 %v365, 16
        %v600 = vor.u32 %v597, %v598
        %v601 = vrot.slane %v597, 4
        %v603 = vshrl.u32 %v366, 16
        %v605 = vrot.slane %v603, 7
        %v606 = vshll.u32 %v366, 16
        %v608 = vor.u32 %v605, %v606
        %v609 = vsel %vm372, %v601, %v608
        %v610 = vrot.slane %v605, 4
        %v612 = vshrl.u32 %v367, 16
        %v614 = vrot.slane %v612, 7
        %v615 = vshll.u32 %v367, 16
        %v617 = vor.u32 %v614, %v615
        %v618 = vrot.slane %v614, 4
        %v620 = vshrl.u32 %v368, 16
        %v622 = vrot.slane %v620, 7
        %v623 = vshll.u32 %v368, 16
        %v625 = vor.u32 %v622, %v623
        %v626 = vsel %vm372, %v618, %v625
        %v627 = vrot.slane %v622, 4
        %v629 = vshrl.u32 %v369, 16
        %v631 = vrot.slane %v629, 7
        %v632 = vshll.u32 %v369, 16
        %v634 = vor.u32 %v631, %v632
        %v635 = vrot.slane %v631, 4
        %v637 = vshrl.u32 %v370, 16
        %v639 = vrot.slane %v637, 7
        %v640 = vshll.u32 %v370, 16
        %v642 = vor.u32 %v639, %v640
        %v643 = vsel %vm372, %v635, %v642
        %v644 = vrot.slane %v639, 4
        %vm693 = vcmask 27648
        %vm694 = vmand %vm693, %vm289
        %v695 = vld [vmem:[%s237] sm:$0xf]
        %v696 = vsel %vm694, %v379, %v695
        %697 = vst [vmem:[%s237] sm:$0xf] %v696
        %698 = vst.msk [vmem:[%s237 + $0x4] sm:$0xf] %vm228, %v388
        %v699 = vld [vmem:[%s237 + $0x8] sm:$0x1]
        %v700 = vsel %vm240, %v389, %v699
        %701 = vst [vmem:[%s237 + $0x8] sm:$0x1] %v700
        %v702 = vld [vmem:[%s237 + $0xc] sm:$0xf]
        %v703 = vsel %vm694, %v396, %v702
        %704 = vst [vmem:[%s237 + $0xc] sm:$0xf] %v703
        %705 = vst.msk [vmem:[%s237 + $0x10] sm:$0xf] %vm228, %v405
        %v706 = vld [vmem:[%s237 + $0x14] sm:$0x1]
        %v707 = vsel %vm240, %v406, %v706
        %708 = vst [vmem:[%s237 + $0x14] sm:$0x1] %v707
        %v709 = vld [vmem:[%s237 + $0x18] sm:$0xf]
        %v710 = vsel %vm694, %v413, %v709
        %711 = vst [vmem:[%s237 + $0x18] sm:$0xf] %v710
        %712 = vst.msk [vmem:[%s237 + $0x1c] sm:$0xf] %vm228, %v422
        %v713 = vld [vmem:[%s237 + $0x20] sm:$0x1]
        %v714 = vsel %vm240, %v423, %v713
        %715 = vst [vmem:[%s237 + $0x20] sm:$0x1] %v714
        %v716 = vld [vmem:[%s237 + $0x24] sm:$0xf]
        %v717 = vsel %vm694, %v430, %v716
        %718 = vst [vmem:[%s237 + $0x24] sm:$0xf] %v717
        %719 = vst.msk [vmem:[%s237 + $0x28] sm:$0xf] %vm228, %v439
        %v720 = vld [vmem:[%s237 + $0x2c] sm:$0x1]
        %v721 = vsel %vm240, %v440, %v720
        %722 = vst [vmem:[%s237 + $0x2c] sm:$0x1] %v721
        %v723 = vld [vmem:[%s237 + $0x30] sm:$0xf]
        %v724 = vsel %vm694, %v447, %v723
        %725 = vst [vmem:[%s237 + $0x30] sm:$0xf] %v724
        %726 = vst.msk [vmem:[%s237 + $0x34] sm:$0xf] %vm228, %v456
        %v727 = vld [vmem:[%s237 + $0x38] sm:$0x1]
        %v728 = vsel %vm240, %v457, %v727
        %729 = vst [vmem:[%s237 + $0x38] sm:$0x1] %v728
        %v730 = vld [vmem:[%s237 + $0x3c] sm:$0xf]
        %v731 = vsel %vm694, %v464, %v730
        %732 = vst [vmem:[%s237 + $0x3c] sm:$0xf] %v731
        %733 = vst.msk [vmem:[%s237 + $0x40] sm:$0xf] %vm228, %v473
        %v734 = vld [vmem:[%s237 + $0x44] sm:$0x1]
        %v735 = vsel %vm240, %v474, %v734
        %736 = vst [vmem:[%s237 + $0x44] sm:$0x1] %v735
        %v737 = vld [vmem:[%s237 + $0x48] sm:$0xf]
        %v738 = vsel %vm694, %v481, %v737
        %739 = vst [vmem:[%s237 + $0x48] sm:$0xf] %v738
        %740 = vst.msk [vmem:[%s237 + $0x4c] sm:$0xf] %vm228, %v490
        %v741 = vld [vmem:[%s237 + $0x50] sm:$0x1]
        %v742 = vsel %vm240, %v491, %v741
        %743 = vst [vmem:[%s237 + $0x50] sm:$0x1] %v742
        %v744 = vld [vmem:[%s237 + $0x54] sm:$0xf]
        %v745 = vsel %vm694, %v498, %v744
        %746 = vst [vmem:[%s237 + $0x54] sm:$0xf] %v745
        %747 = vst.msk [vmem:[%s237 + $0x58] sm:$0xf] %vm228, %v507
        %v748 = vld [vmem:[%s237 + $0x5c] sm:$0x1]
        %v749 = vsel %vm240, %v508, %v748
        %750 = vst [vmem:[%s237 + $0x5c] sm:$0x1] %v749
        %v751 = vld [vmem:[%s237 + $0x60] sm:$0xf]
        %v752 = vsel %vm694, %v515, %v751
        %753 = vst [vmem:[%s237 + $0x60] sm:$0xf] %v752
        %754 = vst.msk [vmem:[%s237 + $0x64] sm:$0xf] %vm228, %v524
        %v755 = vld [vmem:[%s237 + $0x68] sm:$0x1]
        %v756 = vsel %vm240, %v525, %v755
        %757 = vst [vmem:[%s237 + $0x68] sm:$0x1] %v756
        %v758 = vld [vmem:[%s237 + $0x6c] sm:$0xf]
        %v759 = vsel %vm694, %v532, %v758
        %760 = vst [vmem:[%s237 + $0x6c] sm:$0xf] %v759
        %761 = vst.msk [vmem:[%s237 + $0x70] sm:$0xf] %vm228, %v541
        %v762 = vld [vmem:[%s237 + $0x74] sm:$0x1]
        %v763 = vsel %vm240, %v542, %v762
        %764 = vst [vmem:[%s237 + $0x74] sm:$0x1] %v763
        %v765 = vld [vmem:[%s237 + $0x78] sm:$0xf]
        %v766 = vsel %vm694, %v549, %v765
        %767 = vst [vmem:[%s237 + $0x78] sm:$0xf] %v766
        %768 = vst.msk [vmem:[%s237 + $0x7c] sm:$0xf] %vm228, %v558
        %v769 = vld [vmem:[%s237 + $0x80] sm:$0x1]
        %v770 = vsel %vm240, %v559, %v769
        %771 = vst [vmem:[%s237 + $0x80] sm:$0x1] %v770
        %v772 = vld [vmem:[%s237 + $0x84] sm:$0xf]
        %v773 = vsel %vm694, %v566, %v772
        %774 = vst [vmem:[%s237 + $0x84] sm:$0xf] %v773
        %775 = vst.msk [vmem:[%s237 + $0x88] sm:$0xf] %vm228, %v575
        %v776 = vld [vmem:[%s237 + $0x8c] sm:$0x1]
        %v777 = vsel %vm240, %v576, %v776
        %778 = vst [vmem:[%s237 + $0x8c] sm:$0x1] %v777
        %v779 = vld [vmem:[%s237 + $0x90] sm:$0xf]
        %v780 = vsel %vm694, %v583, %v779
        %781 = vst [vmem:[%s237 + $0x90] sm:$0xf] %v780
        %782 = vst.msk [vmem:[%s237 + $0x94] sm:$0xf] %vm228, %v592
        %v783 = vld [vmem:[%s237 + $0x98] sm:$0x1]
        %v784 = vsel %vm240, %v593, %v783
        %785 = vst [vmem:[%s237 + $0x98] sm:$0x1] %v784
        %v786 = vld [vmem:[%s237 + $0x9c] sm:$0xf]
        %v787 = vsel %vm694, %v600, %v786
        %788 = vst [vmem:[%s237 + $0x9c] sm:$0xf] %v787
        %789 = vst.msk [vmem:[%s237 + $0xa0] sm:$0xf] %vm228, %v609
        %v790 = vld [vmem:[%s237 + $0xa4] sm:$0x1]
        %v791 = vsel %vm240, %v610, %v790
        %792 = vst [vmem:[%s237 + $0xa4] sm:$0x1] %v791
        %v793 = vld [vmem:[%s237 + $0xa8] sm:$0xf]
        %v794 = vsel %vm694, %v617, %v793
        %795 = vst [vmem:[%s237 + $0xa8] sm:$0xf] %v794
        %796 = vst.msk [vmem:[%s237 + $0xac] sm:$0xf] %vm228, %v626
        %v797 = vld [vmem:[%s237 + $0xb0] sm:$0x1]
        %v798 = vsel %vm240, %v627, %v797
        %799 = vst [vmem:[%s237 + $0xb0] sm:$0x1] %v798
        %v800 = vld [vmem:[%s237 + $0xb4] sm:$0xf]
        %v801 = vsel %vm694, %v634, %v800
        %802 = vst [vmem:[%s237 + $0xb4] sm:$0xf] %v801
        %803 = vst.msk [vmem:[%s237 + $0xb8] sm:$0xf] %vm228, %v643
        %v804 = vld [vmem:[%s237 + $0xbc] sm:$0x1]
        %v805 = vsel %vm240, %v644, %v804
        %806 = vst [vmem:[%s237 + $0xbc] sm:$0x1] %v805
      $region40: #{bottleneck_forward.4} parent=35 // pred_fallthru
        _
      %s807 = smul.u32 %s20, 8
      %s808 = smul.u32 %s807, 3
      %s809 = smul.addr %s808, 4
      %s810 = scalar_lea.vmem [#allocation2], %s809
      %v811 = vld [vmem:[%s810] sm:$0xf]
      %v812 = vld [vmem:[%s810 + $0x4] sm:$0xf]
      %v813 = vld [vmem:[%s810 + $0xc] sm:$0xf]
      %v814 = vld [vmem:[%s810 + $0x10] sm:$0xf]
      %v815 = vld [vmem:[%s810 + $0x18] sm:$0xf]
      %v816 = vld [vmem:[%s810 + $0x1c] sm:$0xf]
      %v817 = vld [vmem:[%s810 + $0x24] sm:$0xf]
      %v818 = vld [vmem:[%s810 + $0x28] sm:$0xf]
      %v819 = vld [vmem:[%s810 + $0x30] sm:$0xf]
      %v820 = vld [vmem:[%s810 + $0x34] sm:$0xf]
      %v821 = vld [vmem:[%s810 + $0x3c] sm:$0xf]
      %v822 = vld [vmem:[%s810 + $0x40] sm:$0xf]
      %v823 = vld [vmem:[%s810 + $0x48] sm:$0xf]
      %v824 = vld [vmem:[%s810 + $0x4c] sm:$0xf]
      %v825 = vld [vmem:[%s810 + $0x54] sm:$0xf]
      %v826 = vld [vmem:[%s810 + $0x58] sm:$0xf]
      %v827 = vld [vmem:[%s810 + $0x8] sm:$0x1]
      %v828 = vld [vmem:[%s810 + $0x14] sm:$0x1]
      %v829 = vld [vmem:[%s810 + $0x20] sm:$0x1]
      %v830 = vld [vmem:[%s810 + $0x2c] sm:$0x1]
      %v831 = vld [vmem:[%s810 + $0x38] sm:$0x1]
      %v832 = vld [vmem:[%s810 + $0x44] sm:$0x1]
      %v833 = vld [vmem:[%s810 + $0x50] sm:$0x1]
      %v834 = vld [vmem:[%s810 + $0x5c] sm:$0x1]
      %v835 = vld [vmem:[%s810] sm:$0xe]
      %v836 = vld [vmem:[%s810 + $0xc] sm:$0xe]
      %v837 = vld [vmem:[%s810 + $0x18] sm:$0xe]
      %v838 = vld [vmem:[%s810 + $0x24] sm:$0xe]
      %v839 = vld [vmem:[%s810 + $0x30] sm:$0xe]
      %v840 = vld [vmem:[%s810 + $0x3c] sm:$0xe]
      %v841 = vld [vmem:[%s810 + $0x48] sm:$0xe]
      %v842 = vld [vmem:[%s810 + $0x54] sm:$0xe]
      %v859 = vunpack.c.l.b16 %v811
      %v860 = vunpack.c.l.b16 %v812
      %v861 = vunpack.c.l.b16 %v813
      %v862 = vunpack.c.l.b16 %v814
      %v863 = vunpack.c.l.b16 %v815
      %v864 = vunpack.c.l.b16 %v816
      %v865 = vunpack.c.l.b16 %v817
      %v866 = vunpack.c.l.b16 %v818
      %v867 = vunpack.c.l.b16 %v819
      %v868 = vunpack.c.l.b16 %v820
      %v869 = vunpack.c.l.b16 %v821
      %v870 = vunpack.c.l.b16 %v822
      %v871 = vunpack.c.l.b16 %v823
      %v872 = vunpack.c.l.b16 %v824
      %v873 = vunpack.c.l.b16 %v825
      %v874 = vunpack.c.l.b16 %v826
      %v875 = vpack.c.b16 %v860, %v859
      %v876 = vpack.c.b16 %v862, %v861
      %v877 = vpack.c.b16 %v864, %v863
      %v878 = vpack.c.b16 %v866, %v865
      %v879 = vpack.c.b16 %v868, %v867
      %v880 = vpack.c.b16 %v870, %v869
      %v881 = vpack.c.b16 %v872, %v871
      %v882 = vpack.c.b16 %v874, %v873
      %v891 = vunpack.c.l.b16 %v827
      %v892 = vunpack.c.l.b16 %v828
      %v893 = vunpack.c.l.b16 %v829
      %v894 = vunpack.c.l.b16 %v830
      %v895 = vunpack.c.l.b16 %v831
      %v896 = vunpack.c.l.b16 %v832
      %v897 = vunpack.c.l.b16 %v833
      %v898 = vunpack.c.l.b16 %v834
      %v899 = vpack.c.b16 %v891, %v891
      %v900 = vpack.c.b16 %v892, %v892
      %v901 = vpack.c.b16 %v893, %v893
      %v902 = vpack.c.b16 %v894, %v894
      %v903 = vpack.c.b16 %v895, %v895
      %v904 = vpack.c.b16 %v896, %v896
      %v905 = vpack.c.b16 %v897, %v897
      %v906 = vpack.c.b16 %v898, %v898
      %vm907 = vsmask.f32 7424
      %v909 = vshrl.u32 %v875, 16
      %v911 = vshll.u32 %v875, 16
      %v913 = vrot.slane %v911, 1
      %v914 = vor.u32 %v909, %v913
      %v916 = vshll.u32 %v899, 16
      %v918 = vrot.slane %v916, 1
      %v919 = vsel %vm907, %v914, %v918
      %v921 = vshrl.u32 %v876, 16
      %v923 = vshll.u32 %v876, 16
      %v925 = vrot.slane %v923, 1
      %v926 = vor.u32 %v921, %v925
      %v928 = vshll.u32 %v900, 16
      %v930 = vrot.slane %v928, 1
      %v931 = vsel %vm907, %v926, %v930
      %v933 = vshrl.u32 %v877, 16
      %v935 = vshll.u32 %v877, 16
      %v937 = vrot.slane %v935, 1
      %v938 = vor.u32 %v933, %v937
      %v940 = vshll.u32 %v901, 16
      %v942 = vrot.slane %v940, 1
      %v943 = vsel %vm907, %v938, %v942
      %v945 = vshrl.u32 %v878, 16
      %v947 = vshll.u32 %v878, 16
      %v949 = vrot.slane %v947, 1
      %v950 = vor.u32 %v945, %v949
      %v952 = vshll.u32 %v902, 16
      %v954 = vrot.slane %v952, 1
      %v955 = vsel %vm907, %v950, %v954
      %v957 = vshrl.u32 %v879, 16
      %v959 = vshll.u32 %v879, 16
      %v961 = vrot.slane %v959, 1
      %v962 = vor.u32 %v957, %v961
      %v964 = vshll.u32 %v903, 16
      %v966 = vrot.slane %v964, 1
      %v967 = vsel %vm907, %v962, %v966
      %v969 = vshrl.u32 %v880, 16
      %v971 = vshll.u32 %v880, 16
      %v973 = vrot.slane %v971, 1
      %v974 = vor.u32 %v969, %v973
      %v976 = vshll.u32 %v904, 16
      %v978 = vrot.slane %v976, 1
      %v979 = vsel %vm907, %v974, %v978
      %v981 = vshrl.u32 %v881, 16
      %v983 = vshll.u32 %v881, 16
      %v985 = vrot.slane %v983, 1
      %v986 = vor.u32 %v981, %v985
      %v988 = vshll.u32 %v905, 16
      %v990 = vrot.slane %v988, 1
      %v991 = vsel %vm907, %v986, %v990
      %v993 = vshrl.u32 %v882, 16
      %v995 = vshll.u32 %v882, 16
      %v997 = vrot.slane %v995, 1
      %v998 = vor.u32 %v993, %v997
      %v1000 = vshll.u32 %v906, 16
      %v1002 = vrot.slane %v1000, 1
      %v1003 = vsel %vm907, %v998, %v1002
      %1004 = vrot.lane.b32.xlu0 %v919, 4
      %v1005 = vpop.permute.xlu0 %1004
      %1006 = vrot.lane.b32.xlu0 %v931, 4
      %v1007 = vpop.permute.xlu0 %1006
      %1008 = vrot.lane.b32.xlu0 %v943, 4
      %v1009 = vpop.permute.xlu0 %1008
      %1010 = vrot.lane.b32.xlu0 %v955, 4
      %v1011 = vpop.permute.xlu0 %1010
      %1012 = vrot.lane.b32.xlu0 %v967, 4
      %v1013 = vpop.permute.xlu0 %1012
      %1014 = vrot.lane.b32.xlu0 %v979, 4
      %v1015 = vpop.permute.xlu0 %1014
      %1016 = vrot.lane.b32.xlu0 %v991, 4
      %v1017 = vpop.permute.xlu0 %1016
      %1018 = vrot.lane.b32.xlu0 %v1003, 4
      %v1019 = vpop.permute.xlu0 %1018
      %v1028 = vunpack.c.l.b16 %v835
      %v1029 = vunpack.c.l.b16 %v836
      %v1030 = vunpack.c.l.b16 %v837
      %v1031 = vunpack.c.l.b16 %v838
      %v1032 = vunpack.c.l.b16 %v839
      %v1033 = vunpack.c.l.b16 %v840
      %v1034 = vunpack.c.l.b16 %v841
      %v1035 = vunpack.c.l.b16 %v842
      %v1036 = vpack.c.b16 %v860, %v1028
      %v1037 = vpack.c.b16 %v862, %v1029
      %v1038 = vpack.c.b16 %v864, %v1030
      %v1039 = vpack.c.b16 %v866, %v1031
      %v1040 = vpack.c.b16 %v868, %v1032
      %v1041 = vpack.c.b16 %v870, %v1033
      %v1042 = vpack.c.b16 %v872, %v1034
      %v1043 = vpack.c.b16 %v874, %v1035
      %vm1044 = vcmask 1046528
      %v1045 = vrot.slane %v1036, 1
      %v1046 = vrot.slane %v899, 1
      %v1047 = vsel %vm1044, %v1045, %v1046
      %v1048 = vrot.slane %v1037, 1
      %v1049 = vrot.slane %v900, 1
      %v1050 = vsel %vm1044, %v1048, %v1049
      %v1051 = vrot.slane %v1038, 1
      %v1052 = vrot.slane %v901, 1
      %v1053 = vsel %vm1044, %v1051, %v1052
      %v1054 = vrot.slane %v1039, 1
      %v1055 = vrot.slane %v902, 1
      %v1056 = vsel %vm1044, %v1054, %v1055
      %v1057 = vrot.slane %v1040, 1
      %v1058 = vrot.slane %v903, 1
      %v1059 = vsel %vm1044, %v1057, %v1058
      %v1060 = vrot.slane %v1041, 1
      %v1061 = vrot.slane %v904, 1
      %v1062 = vsel %vm1044, %v1060, %v1061
      %v1063 = vrot.slane %v1042, 1
      %v1064 = vrot.slane %v905, 1
      %v1065 = vsel %vm1044, %v1063, %v1064
      %v1066 = vrot.slane %v1043, 1
      %v1067 = vrot.slane %v906, 1
      %v1068 = vsel %vm1044, %v1066, %v1067
      %1069 = vrot.lane.b32.xlu0 %v1047, 8
      %v1070 = vpop.permute.xlu0 %1069
      %1071 = vrot.lane.b32.xlu0 %v1050, 8
      %v1072 = vpop.permute.xlu0 %1071
      %1073 = vrot.lane.b32.xlu0 %v1053, 8
      %v1074 = vpop.permute.xlu0 %1073
      %1075 = vrot.lane.b32.xlu0 %v1056, 8
      %v1076 = vpop.permute.xlu0 %1075
      %1077 = vrot.lane.b32.xlu0 %v1059, 8
      %v1078 = vpop.permute.xlu0 %1077
      %1079 = vrot.lane.b32.xlu0 %v1062, 8
      %v1080 = vpop.permute.xlu0 %1079
      %1081 = vrot.lane.b32.xlu0 %v1065, 8
      %v1082 = vpop.permute.xlu0 %1081
      %1083 = vrot.lane.b32.xlu0 %v1068, 8
      %v1084 = vpop.permute.xlu0 %1083
      %vm1085 = vcmask 31744
      %v1087 = vsel %vm1085, %v875, %v1005
      %v1089 = vsel %vm1085, %v876, %v1007
      %v1091 = vsel %vm1085, %v877, %v1009
      %v1093 = vsel %vm1085, %v878, %v1011
      %v1095 = vsel %vm1085, %v879, %v1013
      %v1097 = vsel %vm1085, %v880, %v1015
      %v1099 = vsel %vm1085, %v881, %v1017
      %v1101 = vsel %vm1085, %v882, %v1019
      %vm1102 = vcmask 64512
      %v1104 = vsel %vm1102, %v1087, %v1070
      %v1106 = vsel %vm1102, %v1089, %v1072
      %v1108 = vsel %vm1102, %v1091, %v1074
      %v1110 = vsel %vm1102, %v1093, %v1076
      %v1112 = vsel %vm1102, %v1095, %v1078
      %v1114 = vsel %vm1102, %v1097, %v1080
      %v1116 = vsel %vm1102, %v1099, %v1082
      %v1118 = vsel %vm1102, %v1101, %v1084
      %v1119 = vld [vmem:[%s1] sm:$0xf]
      %v1120 = vld [vmem:[%s1 + $0x4] sm:$0x3]
      %s1121 = sadd.s32 %s807, 1
      %s1122 = smul.u32 %s1121, 3
      %s1123 = smul.addr %s1122, 4
      %s1124 = scalar_lea.vmem [#allocation2], %s1123
      %v1125 = vld [vmem:[%s1124] sm:$0xf]
      %v1126 = vld [vmem:[%s1124 + $0x4] sm:$0xf]
      %v1127 = vld [vmem:[%s1124 + $0xc] sm:$0xf]
      %v1128 = vld [vmem:[%s1124 + $0x10] sm:$0xf]
      %v1129 = vld [vmem:[%s1124 + $0x18] sm:$0xf]
      %v1130 = vld [vmem:[%s1124 + $0x1c] sm:$0xf]
      %v1131 = vld [vmem:[%s1124 + $0x24] sm:$0xf]
      %v1132 = vld [vmem:[%s1124 + $0x28] sm:$0xf]
      %v1133 = vld [vmem:[%s1124 + $0x30] sm:$0xf]
      %v1134 = vld [vmem:[%s1124 + $0x34] sm:$0xf]
      %v1135 = vld [vmem:[%s1124 + $0x3c] sm:$0xf]
      %v1136 = vld [vmem:[%s1124 + $0x40] sm:$0xf]
      %v1137 = vld [vmem:[%s1124 + $0x48] sm:$0xf]
      %v1138 = vld [vmem:[%s1124 + $0x4c] sm:$0xf]
      %v1139 = vld [vmem:[%s1124 + $0x54] sm:$0xf]
      %v1140 = vld [vmem:[%s1124 + $0x58] sm:$0xf]
      %v1141 = vld [vmem:[%s1124 + $0x8] sm:$0x1]
      %v1142 = vld [vmem:[%s1124 + $0x14] sm:$0x1]
      %v1143 = vld [vmem:[%s1124 + $0x20] sm:$0x1]
      %v1144 = vld [vmem:[%s1124 + $0x2c] sm:$0x1]
      %v1145 = vld [vmem:[%s1124 + $0x38] sm:$0x1]
      %v1146 = vld [vmem:[%s1124 + $0x44] sm:$0x1]
      %v1147 = vld [vmem:[%s1124 + $0x50] sm:$0x1]
      %v1148 = vld [vmem:[%s1124 + $0x5c] sm:$0x1]
      %v1149 = vld [vmem:[%s1124] sm:$0xe]
      %v1150 = vld [vmem:[%s1124 + $0xc] sm:$0xe]
      %v1151 = vld [vmem:[%s1124 + $0x18] sm:$0xe]
      %v1152 = vld [vmem:[%s1124 + $0x24] sm:$0xe]
      %v1153 = vld [vmem:[%s1124 + $0x30] sm:$0xe]
      %v1154 = vld [vmem:[%s1124 + $0x3c] sm:$0xe]
      %v1155 = vld [vmem:[%s1124 + $0x48] sm:$0xe]
      %v1156 = vld [vmem:[%s1124 + $0x54] sm:$0xe]
      %v1173 = vunpack.c.l.b16 %v1125
      %v1174 = vunpack.c.l.b16 %v1126
      %v1175 = vunpack.c.l.b16 %v1127
      %v1176 = vunpack.c.l.b16 %v1128
      %v1177 = vunpack.c.l.b16 %v1129
      %v1178 = vunpack.c.l.b16 %v1130
      %v1179 = vunpack.c.l.b16 %v1131
      %v1180 = vunpack.c.l.b16 %v1132
      %v1181 = vunpack.c.l.b16 %v1133
      %v1182 = vunpack.c.l.b16 %v1134
      %v1183 = vunpack.c.l.b16 %v1135
      %v1184 = vunpack.c.l.b16 %v1136
      %v1185 = vunpack.c.l.b16 %v1137
      %v1186 = vunpack.c.l.b16 %v1138
      %v1187 = vunpack.c.l.b16 %v1139
      %v1188 = vunpack.c.l.b16 %v1140
      %v1189 = vpack.c.b16 %v1174, %v1173
      %v1190 = vpack.c.b16 %v1176, %v1175
      %v1191 = vpack.c.b16 %v1178, %v1177
      %v1192 = vpack.c.b16 %v1180, %v1179
      %v1193 = vpack.c.b16 %v1182, %v1181
      %v1194 = vpack.c.b16 %v1184, %v1183
      %v1195 = vpack.c.b16 %v1186, %v1185
      %v1196 = vpack.c.b16 %v1188, %v1187
      %v1205 = vunpack.c.l.b16 %v1141
      %v1206 = vunpack.c.l.b16 %v1142
      %v1207 = vunpack.c.l.b16 %v1143
      %v1208 = vunpack.c.l.b16 %v1144
      %v1209 = vunpack.c.l.b16 %v1145
      %v1210 = vunpack.c.l.b16 %v1146
      %v1211 = vunpack.c.l.b16 %v1147
      %v1212 = vunpack.c.l.b16 %v1148
      %v1213 = vpack.c.b16 %v1205, %v1205
      %v1214 = vpack.c.b16 %v1206, %v1206
      %v1215 = vpack.c.b16 %v1207, %v1207
      %v1216 = vpack.c.b16 %v1208, %v1208
      %v1217 = vpack.c.b16 %v1209, %v1209
      %v1218 = vpack.c.b16 %v1210, %v1210
      %v1219 = vpack.c.b16 %v1211, %v1211
      %v1220 = vpack.c.b16 %v1212, %v1212
      %v1222 = vshrl.u32 %v1189, 16
      %v1224 = vshll.u32 %v1189, 16
      %v1226 = vrot.slane %v1224, 1
      %v1227 = vor.u32 %v1222, %v1226
      %v1229 = vshll.u32 %v1213, 16
      %v1231 = vrot.slane %v1229, 1
      %v1232 = vsel %vm907, %v1227, %v1231
      %v1234 = vshrl.u32 %v1190, 16
      %v1236 = vshll.u32 %v1190, 16
      %v1238 = vrot.slane %v1236, 1
      %v1239 = vor.u32 %v1234, %v1238
      %v1241 = vshll.u32 %v1214, 16
      %v1243 = vrot.slane %v1241, 1
      %v1244 = vsel %vm907, %v1239, %v1243
      %v1246 = vshrl.u32 %v1191, 16
      %v1248 = vshll.u32 %v1191, 16
      %v1250 = vrot.slane %v1248, 1
      %v1251 = vor.u32 %v1246, %v1250
      %v1253 = vshll.u32 %v1215, 16
      %v1255 = vrot.slane %v1253, 1
      %v1256 = vsel %vm907, %v1251, %v1255
      %v1258 = vshrl.u32 %v1192, 16
      %v1260 = vshll.u32 %v1192, 16
      %v1262 = vrot.slane %v1260, 1
      %v1263 = vor.u32 %v1258, %v1262
      %v1265 = vshll.u32 %v1216, 16
      %v1267 = vrot.slane %v1265, 1
      %v1268 = vsel %vm907, %v1263, %v1267
      %v1270 = vshrl.u32 %v1193, 16
      %v1272 = vshll.u32 %v1193, 16
      %v1274 = vrot.slane %v1272, 1
      %v1275 = vor.u32 %v1270, %v1274
      %v1277 = vshll.u32 %v1217, 16
      %v1279 = vrot.slane %v1277, 1
      %v1280 = vsel %vm907, %v1275, %v1279
      %v1282 = vshrl.u32 %v1194, 16
      %v1284 = vshll.u32 %v1194, 16
      %v1286 = vrot.slane %v1284, 1
      %v1287 = vor.u32 %v1282, %v1286
      %v1289 = vshll.u32 %v1218, 16
      %v1291 = vrot.slane %v1289, 1
      %v1292 = vsel %vm907, %v1287, %v1291
      %v1294 = vshrl.u32 %v1195, 16
      %v1296 = vshll.u32 %v1195, 16
      %v1298 = vrot.slane %v1296, 1
      %v1299 = vor.u32 %v1294, %v1298
      %v1301 = vshll.u32 %v1219, 16
      %v1303 = vrot.slane %v1301, 1
      %v1304 = vsel %vm907, %v1299, %v1303
      %v1306 = vshrl.u32 %v1196, 16
      %v1308 = vshll.u32 %v1196, 16
      %v1310 = vrot.slane %v1308, 1
      %v1311 = vor.u32 %v1306, %v1310
      %v1313 = vshll.u32 %v1220, 16
      %v1315 = vrot.slane %v1313, 1
      %v1316 = vsel %vm907, %v1311, %v1315
      %1317 = vrot.lane.b32.xlu0 %v1232, 4
      %v1318 = vpop.permute.xlu0 %1317
      %1319 = vrot.lane.b32.xlu0 %v1244, 4
      %v1320 = vpop.permute.xlu0 %1319
      %1321 = vrot.lane.b32.xlu0 %v1256, 4
      %v1322 = vpop.permute.xlu0 %1321
      %1323 = vrot.lane.b32.xlu0 %v1268, 4
      %v1324 = vpop.permute.xlu0 %1323
      %1325 = vrot.lane.b32.xlu0 %v1280, 4
      %v1326 = vpop.permute.xlu0 %1325
      %1327 = vrot.lane.b32.xlu0 %v1292, 4
      %v1328 = vpop.permute.xlu0 %1327
      %1329 = vrot.lane.b32.xlu0 %v1304, 4
      %v1330 = vpop.permute.xlu0 %1329
      %1331 = vrot.lane.b32.xlu0 %v1316, 4
      %v1332 = vpop.permute.xlu0 %1331
      %v1341 = vunpack.c.l.b16 %v1149
      %v1342 = vunpack.c.l.b16 %v1150
      %v1343 = vunpack.c.l.b16 %v1151
      %v1344 = vunpack.c.l.b16 %v1152
      %v1345 = vunpack.c.l.b16 %v1153
      %v1346 = vunpack.c.l.b16 %v1154
      %v1347 = vunpack.c.l.b16 %v1155
      %v1348 = vunpack.c.l.b16 %v1156
      %v1349 = vpack.c.b16 %v1174, %v1341
      %v1350 = vpack.c.b16 %v1176, %v1342
      %v1351 = vpack.c.b16 %v1178, %v1343
      %v1352 = vpack.c.b16 %v1180, %v1344
      %v1353 = vpack.c.b16 %v1182, %v1345
      %v1354 = vpack.c.b16 %v1184, %v1346
      %v1355 = vpack.c.b16 %v1186, %v1347
      %v1356 = vpack.c.b16 %v1188, %v1348
      %v1357 = vrot.slane %v1349, 1
      %v1358 = vrot.slane %v1213, 1
      %v1359 = vsel %vm1044, %v1357, %v1358
      %v1360 = vrot.slane %v1350, 1
      %v1361 = vrot.slane %v1214, 1
      %v1362 = vsel %vm1044, %v1360, %v1361
      %v1363 = vrot.slane %v1351, 1
      %v1364 = vrot.slane %v1215, 1
      %v1365 = vsel %vm1044, %v1363, %v1364
      %v1366 = vrot.slane %v1352, 1
      %v1367 = vrot.slane %v1216, 1
      %v1368 = vsel %vm1044, %v1366, %v1367
      %v1369 = vrot.slane %v1353, 1
      %v1370 = vrot.slane %v1217, 1
      %v1371 = vsel %vm1044, %v1369, %v1370
      %v1372 = vrot.slane %v1354, 1
      %v1373 = vrot.slane %v1218, 1
      %v1374 = vsel %vm1044, %v1372, %v1373
      %v1375 = vrot.slane %v1355, 1
      %v1376 = vrot.slane %v1219, 1
      %v1377 = vsel %vm1044, %v1375, %v1376
      %v1378 = vrot.slane %v1356, 1
      %v1379 = vrot.slane %v1220, 1
      %v1380 = vsel %vm1044, %v1378, %v1379
      %1381 = vrot.lane.b32.xlu0 %v1359, 8
      %v1382 = vpop.permute.xlu0 %1381
      %1383 = vrot.lane.b32.xlu0 %v1362, 8
      %v1384 = vpop.permute.xlu0 %1383
      %1385 = vrot.lane.b32.xlu0 %v1365, 8
      %v1386 = vpop.permute.xlu0 %1385
      %1387 = vrot.lane.b32.xlu0 %v1368, 8
      %v1388 = vpop.permute.xlu0 %1387
      %1389 = vrot.lane.b32.xlu0 %v1371, 8
      %v1390 = vpop.permute.xlu0 %1389
      %1391 = vrot.lane.b32.xlu0 %v1374, 8
      %v1392 = vpop.permute.xlu0 %1391
      %1393 = vrot.lane.b32.xlu0 %v1377, 8
      %v1394 = vpop.permute.xlu0 %1393
      %1395 = vrot.lane.b32.xlu0 %v1380, 8
      %v1396 = vpop.permute.xlu0 %1395
      %v1398 = vsel %vm1085, %v1189, %v1318
      %v1400 = vsel %vm1085, %v1190, %v1320
      %v1402 = vsel %vm1085, %v1191, %v1322
      %v1404 = vsel %vm1085, %v1192, %v1324
      %v1406 = vsel %vm1085, %v1193, %v1326
      %v1408 = vsel %vm1085, %v1194, %v1328
      %v1410 = vsel %vm1085, %v1195, %v1330
      %v1412 = vsel %vm1085, %v1196, %v1332
      %v1414 = vsel %vm1102, %v1398, %v1382
      %v1416 = vsel %vm1102, %v1400, %v1384
      %v1418 = vsel %vm1102, %v1402, %v1386
      %v1420 = vsel %vm1102, %v1404, %v1388
      %v1422 = vsel %vm1102, %v1406, %v1390
      %v1424 = vsel %vm1102, %v1408, %v1392
      %v1426 = vsel %vm1102, %v1410, %v1394
      %v1428 = vsel %vm1102, %v1412, %v1396
      %s1429 = scalar_lea.vmem %s1, 8
      %v1430 = vld [vmem:[%s1429] sm:$0xf]
      %v1431 = vld [vmem:[%s1429 + $0x4] sm:$0x3]
      %v1434 = vunpack.c.l.b16 %v1430
      %v1435 = vunpack.c.l.b16 %v1431
      %v1436 = vpack.c.b16 %v1435, %v1434
      %vm1437 = vcmask 97280
      %v1438 = vsel %vm1437, %v1414, 0
      %v1440 = vsel %vm1437, %v1416, 0
      %v1442 = vsel %vm1437, %v1418, 0
      %v1444 = vsel %vm1437, %v1420, 0
      %v1446 = vsel %vm1437, %v1422, 0
      %v1448 = vsel %vm1437, %v1424, 0
      %v1450 = vsel %vm1437, %v1426, 0
      %v1452 = vsel %vm1437, %v1428, 0
      %vm1454 = vcmask 1045504
      %v1456 = vsel %vm1454, %v1436, 0
      %1458 = vmatprep.subr.bf16.mxu0 0
      %1459 = vmatpush1.bf16.msra.mxu0 0
      %1460 = vmatprep.subr.bf16.mxu0 0
      %1461 = vmatpush1.bf16.msra.mxu0 0
      %1462 = vmatprep.subr.bf16.mxu0 0
      %1463 = vmatpush1.bf16.msra.mxu0 0
      %1464 = vmatprep.subr.bf16.mxu0 0
      %1465 = vmatpush1.bf16.msra.mxu0 0
      %1466 = vmatprep.subr.bf16.mxu0 0
      %1467 = vmatpush1.bf16.msra.mxu0 0
      %1468 = vmatprep.subr.bf16.mxu0 0
      %1469 = vmatpush1.bf16.msra.mxu0 0
      %1470 = vmatprep.subr.bf16.mxu0 0
      %1471 = vmatpush1.bf16.msra.mxu0 0
      %1472 = vmatprep.subr.bf16.mxu0 0
      %1473 = vmatpush1.bf16.msra.mxu0 %v1456
      %1474 = vmatprep.subr.bf16.mxu0 0
      %1475 = vmatpush2.bf16.msra.mxu0 0
      %1476 = vmatprep.subr.bf16.mxu0 0
      %1477 = vmatpush2.bf16.msra.mxu0 0
      %1478 = vmatprep.subr.bf16.mxu0 0
      %1479 = vmatpush2.bf16.msra.mxu0 0
      %1480 = vmatprep.subr.bf16.mxu0 0
      %1481 = vmatpush2.bf16.msra.mxu0 0
      %1482 = vmatprep.subr.bf16.mxu0 0
      %1483 = vmatpush2.bf16.msra.mxu0 0
      %1484 = vmatprep.subr.bf16.mxu0 0
      %1485 = vmatpush2.bf16.msra.mxu0 0
      %1486 = vmatprep.subr.bf16.mxu0 0
      %1487 = vmatpush2.bf16.msra.mxu0 0
      %1488 = vmatprep.subr.bf16.mxu0 0
      %1489 = vmatpush2.bf16.msra.mxu0 0
      %1490 = vmatprep.mubr.bf16.mxu0 0
      %1491 = vmatmul.mubr.bf16.gmra.mxu0 %v1438
      %v1492 = vpop.f32.mrf.mxu0
      %v1493 = vadd.f32 0.0, %v1492
      %v1494 = vpop.f32.mrf.mxu0
      %v1495 = vpop.f32.mrf.mxu0
      %v1496 = vadd.f32 0.0, %v1495
      %v1497 = vpop.f32.mrf.mxu0
      %1498 = vmatprep.mubr.bf16.mxu0 0
      %1499 = vmatmul.mubr.bf16.gmra.mxu0 %v1440
      %v1500 = vpop.f32.mrf.mxu0
      %v1501 = vadd.f32 0.0, %v1500
      %v1502 = vpop.f32.mrf.mxu0
      %v1503 = vpop.f32.mrf.mxu0
      %v1504 = vadd.f32 0.0, %v1503
      %v1505 = vpop.f32.mrf.mxu0
      %1506 = vmatprep.mubr.bf16.mxu0 0
      %1507 = vmatmul.mubr.bf16.gmra.mxu0 %v1442
      %v1508 = vpop.f32.mrf.mxu0
      %v1509 = vadd.f32 0.0, %v1508
      %v1510 = vpop.f32.mrf.mxu0
      %v1511 = vpop.f32.mrf.mxu0
      %v1512 = vadd.f32 0.0, %v1511
      %v1513 = vpop.f32.mrf.mxu0
      %1514 = vmatprep.mubr.bf16.mxu0 0
      %1515 = vmatmul.mubr.bf16.gmra.mxu0 %v1444
      %v1516 = vpop.f32.mrf.mxu0
      %v1517 = vadd.f32 0.0, %v1516
      %v1518 = vpop.f32.mrf.mxu0
      %v1519 = vpop.f32.mrf.mxu0
      %v1520 = vadd.f32 0.0, %v1519
      %v1521 = vpop.f32.mrf.mxu0
      %1522 = vmatprep.mubr.bf16.mxu0 0
      %1523 = vmatmul.mubr.bf16.gmra.mxu0 %v1446
      %v1524 = vpop.f32.mrf.mxu0
      %v1525 = vadd.f32 0.0, %v1524
      %v1526 = vpop.f32.mrf.mxu0
      %v1527 = vpop.f32.mrf.mxu0
      %v1528 = vadd.f32 0.0, %v1527
      %v1529 = vpop.f32.mrf.mxu0
      %1530 = vmatprep.mubr.bf16.mxu0 0
      %1531 = vmatmul.mubr.bf16.gmra.mxu0 %v1448
      %v1532 = vpop.f32.mrf.mxu0
      %v1533 = vadd.f32 0.0, %v1532
      %v1534 = vpop.f32.mrf.mxu0
      %v1535 = vpop.f32.mrf.mxu0
      %v1536 = vadd.f32 0.0, %v1535
      %v1537 = vpop.f32.mrf.mxu0
      %1538 = vmatprep.mubr.bf16.mxu0 0
      %1539 = vmatmul.mubr.bf16.gmra.mxu0 %v1450
      %v1540 = vpop.f32.mrf.mxu0
      %v1541 = vadd.f32 0.0, %v1540
      %v1542 = vpop.f32.mrf.mxu0
      %v1543 = vpop.f32.mrf.mxu0
      %v1544 = vadd.f32 0.0, %v1543
      %v1545 = vpop.f32.mrf.mxu0
      %1546 = vmatprep.mubr.bf16.mxu0 0
      %1547 = vmatmul.mubr.bf16.gmra.mxu0 %v1452
      %v1548 = vpop.f32.mrf.mxu0
      %v1549 = vadd.f32 0.0, %v1548
      %v1550 = vpop.f32.mrf.mxu0
      %v1551 = vpop.f32.mrf.mxu0
      %v1552 = vadd.f32 0.0, %v1551
      %v1553 = vpop.f32.mrf.mxu0
      %1554 = vdwg.mxu0
      %v1557 = vunpack.c.l.b16 %v1119
      %v1558 = vunpack.c.l.b16 %v1120
      %v1559 = vpack.c.b16 %v1558, %v1557
      %v1560 = vsel %vm1437, %v1104, 0
      %v1562 = vsel %vm1437, %v1106, 0
      %v1564 = vsel %vm1437, %v1108, 0
      %v1566 = vsel %vm1437, %v1110, 0
      %v1568 = vsel %vm1437, %v1112, 0
      %v1570 = vsel %vm1437, %v1114, 0
      %v1572 = vsel %vm1437, %v1116, 0
      %v1574 = vsel %vm1437, %v1118, 0
      %v1577 = vsel %vm1454, %v1559, 0
      %1579 = vmatprep.subr.bf16.mxu0 0
      %1580 = vmatpush1.bf16.msra.mxu0 0
      %1581 = vmatprep.subr.bf16.mxu0 0
      %1582 = vmatpush1.bf16.msra.mxu0 0
      %1583 = vmatprep.subr.bf16.mxu0 0
      %1584 = vmatpush1.bf16.msra.mxu0 0
      %1585 = vmatprep.subr.bf16.mxu0 0
      %1586 = vmatpush1.bf16.msra.mxu0 0
      %1587 = vmatprep.subr.bf16.mxu0 0
      %1588 = vmatpush1.bf16.msra.mxu0 0
      %1589 = vmatprep.subr.bf16.mxu0 0
      %1590 = vmatpush1.bf16.msra.mxu0 0
      %1591 = vmatprep.subr.bf16.mxu0 0
      %1592 = vmatpush1.bf16.msra.mxu0 0
      %1593 = vmatprep.subr.bf16.mxu0 0
      %1594 = vmatpush1.bf16.msra.mxu0 %v1577
      %1595 = vmatprep.subr.bf16.mxu0 0
      %1596 = vmatpush2.bf16.msra.mxu0 0
      %1597 = vmatprep.subr.bf16.mxu0 0
      %1598 = vmatpush2.bf16.msra.mxu0 0
      %1599 = vmatprep.subr.bf16.mxu0 0
      %1600 = vmatpush2.bf16.msra.mxu0 0
      %1601 = vmatprep.subr.bf16.mxu0 0
      %1602 = vmatpush2.bf16.msra.mxu0 0
      %1603 = vmatprep.subr.bf16.mxu0 0
      %1604 = vmatpush2.bf16.msra.mxu0 0
      %1605 = vmatprep.subr.bf16.mxu0 0
      %1606 = vmatpush2.bf16.msra.mxu0 0
      %1607 = vmatprep.subr.bf16.mxu0 0
      %1608 = vmatpush2.bf16.msra.mxu0 0
      %1609 = vmatprep.subr.bf16.mxu0 0
      %1610 = vmatpush2.bf16.msra.mxu0 0
      %1611 = vmatprep.mubr.bf16.mxu0 0
      %1612 = vmatmul.mubr.bf16.gmra.mxu0 %v1560
      %v1613 = vpop.f32.mrf.mxu0
      %v1614 = vadd.f32 %v1493, %v1613
      %v1615 = vpop.f32.mrf.mxu0
      %v1616 = vpop.f32.mrf.mxu0
      %v1617 = vadd.f32 %v1496, %v1616
      %v1618 = vpop.f32.mrf.mxu0
      %1619 = vmatprep.mubr.bf16.mxu0 0
      %1620 = vmatmul.mubr.bf16.gmra.mxu0 %v1562
      %v1621 = vpop.f32.mrf.mxu0
      %v1622 = vadd.f32 %v1501, %v1621
      %v1623 = vpop.f32.mrf.mxu0
      %v1624 = vpop.f32.mrf.mxu0
      %v1625 = vadd.f32 %v1504, %v1624
      %v1626 = vpop.f32.mrf.mxu0
      %1627 = vmatprep.mubr.bf16.mxu0 0
      %1628 = vmatmul.mubr.bf16.gmra.mxu0 %v1564
      %v1629 = vpop.f32.mrf.mxu0
      %v1630 = vadd.f32 %v1509, %v1629
      %v1631 = vpop.f32.mrf.mxu0
      %v1632 = vpop.f32.mrf.mxu0
      %v1633 = vadd.f32 %v1512, %v1632
      %v1634 = vpop.f32.mrf.mxu0
      %1635 = vmatprep.mubr.bf16.mxu0 0
      %1636 = vmatmul.mubr.bf16.gmra.mxu0 %v1566
      %v1637 = vpop.f32.mrf.mxu0
      %v1638 = vadd.f32 %v1517, %v1637
      %v1639 = vpop.f32.mrf.mxu0
      %v1640 = vpop.f32.mrf.mxu0
      %v1641 = vadd.f32 %v1520, %v1640
      %v1642 = vpop.f32.mrf.mxu0
      %1643 = vmatprep.mubr.bf16.mxu0 0
      %1644 = vmatmul.mubr.bf16.gmra.mxu0 %v1568
      %v1645 = vpop.f32.mrf.mxu0
      %v1646 = vadd.f32 %v1525, %v1645
      %v1647 = vpop.f32.mrf.mxu0
      %v1648 = vpop.f32.mrf.mxu0
      %v1649 = vadd.f32 %v1528, %v1648
      %v1650 = vpop.f32.mrf.mxu0
      %1651 = vmatprep.mubr.bf16.mxu0 0
      %1652 = vmatmul.mubr.bf16.gmra.mxu0 %v1570
      %v1653 = vpop.f32.mrf.mxu0
      %v1654 = vadd.f32 %v1533, %v1653
      %v1655 = vpop.f32.mrf.mxu0
      %v1656 = vpop.f32.mrf.mxu0
      %v1657 = vadd.f32 %v1536, %v1656
      %v1658 = vpop.f32.mrf.mxu0
      %1659 = vmatprep.mubr.bf16.mxu0 0
      %1660 = vmatmul.mubr.bf16.gmra.mxu0 %v1572
      %v1661 = vpop.f32.mrf.mxu0
      %v1662 = vadd.f32 %v1541, %v1661
      %v1663 = vpop.f32.mrf.mxu0
      %v1664 = vpop.f32.mrf.mxu0
      %v1665 = vadd.f32 %v1544, %v1664
      %v1666 = vpop.f32.mrf.mxu0
      %1667 = vmatprep.mubr.bf16.mxu0 0
      %1668 = vmatmul.mubr.bf16.gmra.mxu0 %v1574
      %v1669 = vpop.f32.mrf.mxu0
      %v1670 = vadd.f32 %v1549, %v1669
      %v1671 = vpop.f32.mrf.mxu0
      %v1672 = vpop.f32.mrf.mxu0
      %v1673 = vadd.f32 %v1552, %v1672
      %v1674 = vpop.f32.mrf.mxu0
      %1675 = vdwg.mxu0
      %s1676 = sadd.s32 %s807, 2
      %s1677 = smul.u32 %s1676, 3
      %s1678 = smul.addr %s1677, 4
      %s1679 = scalar_lea.vmem [#allocation2], %s1678
      %v1680 = vld [vmem:[%s1679] sm:$0xf]
      %v1681 = vld [vmem:[%s1679 + $0x4] sm:$0xf]
      %v1682 = vld [vmem:[%s1679 + $0xc] sm:$0xf]
      %v1683 = vld [vmem:[%s1679 + $0x10] sm:$0xf]
      %v1684 = vld [vmem:[%s1679 + $0x18] sm:$0xf]
      %v1685 = vld [vmem:[%s1679 + $0x1c] sm:$0xf]
      %v1686 = vld [vmem:[%s1679 + $0x24] sm:$0xf]
      %v1687 = vld [vmem:[%s1679 + $0x28] sm:$0xf]
      %v1688 = vld [vmem:[%s1679 + $0x30] sm:$0xf]
      %v1689 = vld [vmem:[%s1679 + $0x34] sm:$0xf]
      %v1690 = vld [vmem:[%s1679 + $0x3c] sm:$0xf]
      %v1691 = vld [vmem:[%s1679 + $0x40] sm:$0xf]
      %v1692 = vld [vmem:[%s1679 + $0x48] sm:$0xf]
      %v1693 = vld [vmem:[%s1679 + $0x4c] sm:$0xf]
      %v1694 = vld [vmem:[%s1679 + $0x54] sm:$0xf]
      %v1695 = vld [vmem:[%s1679 + $0x58] sm:$0xf]
      %v1696 = vld [vmem:[%s1679 + $0x8] sm:$0x1]
      %v1697 = vld [vmem:[%s1679 + $0x14] sm:$0x1]
      %v1698 = vld [vmem:[%s1679 + $0x20] sm:$0x1]
      %v1699 = vld [vmem:[%s1679 + $0x2c] sm:$0x1]
      %v1700 = vld [vmem:[%s1679 + $0x38] sm:$0x1]
      %v1701 = vld [vmem:[%s1679 + $0x44] sm:$0x1]
      %v1702 = vld [vmem:[%s1679 + $0x50] sm:$0x1]
      %v1703 = vld [vmem:[%s1679 + $0x5c] sm:$0x1]
      %v1704 = vld [vmem:[%s1679] sm:$0xe]
      %v1705 = vld [vmem:[%s1679 + $0xc] sm:$0xe]
      %v1706 = vld [vmem:[%s1679 + $0x18] sm:$0xe]
      %v1707 = vld [vmem:[%s1679 + $0x24] sm:$0xe]
      %v1708 = vld [vmem:[%s1679 + $0x30] sm:$0xe]
      %v1709 = vld [vmem:[%s1679 + $0x3c] sm:$0xe]
      %v1710 = vld [vmem:[%s1679 + $0x48] sm:$0xe]
      %v1711 = vld [vmem:[%s1679 + $0x54] sm:$0xe]
      %v1728 = vunpack.c.l.b16 %v1680
      %v1729 = vunpack.c.l.b16 %v1681
      %v1730 = vunpack.c.l.b16 %v1682
      %v1731 = vunpack.c.l.b16 %v1683
      %v1732 = vunpack.c.l.b16 %v1684
      %v1733 = vunpack.c.l.b16 %v1685
      %v1734 = vunpack.c.l.b16 %v1686
      %v1735 = vunpack.c.l.b16 %v1687
      %v1736 = vunpack.c.l.b16 %v1688
      %v1737 = vunpack.c.l.b16 %v1689
      %v1738 = vunpack.c.l.b16 %v1690
      %v1739 = vunpack.c.l.b16 %v1691
      %v1740 = vunpack.c.l.b16 %v1692
      %v1741 = vunpack.c.l.b16 %v1693
      %v1742 = vunpack.c.l.b16 %v1694
      %v1743 = vunpack.c.l.b16 %v1695
      %v1744 = vpack.c.b16 %v1729, %v1728
      %v1745 = vpack.c.b16 %v1731, %v1730
      %v1746 = vpack.c.b16 %v1733, %v1732
      %v1747 = vpack.c.b16 %v1735, %v1734
      %v1748 = vpack.c.b16 %v1737, %v1736
      %v1749 = vpack.c.b16 %v1739, %v1738
      %v1750 = vpack.c.b16 %v1741, %v1740
      %v1751 = vpack.c.b16 %v1743, %v1742
      %v1760 = vunpack.c.l.b16 %v1696
      %v1761 = vunpack.c.l.b16 %v1697
      %v1762 = vunpack.c.l.b16 %v1698
      %v1763 = vunpack.c.l.b16 %v1699
      %v1764 = vunpack.c.l.b16 %v1700
      %v1765 = vunpack.c.l.b16 %v1701
      %v1766 = vunpack.c.l.b16 %v1702
      %v1767 = vunpack.c.l.b16 %v1703
      %v1768 = vpack.c.b16 %v1760, %v1760
      %v1769 = vpack.c.b16 %v1761, %v1761
      %v1770 = vpack.c.b16 %v1762, %v1762
      %v1771 = vpack.c.b16 %v1763, %v1763
      %v1772 = vpack.c.b16 %v1764, %v1764
      %v1773 = vpack.c.b16 %v1765, %v1765
      %v1774 = vpack.c.b16 %v1766, %v1766
      %v1775 = vpack.c.b16 %v1767, %v1767
      %v1777 = vshrl.u32 %v1744, 16
      %v1779 = vshll.u32 %v1744, 16
      %v1781 = vrot.slane %v1779, 1
      %v1782 = vor.u32 %v1777, %v1781
      %v1784 = vshll.u32 %v1768, 16
      %v1786 = vrot.slane %v1784, 1
      %v1787 = vsel %vm907, %v1782, %v1786
      %v1789 = vshrl.u32 %v1745, 16
      %v1791 = vshll.u32 %v1745, 16
      %v1793 = vrot.slane %v1791, 1
      %v1794 = vor.u32 %v1789, %v1793
      %v1796 = vshll.u32 %v1769, 16
      %v1798 = vrot.slane %v1796, 1
      %v1799 = vsel %vm907, %v1794, %v1798
      %v1801 = vshrl.u32 %v1746, 16
      %v1803 = vshll.u32 %v1746, 16
      %v1805 = vrot.slane %v1803, 1
      %v1806 = vor.u32 %v1801, %v1805
      %v1808 = vshll.u32 %v1770, 16
      %v1810 = vrot.slane %v1808, 1
      %v1811 = vsel %vm907, %v1806, %v1810
      %v1813 = vshrl.u32 %v1747, 16
      %v1815 = vshll.u32 %v1747, 16
      %v1817 = vrot.slane %v1815, 1
      %v1818 = vor.u32 %v1813, %v1817
      %v1820 = vshll.u32 %v1771, 16
      %v1822 = vrot.slane %v1820, 1
      %v1823 = vsel %vm907, %v1818, %v1822
      %v1825 = vshrl.u32 %v1748, 16
      %v1827 = vshll.u32 %v1748, 16
      %v1829 = vrot.slane %v1827, 1
      %v1830 = vor.u32 %v1825, %v1829
      %v1832 = vshll.u32 %v1772, 16
      %v1834 = vrot.slane %v1832, 1
      %v1835 = vsel %vm907, %v1830, %v1834
      %v1837 = vshrl.u32 %v1749, 16
      %v1839 = vshll.u32 %v1749, 16
      %v1841 = vrot.slane %v1839, 1
      %v1842 = vor.u32 %v1837, %v1841
      %v1844 = vshll.u32 %v1773, 16
      %v1846 = vrot.slane %v1844, 1
      %v1847 = vsel %vm907, %v1842, %v1846
      %v1849 = vshrl.u32 %v1750, 16
      %v1851 = vshll.u32 %v1750, 16
      %v1853 = vrot.slane %v1851, 1
      %v1854 = vor.u32 %v1849, %v1853
      %v1856 = vshll.u32 %v1774, 16
      %v1858 = vrot.slane %v1856, 1
      %v1859 = vsel %vm907, %v1854, %v1858
      %v1861 = vshrl.u32 %v1751, 16
      %v1863 = vshll.u32 %v1751, 16
      %v1865 = vrot.slane %v1863, 1
      %v1866 = vor.u32 %v1861, %v1865
      %v1868 = vshll.u32 %v1775, 16
      %v1870 = vrot.slane %v1868, 1
      %v1871 = vsel %vm907, %v1866, %v1870
      %1872 = vrot.lane.b32.xlu0 %v1787, 4
      %v1873 = vpop.permute.xlu0 %1872
      %1874 = vrot.lane.b32.xlu0 %v1799, 4
      %v1875 = vpop.permute.xlu0 %1874
      %1876 = vrot.lane.b32.xlu0 %v1811, 4
      %v1877 = vpop.permute.xlu0 %1876
      %1878 = vrot.lane.b32.xlu0 %v1823, 4
      %v1879 = vpop.permute.xlu0 %1878
      %1880 = vrot.lane.b32.xlu0 %v1835, 4
      %v1881 = vpop.permute.xlu0 %1880
      %1882 = vrot.lane.b32.xlu0 %v1847, 4
      %v1883 = vpop.permute.xlu0 %1882
      %1884 = vrot.lane.b32.xlu0 %v1859, 4
      %v1885 = vpop.permute.xlu0 %1884
      %1886 = vrot.lane.b32.xlu0 %v1871, 4
      %v1887 = vpop.permute.xlu0 %1886
      %v1896 = vunpack.c.l.b16 %v1704
      %v1897 = vunpack.c.l.b16 %v1705
      %v1898 = vunpack.c.l.b16 %v1706
      %v1899 = vunpack.c.l.b16 %v1707
      %v1900 = vunpack.c.l.b16 %v1708
      %v1901 = vunpack.c.l.b16 %v1709
      %v1902 = vunpack.c.l.b16 %v1710
      %v1903 = vunpack.c.l.b16 %v1711
      %v1904 = vpack.c.b16 %v1729, %v1896
      %v1905 = vpack.c.b16 %v1731, %v1897
      %v1906 = vpack.c.b16 %v1733, %v1898
      %v1907 = vpack.c.b16 %v1735, %v1899
      %v1908 = vpack.c.b16 %v1737, %v1900
      %v1909 = vpack.c.b16 %v1739, %v1901
      %v1910 = vpack.c.b16 %v1741, %v1902
      %v1911 = vpack.c.b16 %v1743, %v1903
      %v1912 = vrot.slane %v1904, 1
      %v1913 = vrot.slane %v1768, 1
      %v1914 = vsel %vm1044, %v1912, %v1913
      %v1915 = vrot.slane %v1905, 1
      %v1916 = vrot.slane %v1769, 1
      %v1917 = vsel %vm1044, %v1915, %v1916
      %v1918 = vrot.slane %v1906, 1
      %v1919 = vrot.slane %v1770, 1
      %v1920 = vsel %vm1044, %v1918, %v1919
      %v1921 = vrot.slane %v1907, 1
      %v1922 = vrot.slane %v1771, 1
      %v1923 = vsel %vm1044, %v1921, %v1922
      %v1924 = vrot.slane %v1908, 1
      %v1925 = vrot.slane %v1772, 1
      %v1926 = vsel %vm1044, %v1924, %v1925
      %v1927 = vrot.slane %v1909, 1
      %v1928 = vrot.slane %v1773, 1
      %v1929 = vsel %vm1044, %v1927, %v1928
      %v1930 = vrot.slane %v1910, 1
      %v1931 = vrot.slane %v1774, 1
      %v1932 = vsel %vm1044, %v1930, %v1931
      %v1933 = vrot.slane %v1911, 1
      %v1934 = vrot.slane %v1775, 1
      %v1935 = vsel %vm1044, %v1933, %v1934
      %1936 = vrot.lane.b32.xlu0 %v1914, 8
      %v1937 = vpop.permute.xlu0 %1936
      %1938 = vrot.lane.b32.xlu0 %v1917, 8
      %v1939 = vpop.permute.xlu0 %1938
      %1940 = vrot.lane.b32.xlu0 %v1920, 8
      %v1941 = vpop.permute.xlu0 %1940
      %1942 = vrot.lane.b32.xlu0 %v1923, 8
      %v1943 = vpop.permute.xlu0 %1942
      %1944 = vrot.lane.b32.xlu0 %v1926, 8
      %v1945 = vpop.permute.xlu0 %1944
      %1946 = vrot.lane.b32.xlu0 %v1929, 8
      %v1947 = vpop.permute.xlu0 %1946
      %1948 = vrot.lane.b32.xlu0 %v1932, 8
      %v1949 = vpop.permute.xlu0 %1948
      %1950 = vrot.lane.b32.xlu0 %v1935, 8
      %v1951 = vpop.permute.xlu0 %1950
      %v1953 = vsel %vm1085, %v1744, %v1873
      %v1955 = vsel %vm1085, %v1745, %v1875
      %v1957 = vsel %vm1085, %v1746, %v1877
      %v1959 = vsel %vm1085, %v1747, %v1879
      %v1961 = vsel %vm1085, %v1748, %v1881
      %v1963 = vsel %vm1085, %v1749, %v1883
      %v1965 = vsel %vm1085, %v1750, %v1885
      %v1967 = vsel %vm1085, %v1751, %v1887
      %v1969 = vsel %vm1102, %v1953, %v1937
      %v1971 = vsel %vm1102, %v1955, %v1939
      %v1973 = vsel %vm1102, %v1957, %v1941
      %v1975 = vsel %vm1102, %v1959, %v1943
      %v1977 = vsel %vm1102, %v1961, %v1945
      %v1979 = vsel %vm1102, %v1963, %v1947
      %v1981 = vsel %vm1102, %v1965, %v1949
      %v1983 = vsel %vm1102, %v1967, %v1951
      %s1984 = scalar_lea.vmem %s1, 16
      %v1985 = vld [vmem:[%s1984] sm:$0xf]
      %v1986 = vld [vmem:[%s1984 + $0x4] sm:$0x3]
      %v1989 = vunpack.c.l.b16 %v1985
      %v1990 = vunpack.c.l.b16 %v1986
      %v1991 = vpack.c.b16 %v1990, %v1989
      %v1992 = vsel %vm1437, %v1969, 0
      %v1994 = vsel %vm1437, %v1971, 0
      %v1996 = vsel %vm1437, %v1973, 0
      %v1998 = vsel %vm1437, %v1975, 0
      %v2000 = vsel %vm1437, %v1977, 0
      %v2002 = vsel %vm1437, %v1979, 0
      %v2004 = vsel %vm1437, %v1981, 0
      %v2006 = vsel %vm1437, %v1983, 0
      %v2009 = vsel %vm1454, %v1991, 0
      %2011 = vmatprep.subr.bf16.mxu0 0
      %2012 = vmatpush1.bf16.msra.mxu0 0
      %2013 = vmatprep.subr.bf16.mxu0 0
      %2014 = vmatpush1.bf16.msra.mxu0 0
      %2015 = vmatprep.subr.bf16.mxu0 0
      %2016 = vmatpush1.bf16.msra.mxu0 0
      %2017 = vmatprep.subr.bf16.mxu0 0
      %2018 = vmatpush1.bf16.msra.mxu0 0
      %2019 = vmatprep.subr.bf16.mxu0 0
      %2020 = vmatpush1.bf16.msra.mxu0 0
      %2021 = vmatprep.subr.bf16.mxu0 0
      %2022 = vmatpush1.bf16.msra.mxu0 0
      %2023 = vmatprep.subr.bf16.mxu0 0
      %2024 = vmatpush1.bf16.msra.mxu0 0
      %2025 = vmatprep.subr.bf16.mxu0 0
      %2026 = vmatpush1.bf16.msra.mxu0 %v2009
      %2027 = vmatprep.subr.bf16.mxu0 0
      %2028 = vmatpush2.bf16.msra.mxu0 0
      %2029 = vmatprep.subr.bf16.mxu0 0
      %2030 = vmatpush2.bf16.msra.mxu0 0
      %2031 = vmatprep.subr.bf16.mxu0 0
      %2032 = vmatpush2.bf16.msra.mxu0 0
      %2033 = vmatprep.subr.bf16.mxu0 0
      %2034 = vmatpush2.bf16.msra.mxu0 0
      %2035 = vmatprep.subr.bf16.mxu0 0
      %2036 = vmatpush2.bf16.msra.mxu0 0
      %2037 = vmatprep.subr.bf16.mxu0 0
      %2038 = vmatpush2.bf16.msra.mxu0 0
      %2039 = vmatprep.subr.bf16.mxu0 0
      %2040 = vmatpush2.bf16.msra.mxu0 0
      %2041 = vmatprep.subr.bf16.mxu0 0
      %2042 = vmatpush2.bf16.msra.mxu0 0
      %2043 = vmatprep.mubr.bf16.mxu0 0
      %2044 = vmatmul.mubr.bf16.gmra.mxu0 %v1992
      %v2045 = vpop.f32.mrf.mxu0
      %v2046 = vadd.f32 0.0, %v2045
      %v2047 = vpop.f32.mrf.mxu0
      %v2048 = vpop.f32.mrf.mxu0
      %v2049 = vadd.f32 0.0, %v2048
      %v2050 = vpop.f32.mrf.mxu0
      %2051 = vmatprep.mubr.bf16.mxu0 0
      %2052 = vmatmul.mubr.bf16.gmra.mxu0 %v1994
      %v2053 = vpop.f32.mrf.mxu0
      %v2054 = vadd.f32 0.0, %v2053
      %v2055 = vpop.f32.mrf.mxu0
      %v2056 = vpop.f32.mrf.mxu0
      %v2057 = vadd.f32 0.0, %v2056
      %v2058 = vpop.f32.mrf.mxu0
      %2059 = vmatprep.mubr.bf16.mxu0 0
      %2060 = vmatmul.mubr.bf16.gmra.mxu0 %v1996
      %v2061 = vpop.f32.mrf.mxu0
      %v2062 = vadd.f32 0.0, %v2061
      %v2063 = vpop.f32.mrf.mxu0
      %v2064 = vpop.f32.mrf.mxu0
      %v2065 = vadd.f32 0.0, %v2064
      %v2066 = vpop.f32.mrf.mxu0
      %2067 = vmatprep.mubr.bf16.mxu0 0
      %2068 = vmatmul.mubr.bf16.gmra.mxu0 %v1998
      %v2069 = vpop.f32.mrf.mxu0
      %v2070 = vadd.f32 0.0, %v2069
      %v2071 = vpop.f32.mrf.mxu0
      %v2072 = vpop.f32.mrf.mxu0
      %v2073 = vadd.f32 0.0, %v2072
      %v2074 = vpop.f32.mrf.mxu0
      %2075 = vmatprep.mubr.bf16.mxu0 0
      %2076 = vmatmul.mubr.bf16.gmra.mxu0 %v2000
      %v2077 = vpop.f32.mrf.mxu0
      %v2078 = vadd.f32 0.0, %v2077
      %v2079 = vpop.f32.mrf.mxu0
      %v2080 = vpop.f32.mrf.mxu0
      %v2081 = vadd.f32 0.0, %v2080
      %v2082 = vpop.f32.mrf.mxu0
      %2083 = vmatprep.mubr.bf16.mxu0 0
      %2084 = vmatmul.mubr.bf16.gmra.mxu0 %v2002
      %v2085 = vpop.f32.mrf.mxu0
      %v2086 = vadd.f32 0.0, %v2085
      %v2087 = vpop.f32.mrf.mxu0
      %v2088 = vpop.f32.mrf.mxu0
      %v2089 = vadd.f32 0.0, %v2088
      %v2090 = vpop.f32.mrf.mxu0
      %2091 = vmatprep.mubr.bf16.mxu0 0
      %2092 = vmatmul.mubr.bf16.gmra.mxu0 %v2004
      %v2093 = vpop.f32.mrf.mxu0
      %v2094 = vadd.f32 0.0, %v2093
      %v2095 = vpop.f32.mrf.mxu0
      %v2096 = vpop.f32.mrf.mxu0
      %v2097 = vadd.f32 0.0, %v2096
      %v2098 = vpop.f32.mrf.mxu0
      %2099 = vmatprep.mubr.bf16.mxu0 0
      %2100 = vmatmul.mubr.bf16.gmra.mxu0 %v2006
      %v2101 = vpop.f32.mrf.mxu0
      %v2102 = vadd.f32 0.0, %v2101
      %v2103 = vpop.f32.mrf.mxu0
      %v2104 = vpop.f32.mrf.mxu0
      %v2105 = vadd.f32 0.0, %v2104
      %v2106 = vpop.f32.mrf.mxu0
      %2107 = vdwg.mxu0
      %v2108 = vadd.f32 %v1614, %v2046
      %v2109 = vadd.f32 %v1617, %v2049
      %v2110 = vadd.f32 %v1622, %v2054
      %v2111 = vadd.f32 %v1625, %v2057
      %v2112 = vadd.f32 %v1630, %v2062
      %v2113 = vadd.f32 %v1633, %v2065
      %v2114 = vadd.f32 %v1638, %v2070
      %v2115 = vadd.f32 %v1641, %v2073
      %v2116 = vadd.f32 %v1646, %v2078
      %v2117 = vadd.f32 %v1649, %v2081
      %v2118 = vadd.f32 %v1654, %v2086
      %v2119 = vadd.f32 %v1657, %v2089
      %v2120 = vadd.f32 %v1662, %v2094
      %v2121 = vadd.f32 %v1665, %v2097
      %v2122 = vadd.f32 %v1670, %v2102
      %v2123 = vadd.f32 %v1673, %v2105
      %v2124 = vld [vmem:[%s2] sm:$0x1]
      %v2126 = vlaneseq
      %v2127 = vshrl.u32 %v2126, 7
      %v2128 = vsub.s32 0, %v2127
      %v2129 = vrot.slane %v2124, %v2128
      %v2131 = vmul.f32 %v2108, %v2129
      %v2132 = vmul.f32 %v2109, %v2129
      %v2133 = vmul.f32 %v2110, %v2129
      %v2134 = vmul.f32 %v2111, %v2129
      %v2135 = vmul.f32 %v2112, %v2129
      %v2136 = vmul.f32 %v2113, %v2129
      %v2137 = vmul.f32 %v2114, %v2129
      %v2138 = vmul.f32 %v2115, %v2129
      %v2139 = vmul.f32 %v2116, %v2129
      %v2140 = vmul.f32 %v2117, %v2129
      %v2141 = vmul.f32 %v2118, %v2129
      %v2142 = vmul.f32 %v2119, %v2129
      %v2143 = vmul.f32 %v2120, %v2129
      %v2144 = vmul.f32 %v2121, %v2129
      %v2145 = vmul.f32 %v2122, %v2129
      %v2146 = vmul.f32 %v2123, %v2129
      %v2147 = vld [vmem:[%s3] sm:$0x1]
      %v2149 = vlaneseq
      %v2150 = vshrl.u32 %v2149, 7
      %v2151 = vsub.s32 0, %v2150
      %v2152 = vrot.slane %v2147, %v2151
      %v2154 = vadd.f32 %v2131, %v2152
      %v2155 = vadd.f32 %v2132, %v2152
      %v2156 = vadd.f32 %v2133, %v2152
      %v2157 = vadd.f32 %v2134, %v2152
      %v2158 = vadd.f32 %v2135, %v2152
      %v2159 = vadd.f32 %v2136, %v2152
      %v2160 = vadd.f32 %v2137, %v2152
      %v2161 = vadd.f32 %v2138, %v2152
      %v2162 = vadd.f32 %v2139, %v2152
      %v2163 = vadd.f32 %v2140, %v2152
      %v2164 = vadd.f32 %v2141, %v2152
      %v2165 = vadd.f32 %v2142, %v2152
      %v2166 = vadd.f32 %v2143, %v2152
      %v2167 = vadd.f32 %v2144, %v2152
      %v2168 = vadd.f32 %v2145, %v2152
      %v2169 = vadd.f32 %v2146, %v2152
      %v2170 = vmax.f32 %v2154, 0.0
      %v2171 = vmax.f32 %v2155, 0.0
      %v2172 = vmax.f32 %v2156, 0.0
      %v2173 = vmax.f32 %v2157, 0.0
      %v2174 = vmax.f32 %v2158, 0.0
      %v2175 = vmax.f32 %v2159, 0.0
      %v2176 = vmax.f32 %v2160, 0.0
      %v2177 = vmax.f32 %v2161, 0.0
      %v2178 = vmax.f32 %v2162, 0.0
      %v2179 = vmax.f32 %v2163, 0.0
      %v2180 = vmax.f32 %v2164, 0.0
      %v2181 = vmax.f32 %v2165, 0.0
      %v2182 = vmax.f32 %v2166, 0.0
      %v2183 = vmax.f32 %v2167, 0.0
      %v2184 = vmax.f32 %v2168, 0.0
      %v2185 = vmax.f32 %v2169, 0.0
      %v2186 = vpack.c.bf16 %v2171, %v2170
      %v2187 = vpack.c.bf16 %v2173, %v2172
      %v2188 = vpack.c.bf16 %v2175, %v2174
      %v2189 = vpack.c.bf16 %v2177, %v2176
      %v2190 = vpack.c.bf16 %v2179, %v2178
      %v2191 = vpack.c.bf16 %v2181, %v2180
      %v2192 = vpack.c.bf16 %v2183, %v2182
      %v2193 = vpack.c.bf16 %v2185, %v2184
      %v2202 = vunpack.c.l.b16 %v2186
      %v2203 = vunpack.c.h.b16 %v2186
      %v2204 = vunpack.c.l.b16 %v2187
      %v2205 = vunpack.c.h.b16 %v2187
      %v2206 = vunpack.c.l.b16 %v2188
      %v2207 = vunpack.c.h.b16 %v2188
      %v2208 = vunpack.c.l.b16 %v2189
      %v2209 = vunpack.c.h.b16 %v2189
      %v2210 = vunpack.c.l.b16 %v2190
      %v2211 = vunpack.c.h.b16 %v2190
      %v2212 = vunpack.c.l.b16 %v2191
      %v2213 = vunpack.c.h.b16 %v2191
      %v2214 = vunpack.c.l.b16 %v2192
      %v2215 = vunpack.c.h.b16 %v2192
      %v2216 = vunpack.c.l.b16 %v2193
      %v2217 = vunpack.c.h.b16 %v2193
      %v2218 = vpack.c.b16 %v2202, %v2202
      %v2219 = vpack.c.b16 %v2203, %v2203
      %v2220 = vpack.c.b16 %v2204, %v2204
      %v2221 = vpack.c.b16 %v2205, %v2205
      %v2222 = vpack.c.b16 %v2206, %v2206
      %v2223 = vpack.c.b16 %v2207, %v2207
      %v2224 = vpack.c.b16 %v2208, %v2208
      %v2225 = vpack.c.b16 %v2209, %v2209
      %v2226 = vpack.c.b16 %v2210, %v2210
      %v2227 = vpack.c.b16 %v2211, %v2211
      %v2228 = vpack.c.b16 %v2212, %v2212
      %v2229 = vpack.c.b16 %v2213, %v2213
      %v2230 = vpack.c.b16 %v2214, %v2214
      %v2231 = vpack.c.b16 %v2215, %v2215
      %v2232 = vpack.c.b16 %v2216, %v2216
      %v2233 = vpack.c.b16 %v2217, %v2217
      %vm2250 = vcmask 27648
      %2251 = vst.msk [vmem:[%s221] sm:$0xf] %vm2250, %v2218
      %2252 = vst.msk [vmem:[%s221 + $0x4] sm:$0xf] %vm2250, %v2219
      %2253 = vst.msk [vmem:[%s221 + $0x8] sm:$0xf] %vm2250, %v2220
      %2254 = vst.msk [vmem:[%s221 + $0xc] sm:$0xf] %vm2250, %v2221
      %2255 = vst.msk [vmem:[%s221 + $0x10] sm:$0xf] %vm2250, %v2222
      %2256 = vst.msk [vmem:[%s221 + $0x14] sm:$0xf] %vm2250, %v2223
      %2257 = vst.msk [vmem:[%s221 + $0x18] sm:$0xf] %vm2250, %v2224
      %2258 = vst.msk [vmem:[%s221 + $0x1c] sm:$0xf] %vm2250, %v2225
      %2259 = vst.msk [vmem:[%s221 + $0x20] sm:$0xf] %vm2250, %v2226
      %2260 = vst.msk [vmem:[%s221 + $0x24] sm:$0xf] %vm2250, %v2227
      %2261 = vst.msk [vmem:[%s221 + $0x28] sm:$0xf] %vm2250, %v2228
      %2262 = vst.msk [vmem:[%s221 + $0x2c] sm:$0xf] %vm2250, %v2229
      %2263 = vst.msk [vmem:[%s221 + $0x30] sm:$0xf] %vm2250, %v2230
      %2264 = vst.msk [vmem:[%s221 + $0x34] sm:$0xf] %vm2250, %v2231
      %2265 = vst.msk [vmem:[%s221 + $0x38] sm:$0xf] %vm2250, %v2232
      %2266 = vst.msk [vmem:[%s221 + $0x3c] sm:$0xf] %vm2250, %v2233
      %s2267 = smul.u32 8, %s20
      %p2268 = scmp.lt.s32.totalorder %s19, 1
      %s2269 = scalar_select %p2268, %s19, 1
      %p2270 = scmp.lt.s32.totalorder %s2267, 15
      %s2271 = scalar_select %p2270, %s2267, 15
      %s2272 = smul.addr %s2271, 2
      %s2273 = smul.addr %s2269, 32
      %s2274 = sadd.s32 %s2272, %s2273
      %s2275 = smul.addr %s2274, 4
      %s2276 = scalar_lea.vmem %s4, %s2275
      // Predicated region
      $region41: #{bottleneck_forward.4} parent=35 // pred_check
        %p2277 = pneg %p136
      $region42: #{bottleneck_forward.4} parent=35 // pred_check_branch
        %2279 = sbr.rel (%p2277) target = $region44
      $region43: #{bottleneck_forward.4} parent=35 // pred_region
        %s2280 = smul.u32 8, %s20
      $region44: #{bottleneck_forward.4} parent=35 // pred_fallthru
        _
    $region36: #{bottleneck_forward.4} parent=5 // pred_fallthru
      _
    %p2281 = scmp.le.s32.totalorder 2, %s10
    // Predicated region
    $region45: #{bottleneck_forward.4} parent=5 // pred_check
      %p2282 = pneg %p2281
    $region46: #{bottleneck_forward.4} parent=5 // pred_check_branch
      %2284 = sbr.rel (%p2282) target = $region48
    $region47: #{bottleneck_forward.4} parent=5 // pred_region
      %s2285 = ssub.s32 %s10, 2
      // Predicated region
      $region49: #{bottleneck_forward.4} parent=47 // pred_check
        %p2286 = pneg %p142
      $region50: #{bottleneck_forward.4} parent=47 // pred_check_branch
        %2288 = sbr.rel (%p2286) target = $region52
      $region51: #{bottleneck_forward.4} parent=47 // pred_region
        %s2289 = smul.u32 8, %s22
        %p2290 = scmp.lt.s32.totalorder %s21, 1
        %s2291 = scalar_select %p2290, %s21, 1
        %p2292 = scmp.lt.s32.totalorder %s2289, 15
        %s2293 = scalar_select %p2292, %s2289, 15
        %s2294 = smul.addr %s2293, 2
        %s2295 = smul.addr %s2291, 32
        %s2296 = sadd.s32 %s2294, %s2295
        %s2297 = smul.addr %s2296, 4
        %s2298 = scalar_lea.vmem %s4, %s2297
      $region52: #{bottleneck_forward.4} parent=47 // pred_fallthru
        _
    $region48: #{bottleneck_forward.4} parent=5 // pred_fallthru
      _
  $region6: #{bottleneck_forward.4} parent=0 // loop_footer
    %s14 = sadd.s32 1, %s10
  $region7: #{bottleneck_forward.4} parent=0 // loop_footer_branch
    %9 = sbr.rel target = $region3
  $region8: #{bottleneck_forward.4} parent=0 // loop_exit
    _

</llo_original>
